<compile_context>
chip_gen: v6e
topology: v6e:2x2x1
jax: 0.10.0
libtpu: 0.0.40
codegen_flags: <defaults>
</compile_context>

<pallas_src>
import functools

import jax
import jax.numpy as jnp
from jax.experimental import pallas as pl
from jax.experimental.pallas import tpu as pltpu

SUBLANE = 8  # f32 sublane multiple; recurrent state / scratches are f32.


def _round_up(x, m):
    return ((x + m - 1) // m) * m


# --------------------------------------------------------------------------
# Kernels
# --------------------------------------------------------------------------
def encoder_kernel(x_ref, slen_ref, w1_ref, b1_ref, w2_ref, b2_ref,
                   wih_ref, whh_ref, bias_ref,
                   e2h_w1_ref, e2h_b1_ref, e2h_w2_ref, e2h_b2_ref,
                   h0_ref, tm_ref, *, S, Bp, L):
    """Fused encoder: emb_to_hid MLP + L-layer Elman RNN + last-valid-step select
    + (fused) decoder enc_to_hid MLP.

    x_ref:    (S*Bp, E)  time-major embedded source tokens (bf16 or f32)
    slen_ref: (Bp, 1)    int32 source lengths (padded rows = 1)
    wih/whh:  (L, H, H)  pre-transposed RNN weights; bias_ref: (L, 1, H) = b_ih + b_hh
    h0_ref:   (Bp, Ld*Hd) f32  = enc_to_hid(enc_hid), raw-reshaped on the host
    tm_ref:   (S*Bp, H)  f32 VMEM scratch for inter-layer activations
    """
    f32 = jnp.float32
    H = whh_ref.shape[-1]

    def mm(a, w):
        return jnp.dot(a.astype(w.dtype), w, preferred_element_type=f32)

    # emb_to_hid MLP: Linear -> ReLU -> Linear -> ReLU (dropout = identity at eval).
    h = jnp.maximum(mm(x_ref[...], w1_ref[...]) + b1_ref[...], 0.0)
    cur = jnp.maximum(mm(h, w2_ref[...]) + b2_ref[...], 0.0)        # (S*Bp, H) f32

    tlast = slen_ref[...] - 1                                       # (Bp, 1), hoisted
    enc_hid = jnp.zeros((Bp, H), f32)

    for l in range(L):
        wih, whh, bias = wih_ref[l], whh_ref[l], bias_ref[l]
        # Hoisted input projection for ALL timesteps: one big MXU matmul.
        xb = mm(cur, wih) + bias                                    # (S*Bp, H) f32
        hprev = jnp.zeros((Bp, H), f32)
        last = l == L - 1
        for t in range(S):                                          # static unroll (S small)
            xb_t = xb[t * Bp:(t + 1) * Bp, :]                       # sublane-aligned slice
            hprev = jnp.tanh(xb_t + mm(hprev, whh))
            if last:
                # out[b, src_len[b]-1] gather expressed as a masked select.
                enc_hid = jnp.where(tlast == t, hprev, enc_hid)
            else:
                tm_ref[t * Bp:(t + 1) * Bp, :] = hprev              # aligned scratch write
        if not last:
            cur = tm_ref[...]

    # Decoder's enc_to_hid MLP, fused here (enc_hid is already in VMEM). The raw
    # (B, L*H) -> (L, B, H) reshape (which crosses batch rows) is done host-side on
    # the unpadded batch.
    g = jnp.maximum(mm(enc_hid, e2h_w1_ref[...]) + e2h_b1_ref[...], 0.0)
    h0_ref[...] = jnp.maximum(mm(g, e2h_w2_ref[...]) + e2h_b2_ref[...], 0.0)


def decoder_kernel(y_ref, h0_ref, mw1_ref, mb1_ref, mw2_ref, mb2_ref,
                   wih_ref, whh_ref, bias_ref,
                   h2e_w1_ref, h2e_b1_ref, h2e_w2_ref, h2e_b2_ref,
                   embT_ref, out_ref, tm_ref, *, S, Bp, L):
    """Fused decoder: emb_to_hid MLP + L-layer RNN (h0 provided pre-shaped) +
    hid_to_emb MLP + tied-embedding logits, emitted batch-major (Bp, S, V).

    y_ref:   (S*Bp, E) time-major embedded target tokens
    h0_ref:  (L, Bp, H) f32 initial hidden states
    embT_ref:(E, V)    host-pre-transposed tied embedding
    out_ref: (Bp, S, V) f32 logits, already in the consumer's layout
    tm_ref:  (S*Bp, H) f32 VMEM scratch (time-major RNN activations)
    """
    f32 = jnp.float32
    H = whh_ref.shape[-1]

    def mm(a, w):
        return jnp.dot(a.astype(w.dtype), w, preferred_element_type=f32)

    # emb_to_hid MLP.
    h = jnp.maximum(mm(y_ref[...], mw1_ref[...]) + mb1_ref[...], 0.0)
    cur = jnp.maximum(mm(h, mw2_ref[...]) + mb2_ref[...], 0.0)      # (S*Bp, H) f32

    for l in range(L):
        wih, whh, bias = wih_ref[l], whh_ref[l], bias_ref[l]
        xb = mm(cur, wih) + bias                                    # hoisted input proj
        hprev = h0_ref[l]                                           # (Bp, H) f32
        for t in range(S):
            xb_t = xb[t * Bp:(t + 1) * Bp, :]
            hprev = jnp.tanh(xb_t + mm(hprev, whh))
            tm_ref[t * Bp:(t + 1) * Bp, :] = hprev                  # aligned scratch write
        if l < L - 1:
            cur = tm_ref[...]

    # hid_to_emb MLP (Linear -> ReLU -> Linear) + tied-embedding logits, produced
    # batch-major: for each batch row, gather its S time-major rows with a strided
    # load and write the (S, V) block straight into out_ref[b].
    hw1, hw2 = h2e_w1_ref[...], h2e_w2_ref[...]
    hb1 = jnp.broadcast_to(h2e_b1_ref[...], (S, h2e_b1_ref.shape[-1]))
    hb2 = jnp.broadcast_to(h2e_b2_ref[...], (S, h2e_b2_ref.shape[-1]))
    emb_t = embT_ref[...]
    for b in range(Bp):
        hb = tm_ref[pl.ds(b, S, stride=Bp), :]                      # (S, H): batch b, all t
        zb = jnp.maximum(jnp.dot(hb.astype(hw1.dtype), hw1,
                                 preferred_element_type=f32) + hb1, 0.0)
        zb = jnp.dot(zb.astype(hw2.dtype), hw2,
                     preferred_element_type=f32) + hb2              # (S, E), no final ReLU
        out_ref[b] = jnp.dot(zb.astype(emb_t.dtype), emb_t,
                             preferred_element_type=f32)            # (S, V)


# --------------------------------------------------------------------------
# Pallas wrappers
# --------------------------------------------------------------------------
def encoder_forward(p, cfg, src, src_len):
    """Returns the decoder initial-state projection enc_to_hid(enc(src)) of shape
    (B, dec_n_layer * dec_d_hid) (unpadded)."""
    B, S = src.shape
    He, Le = cfg["enc_d_hid"], cfg["enc_n_layer"]
    Hd, Ld = cfg["dec_d_hid"], cfg["dec_n_layer"]
    Bp = _round_up(B, SUBLANE)

    # Pad batch to a sublane multiple; pad tokens are padding_idx=0 (zero embedding).
    src_p = jnp.zeros((Bp, S), jnp.int32).at[:B].set(src.astype(jnp.int32))
    slen_p = jnp.ones((Bp,), jnp.int32).at[:B].set(src_len.astype(jnp.int32)).reshape(Bp, 1)
    # Gather directly in time-major order: no (B,S,E) + transpose copies in HBM.
    x_tm = jnp.take(p["enc_emb"], src_p.T.reshape(-1), axis=0)      # (S*Bp, E)

    h0_flat = pl.pallas_call(
        functools.partial(encoder_kernel, S=S, Bp=Bp, L=Le),
        out_shape=jax.ShapeDtypeStruct((Bp, Ld * Hd), jnp.float32),
        scratch_shapes=[pltpu.VMEM((S * Bp, He), jnp.float32)],
    )(x_tm, slen_p,
      p["enc_m_w1"], p["enc_m_b1"], p["enc_m_w2"], p["enc_m_b2"],
      p["enc_wih"], p["enc_whh"], p["enc_bias"],
      p["e2h_w1"], p["e2h_b1"], p["e2h_w2"], p["e2h_b2"])
    return h0_flat[:B]                                              # (B, Ld*Hd)


def decoder_forward(p, cfg, h0_flat, tgt):
    B, S = tgt.shape
    Hd, Ld, V = cfg["dec_d_hid"], cfg["dec_n_layer"], cfg["dec_n_vocab"]
    Bp = _round_up(B, SUBLANE)

    tgt_p = jnp.zeros((Bp, S), jnp.int32).at[:B].set(tgt.astype(jnp.int32))
    y_tm = jnp.take(p["dec_emb"], tgt_p.T.reshape(-1), axis=0)      # (S*Bp, E)

    # PyTorch: enc_to_hid(enc_hid).reshape(L, -1, H) — a RAW reshape of the (B, L*H)
    # tensor (it deliberately crosses batch rows); done here on the unpadded batch,
    # then zero-padded to (L, Bp, H) so the kernel's per-layer init is just h0_ref[l].
    h0 = h0_flat.astype(jnp.float32).reshape(Ld, B, Hd)
    h0_p = jnp.zeros((Ld, Bp, Hd), jnp.float32).at[:, :B].set(h0)

    out = pl.pallas_call(
        functools.partial(decoder_kernel, S=S, Bp=Bp, L=Ld),
        out_shape=jax.ShapeDtypeStruct((Bp, S, V), jnp.float32),
        scratch_shapes=[pltpu.VMEM((S * Bp, Hd), jnp.float32)],
    )(y_tm, h0_p,
      p["dec_m_w1"], p["dec_m_b1"], p["dec_m_w2"], p["dec_m_b2"],
      p["dec_wih"], p["dec_whh"], p["dec_bias"],
      p["h2e_w1"], p["h2e_b1"], p["h2e_w2"], p["h2e_b2"],
      p["dec_emb_t"])
    return out[:B]                                                  # (B, S, V), batch-major


def rnn_model_forward(p, cfg, src, src_len, tgt):
    # TODO(synk): is_bidir=True (bidirectional encoder) not implemented; config uses False.
    h0_flat = encoder_forward(p, cfg, src, src_len)
    return decoder_forward(p, cfg, h0_flat, tgt)


# --------------------------------------------------------------------------
# Parameter construction (deterministic, synthetic). Weights/embeddings stored in
# `w_dtype` (bf16 recommended: MXU operands), biases f32; Linear weights are stored
# pre-transposed to (D_in, D_out); RNN bias = b_ih + b_hh; tied embedding also
# stored pre-transposed as (E, V).
# --------------------------------------------------------------------------
def _init(key, shape, dtype, scale=0.1):
    return (scale * jax.random.normal(key, shape, dtype=jnp.float32)).astype(dtype)


def make_params(key, cfg, w_dtype=jnp.bfloat16):
    f32 = jnp.float32
    keys = iter(jax.random.split(key, 64))
    p = {}
    He, Hd = cfg["enc_d_hid"], cfg["dec_d_hid"]
    Le, Ld = cfg["enc_n_layer"], cfg["dec_n_layer"]
    E_e, E_d = cfg["enc_d_emb"], cfg["dec_d_emb"]

    # Encoder embedding (padding_idx=0 -> row 0 zeroed) + emb_to_hid MLP.
    p["enc_emb"] = _init(next(keys), (cfg["enc_n_vocab"], E_e), w_dtype).at[0].set(0.0)
    p["enc_m_w1"] = _init(next(keys), (E_e, He), w_dtype)
    p["enc_m_b1"] = _init(next(keys), (1, He), f32)
    p["enc_m_w2"] = _init(next(keys), (He, He), w_dtype)
    p["enc_m_b2"] = _init(next(keys), (1, He), f32)
    # Encoder RNN layers, stacked.
    p["enc_wih"] = jnp.stack([_init(next(keys), (He, He), w_dtype) for _ in range(Le)])
    p["enc_whh"] = jnp.stack([_init(next(keys), (He, He), w_dtype) for _ in range(Le)])
    p["enc_bias"] = jnp.stack(
        [_init(next(keys), (1, He), f32) + _init(next(keys), (1, He), f32) for _ in range(Le)])

    # Decoder embedding (+ host-side pre-transposed copy for the tied logits).
    p["dec_emb"] = _init(next(keys), (cfg["dec_n_vocab"], E_d), w_dtype).at[0].set(0.0)
    p["dec_emb_t"] = p["dec_emb"].T                                  # (E, V)
    # Decoder emb_to_hid MLP.
    p["dec_m_w1"] = _init(next(keys), (E_d, Hd), w_dtype)
    p["dec_m_b1"] = _init(next(keys), (1, Hd), f32)
    p["dec_m_w2"] = _init(next(keys), (Hd, Hd), w_dtype)
    p["dec_m_b2"] = _init(next(keys), (1, Hd), f32)
    # enc_to_hid MLP: enc_d_hid*(is_bidir+1) -> dec_d_hid*dec_n_layer (x2, ReLU'd).
    d_in = He * (cfg["is_bidir"] + 1)
    d_out = Hd * Ld
    p["e2h_w1"] = _init(next(keys), (d_in, d_out), w_dtype)
    p["e2h_b1"] = _init(next(keys), (1, d_out), f32)
    p["e2h_w2"] = _init(next(keys), (d_out, d_out), w_dtype)
    p["e2h_b2"] = _init(next(keys), (1, d_out), f32)
    # Decoder RNN layers, stacked.
    p["dec_wih"] = jnp.stack([_init(next(keys), (Hd, Hd), w_dtype) for _ in range(Ld)])
    p["dec_whh"] = jnp.stack([_init(next(keys), (Hd, Hd), w_dtype) for _ in range(Ld)])
    p["dec_bias"] = jnp.stack(
        [_init(next(keys), (1, Hd), f32) + _init(next(keys), (1, Hd), f32) for _ in range(Ld)])
    # hid_to_emb MLP: Hd -> Hd (ReLU) -> E_d (no ReLU).
    p["h2e_w1"] = _init(next(keys), (Hd, Hd), w_dtype)
    p["h2e_b1"] = _init(next(keys), (1, Hd), f32)
    p["h2e_w2"] = _init(next(keys), (Hd, E_d), w_dtype)
    p["h2e_b2"] = _init(next(keys), (1, E_d), f32)
    return p


# --------------------------------------------------------------------------
if __name__ == "__main__":
    cfg = dict(
        enc_n_vocab=32, dec_n_vocab=32,
        enc_d_emb=16, dec_d_emb=16,
        enc_d_hid=32, dec_d_hid=32,
        enc_n_layer=2, dec_n_layer=2,
        is_bidir=0,
    )
    B, S_src, S_tgt = 2, 8, 8

    key = jax.random.PRNGKey(0)
    k_p, k_src, k_tgt = jax.random.split(key, 3)
    params = make_params(k_p, cfg, w_dtype=jnp.bfloat16)

    src = jax.random.randint(k_src, (B, S_src), 1, cfg["enc_n_vocab"], dtype=jnp.int32)
    tgt = jax.random.randint(k_tgt, (B, S_tgt), 1, cfg["dec_n_vocab"], dtype=jnp.int32)
    src_len = jnp.array([S_src, S_src - 3], dtype=jnp.int32)

    forward = jax.jit(lambda prm, s, sl, t: rnn_model_forward(prm, cfg, s, sl, t))
    out = forward(params, src, src_len, tgt)
    jax.block_until_ready(out)
    assert out.shape == (B, S_tgt, cfg["dec_n_vocab"])
    assert bool(jnp.all(jnp.isfinite(out)))
    print("KERNEL_OK")
</pallas_src>

<mosaic_0001>
module attributes {stable_mosaic.version = 11 : i64} {
  func.func @encoder_kernel(%arg0: memref<64x16xbf16, #tpu.memory_space<vmem>>, %arg1: memref<8x1xi32, #tpu.memory_space<vmem>>, %arg2: memref<16x32xbf16, #tpu.memory_space<vmem>>, %arg3: memref<1x32xf32, #tpu.memory_space<vmem>>, %arg4: memref<32x32xbf16, #tpu.memory_space<vmem>>, %arg5: memref<1x32xf32, #tpu.memory_space<vmem>>, %arg6: memref<2x32x32xbf16, #tpu.memory_space<vmem>>, %arg7: memref<2x32x32xbf16, #tpu.memory_space<vmem>>, %arg8: memref<2x1x32xf32, #tpu.memory_space<vmem>>, %arg9: memref<32x64xbf16, #tpu.memory_space<vmem>>, %arg10: memref<1x64xf32, #tpu.memory_space<vmem>>, %arg11: memref<64x64xbf16, #tpu.memory_space<vmem>>, %arg12: memref<1x64xf32, #tpu.memory_space<vmem>>, %arg13: memref<8x64xf32, #tpu.memory_space<vmem>>, %arg14: memref<64x32xf32, #tpu.memory_space<vmem>>) attributes {dimension_semantics = [], scalar_prefetch = 0 : i64, scratch_operands = 1 : i64, tpu.core_type = #tpu.core_type<tc>} {
    %c0 = arith.constant 0 : index
    %c0_0 = arith.constant 0 : index
    %0 = vector.load %arg0[%c0, %c0_0] : memref<64x16xbf16, #tpu.memory_space<vmem>>, vector<64x16xbf16>
    %c0_1 = arith.constant 0 : index
    %c0_2 = arith.constant 0 : index
    %1 = vector.load %arg2[%c0_1, %c0_2] : memref<16x32xbf16, #tpu.memory_space<vmem>>, vector<16x32xbf16>
    %cst = arith.constant dense<0.000000e+00> : vector<64x32xf32>
    %2 = tpu.matmul %0, %1, %cst {dimension_numbers = #tpu.dot_dimension_numbers<[1], [0], [0], [1], [0, 0, 1, 1], [], []>} : vector<64x16xbf16>, vector<16x32xbf16>, vector<64x32xf32> -> vector<64x32xf32>
    %c0_3 = arith.constant 0 : index
    %c0_4 = arith.constant 0 : index
    %3 = vector.load %arg3[%c0_3, %c0_4] : memref<1x32xf32, #tpu.memory_space<vmem>>, vector<1x32xf32>
    %4 = vector.broadcast %3 : vector<1x32xf32> to vector<64x32xf32>
    %5 = arith.addf %2, %4 : vector<64x32xf32>
    %cst_5 = arith.constant 0.000000e+00 : f32
    %6 = vector.broadcast %cst_5 : f32 to vector<64x32xf32>
    %7 = arith.maximumf %5, %6 : vector<64x32xf32>
    %c0_6 = arith.constant 0 : index
    %c0_7 = arith.constant 0 : index
    %8 = vector.load %arg4[%c0_6, %c0_7] : memref<32x32xbf16, #tpu.memory_space<vmem>>, vector<32x32xbf16>
    %9 = arith.truncf %7 : vector<64x32xf32> to vector<64x32xbf16>
    %cst_8 = arith.constant dense<0.000000e+00> : vector<64x32xf32>
    %10 = tpu.matmul %9, %8, %cst_8 {dimension_numbers = #tpu.dot_dimension_numbers<[1], [0], [0], [1], [0, 0, 1, 1], [], []>} : vector<64x32xbf16>, vector<32x32xbf16>, vector<64x32xf32> -> vector<64x32xf32>
    %c0_9 = arith.constant 0 : index
    %c0_10 = arith.constant 0 : index
    %11 = vector.load %arg5[%c0_9, %c0_10] : memref<1x32xf32, #tpu.memory_space<vmem>>, vector<1x32xf32>
    %12 = vector.broadcast %11 : vector<1x32xf32> to vector<64x32xf32>
    %13 = arith.addf %10, %12 : vector<64x32xf32>
    %cst_11 = arith.constant 0.000000e+00 : f32
    %14 = vector.broadcast %cst_11 : f32 to vector<64x32xf32>
    %15 = arith.maximumf %13, %14 : vector<64x32xf32>
    %c0_12 = arith.constant 0 : index
    %c0_13 = arith.constant 0 : index
    %16 = vector.load %arg1[%c0_12, %c0_13] : memref<8x1xi32, #tpu.memory_space<vmem>>, vector<8x1xi32>
    %c1_i32 = arith.constant 1 : i32
    %17 = vector.broadcast %c1_i32 : i32 to vector<8x1xi32>
    %18 = arith.subi %16, %17 : vector<8x1xi32>
    %cst_14 = arith.constant 0.000000e+00 : f32
    %19 = vector.broadcast %cst_14 : f32 to vector<8x32xf32>
    %c0_15 = arith.constant 0 : index
    %c0_16 = arith.constant 0 : index
    %c0_17 = arith.constant 0 : index
    %20 = vector.load %arg6[%c0_15, %c0_16, %c0_17] : memref<2x32x32xbf16, #tpu.memory_space<vmem>>, vector<1x32x32xbf16>
    %21 = vector.shape_cast %20 : vector<1x32x32xbf16> to vector<32x32xbf16>
    %c0_18 = arith.constant 0 : index
    %c0_19 = arith.constant 0 : index
    %c0_20 = arith.constant 0 : index
    %22 = vector.load %arg7[%c0_18, %c0_19, %c0_20] : memref<2x32x32xbf16, #tpu.memory_space<vmem>>, vector<1x32x32xbf16>
    %23 = vector.shape_cast %22 : vector<1x32x32xbf16> to vector<32x32xbf16>
    %c0_21 = arith.constant 0 : index
    %c0_22 = arith.constant 0 : index
    %c0_23 = arith.constant 0 : index
    %24 = vector.load %arg8[%c0_21, %c0_22, %c0_23] : memref<2x1x32xf32, #tpu.memory_space<vmem>>, vector<1x1x32xf32>
    %25 = vector.shape_cast %24 : vector<1x1x32xf32> to vector<1x32xf32>
    %26 = arith.truncf %15 : vector<64x32xf32> to vector<64x32xbf16>
    %cst_24 = arith.constant dense<0.000000e+00> : vector<64x32xf32>
    %27 = tpu.matmul %26, %21, %cst_24 {dimension_numbers = #tpu.dot_dimension_numbers<[1], [0], [0], [1], [0, 0, 1, 1], [], []>} : vector<64x32xbf16>, vector<32x32xbf16>, vector<64x32xf32> -> vector<64x32xf32>
    %28 = vector.broadcast %25 : vector<1x32xf32> to vector<64x32xf32>
    %29 = arith.addf %27, %28 : vector<64x32xf32>
    %cst_25 = arith.constant 0.000000e+00 : f32
    %30 = vector.broadcast %cst_25 : f32 to vector<8x32xf32>
    %31 = vector.extract_strided_slice %29 {offsets = [0, 0], sizes = [8, 32], strides = [1, 1]} : vector<64x32xf32> to vector<8x32xf32>
    %32 = arith.truncf %30 : vector<8x32xf32> to vector<8x32xbf16>
    %cst_26 = arith.constant dense<0.000000e+00> : vector<8x32xf32>
    %33 = tpu.matmul %32, %23, %cst_26 {dimension_numbers = #tpu.dot_dimension_numbers<[1], [0], [0], [1], [0, 0, 1, 1], [], []>} : vector<8x32xbf16>, vector<32x32xbf16>, vector<8x32xf32> -> vector<8x32xf32>
    %34 = arith.addf %31, %33 : vector<8x32xf32>
    %35 = math.tanh %34 : vector<8x32xf32>
    %c0_27 = arith.constant 0 : index
    %c0_28 = arith.constant 0 : index
    %36 = vector.load %arg14[%c0_27, %c0_28] : memref<64x32xf32, #tpu.memory_space<vmem>>, vector<8x32xf32>
    tpu.vector_store %arg14[%c0_27, %c0_28], %35 {strides = array<i32>} : memref<64x32xf32, #tpu.memory_space<vmem>>, vector<8x32xf32>,
    %37 = vector.extract_strided_slice %29 {offsets = [8, 0], sizes = [8, 32], strides = [1, 1]} : vector<64x32xf32> to vector<8x32xf32>
    %38 = arith.truncf %35 : vector<8x32xf32> to vector<8x32xbf16>
    %cst_29 = arith.constant dense<0.000000e+00> : vector<8x32xf32>
    %39 = tpu.matmul %38, %23, %cst_29 {dimension_numbers = #tpu.dot_dimension_numbers<[1], [0], [0], [1], [0, 0, 1, 1], [], []>} : vector<8x32xbf16>, vector<32x32xbf16>, vector<8x32xf32> -> vector<8x32xf32>
    %40 = arith.addf %37, %39 : vector<8x32xf32>
    %41 = math.tanh %40 : vector<8x32xf32>
    %c8 = arith.constant 8 : index
    %c0_30 = arith.constant 0 : index
    %42 = vector.load %arg14[%c8, %c0_30] : memref<64x32xf32, #tpu.memory_space<vmem>>, vector<8x32xf32>
    tpu.vector_store %arg14[%c8, %c0_30], %41 {strides = array<i32>} : memref<64x32xf32, #tpu.memory_space<vmem>>, vector<8x32xf32>,
    %43 = vector.extract_strided_slice %29 {offsets = [16, 0], sizes = [8, 32], strides = [1, 1]} : vector<64x32xf32> to vector<8x32xf32>
    %44 = arith.truncf %41 : vector<8x32xf32> to vector<8x32xbf16>
    %cst_31 = arith.constant dense<0.000000e+00> : vector<8x32xf32>
    %45 = tpu.matmul %44, %23, %cst_31 {dimension_numbers = #tpu.dot_dimension_numbers<[1], [0], [0], [1], [0, 0, 1, 1], [], []>} : vector<8x32xbf16>, vector<32x32xbf16>, vector<8x32xf32> -> vector<8x32xf32>
    %46 = arith.addf %43, %45 : vector<8x32xf32>
    %47 = math.tanh %46 : vector<8x32xf32>
    %c16 = arith.constant 16 : index
    %c0_32 = arith.constant 0 : index
    %48 = vector.load %arg14[%c16, %c0_32] : memref<64x32xf32, #tpu.memory_space<vmem>>, vector<8x32xf32>
    tpu.vector_store %arg14[%c16, %c0_32], %47 {strides = array<i32>} : memref<64x32xf32, #tpu.memory_space<vmem>>, vector<8x32xf32>,
    %49 = vector.extract_strided_slice %29 {offsets = [24, 0], sizes = [8, 32], strides = [1, 1]} : vector<64x32xf32> to vector<8x32xf32>
    %50 = arith.truncf %47 : vector<8x32xf32> to vector<8x32xbf16>
    %cst_33 = arith.constant dense<0.000000e+00> : vector<8x32xf32>
    %51 = tpu.matmul %50, %23, %cst_33 {dimension_numbers = #tpu.dot_dimension_numbers<[1], [0], [0], [1], [0, 0, 1, 1], [], []>} : vector<8x32xbf16>, vector<32x32xbf16>, vector<8x32xf32> -> vector<8x32xf32>
    %52 = arith.addf %49, %51 : vector<8x32xf32>
    %53 = math.tanh %52 : vector<8x32xf32>
    %c24 = arith.constant 24 : index
    %c0_34 = arith.constant 0 : index
    %54 = vector.load %arg14[%c24, %c0_34] : memref<64x32xf32, #tpu.memory_space<vmem>>, vector<8x32xf32>
    tpu.vector_store %arg14[%c24, %c0_34], %53 {strides = array<i32>} : memref<64x32xf32, #tpu.memory_space<vmem>>, vector<8x32xf32>,
    %55 = vector.extract_strided_slice %29 {offsets = [32, 0], sizes = [8, 32], strides = [1, 1]} : vector<64x32xf32> to vector<8x32xf32>
    %56 = arith.truncf %53 : vector<8x32xf32> to vector<8x32xbf16>
    %cst_35 = arith.constant dense<0.000000e+00> : vector<8x32xf32>
    %57 = tpu.matmul %56, %23, %cst_35 {dimension_numbers = #tpu.dot_dimension_numbers<[1], [0], [0], [1], [0, 0, 1, 1], [], []>} : vector<8x32xbf16>, vector<32x32xbf16>, vector<8x32xf32> -> vector<8x32xf32>
    %58 = arith.addf %55, %57 : vector<8x32xf32>
    %59 = math.tanh %58 : vector<8x32xf32>
    %c32 = arith.constant 32 : index
    %c0_36 = arith.constant 0 : index
    %60 = vector.load %arg14[%c32, %c0_36] : memref<64x32xf32, #tpu.memory_space<vmem>>, vector<8x32xf32>
    tpu.vector_store %arg14[%c32, %c0_36], %59 {strides = array<i32>} : memref<64x32xf32, #tpu.memory_space<vmem>>, vector<8x32xf32>,
    %61 = vector.extract_strided_slice %29 {offsets = [40, 0], sizes = [8, 32], strides = [1, 1]} : vector<64x32xf32> to vector<8x32xf32>
    %62 = arith.truncf %59 : vector<8x32xf32> to vector<8x32xbf16>
    %cst_37 = arith.constant dense<0.000000e+00> : vector<8x32xf32>
    %63 = tpu.matmul %62, %23, %cst_37 {dimension_numbers = #tpu.dot_dimension_numbers<[1], [0], [0], [1], [0, 0, 1, 1], [], []>} : vector<8x32xbf16>, vector<32x32xbf16>, vector<8x32xf32> -> vector<8x32xf32>
    %64 = arith.addf %61, %63 : vector<8x32xf32>
    %65 = math.tanh %64 : vector<8x32xf32>
    %c40 = arith.constant 40 : index
    %c0_38 = arith.constant 0 : index
    %66 = vector.load %arg14[%c40, %c0_38] : memref<64x32xf32, #tpu.memory_space<vmem>>, vector<8x32xf32>
    tpu.vector_store %arg14[%c40, %c0_38], %65 {strides = array<i32>} : memref<64x32xf32, #tpu.memory_space<vmem>>, vector<8x32xf32>,
    %67 = vector.extract_strided_slice %29 {offsets = [48, 0], sizes = [8, 32], strides = [1, 1]} : vector<64x32xf32> to vector<8x32xf32>
    %68 = arith.truncf %65 : vector<8x32xf32> to vector<8x32xbf16>
    %cst_39 = arith.constant dense<0.000000e+00> : vector<8x32xf32>
    %69 = tpu.matmul %68, %23, %cst_39 {dimension_numbers = #tpu.dot_dimension_numbers<[1], [0], [0], [1], [0, 0, 1, 1], [], []>} : vector<8x32xbf16>, vector<32x32xbf16>, vector<8x32xf32> -> vector<8x32xf32>
    %70 = arith.addf %67, %69 : vector<8x32xf32>
    %71 = math.tanh %70 : vector<8x32xf32>
    %c48 = arith.constant 48 : index
    %c0_40 = arith.constant 0 : index
    %72 = vector.load %arg14[%c48, %c0_40] : memref<64x32xf32, #tpu.memory_space<vmem>>, vector<8x32xf32>
    tpu.vector_store %arg14[%c48, %c0_40], %71 {strides = array<i32>} : memref<64x32xf32, #tpu.memory_space<vmem>>, vector<8x32xf32>,
    %73 = vector.extract_strided_slice %29 {offsets = [56, 0], sizes = [8, 32], strides = [1, 1]} : vector<64x32xf32> to vector<8x32xf32>
    %74 = arith.truncf %71 : vector<8x32xf32> to vector<8x32xbf16>
    %cst_41 = arith.constant dense<0.000000e+00> : vector<8x32xf32>
    %75 = tpu.matmul %74, %23, %cst_41 {dimension_numbers = #tpu.dot_dimension_numbers<[1], [0], [0], [1], [0, 0, 1, 1], [], []>} : vector<8x32xbf16>, vector<32x32xbf16>, vector<8x32xf32> -> vector<8x32xf32>
    %76 = arith.addf %73, %75 : vector<8x32xf32>
    %77 = math.tanh %76 : vector<8x32xf32>
    %c56 = arith.constant 56 : index
    %c0_42 = arith.constant 0 : index
    %78 = vector.load %arg14[%c56, %c0_42] : memref<64x32xf32, #tpu.memory_space<vmem>>, vector<8x32xf32>
    tpu.vector_store %arg14[%c56, %c0_42], %77 {strides = array<i32>} : memref<64x32xf32, #tpu.memory_space<vmem>>, vector<8x32xf32>,
    %c0_43 = arith.constant 0 : index
    %c0_44 = arith.constant 0 : index
    %79 = vector.load %arg14[%c0_43, %c0_44] : memref<64x32xf32, #tpu.memory_space<vmem>>, vector<64x32xf32>
    %c1 = arith.constant 1 : index
    %c0_45 = arith.constant 0 : index
    %c0_46 = arith.constant 0 : index
    %80 = vector.load %arg6[%c1, %c0_45, %c0_46] : memref<2x32x32xbf16, #tpu.memory_space<vmem>>, vector<1x32x32xbf16>
    %81 = vector.shape_cast %80 : vector<1x32x32xbf16> to vector<32x32xbf16>
    %c1_47 = arith.constant 1 : index
    %c0_48 = arith.constant 0 : index
    %c0_49 = arith.constant 0 : index
    %82 = vector.load %arg7[%c1_47, %c0_48, %c0_49] : memref<2x32x32xbf16, #tpu.memory_space<vmem>>, vector<1x32x32xbf16>
    %83 = vector.shape_cast %82 : vector<1x32x32xbf16> to vector<32x32xbf16>
    %c1_50 = arith.constant 1 : index
    %c0_51 = arith.constant 0 : index
    %c0_52 = arith.constant 0 : index
    %84 = vector.load %arg8[%c1_50, %c0_51, %c0_52] : memref<2x1x32xf32, #tpu.memory_space<vmem>>, vector<1x1x32xf32>
    %85 = vector.shape_cast %84 : vector<1x1x32xf32> to vector<1x32xf32>
    %86 = arith.truncf %79 : vector<64x32xf32> to vector<64x32xbf16>
    %cst_53 = arith.constant dense<0.000000e+00> : vector<64x32xf32>
    %87 = tpu.matmul %86, %81, %cst_53 {dimension_numbers = #tpu.dot_dimension_numbers<[1], [0], [0], [1], [0, 0, 1, 1], [], []>} : vector<64x32xbf16>, vector<32x32xbf16>, vector<64x32xf32> -> vector<64x32xf32>
    %88 = vector.broadcast %85 : vector<1x32xf32> to vector<64x32xf32>
    %89 = arith.addf %87, %88 : vector<64x32xf32>
    %cst_54 = arith.constant 0.000000e+00 : f32
    %90 = vector.broadcast %cst_54 : f32 to vector<8x32xf32>
    %91 = vector.extract_strided_slice %89 {offsets = [0, 0], sizes = [8, 32], strides = [1, 1]} : vector<64x32xf32> to vector<8x32xf32>
    %92 = arith.truncf %90 : vector<8x32xf32> to vector<8x32xbf16>
    %cst_55 = arith.constant dense<0.000000e+00> : vector<8x32xf32>
    %93 = tpu.matmul %92, %83, %cst_55 {dimension_numbers = #tpu.dot_dimension_numbers<[1], [0], [0], [1], [0, 0, 1, 1], [], []>} : vector<8x32xbf16>, vector<32x32xbf16>, vector<8x32xf32> -> vector<8x32xf32>
    %94 = arith.addf %91, %93 : vector<8x32xf32>
    %95 = math.tanh %94 : vector<8x32xf32>
    %c0_i32 = arith.constant 0 : i32
    %96 = vector.broadcast %c0_i32 : i32 to vector<8x1xi32>
    %97 = arith.cmpi eq, %18, %96 : vector<8x1xi32>
    %98 = vector.shape_cast %97 : vector<8x1xi1> to vector<8x1xi1>
    %99 = vector.broadcast %98 : vector<8x1xi1> to vector<8x32xi1>
    %100 = arith.select %99, %95, %19 : vector<8x32xi1>, vector<8x32xf32>
    %101 = vector.extract_strided_slice %89 {offsets = [8, 0], sizes = [8, 32], strides = [1, 1]} : vector<64x32xf32> to vector<8x32xf32>
    %102 = arith.truncf %95 : vector<8x32xf32> to vector<8x32xbf16>
    %cst_56 = arith.constant dense<0.000000e+00> : vector<8x32xf32>
    %103 = tpu.matmul %102, %83, %cst_56 {dimension_numbers = #tpu.dot_dimension_numbers<[1], [0], [0], [1], [0, 0, 1, 1], [], []>} : vector<8x32xbf16>, vector<32x32xbf16>, vector<8x32xf32> -> vector<8x32xf32>
    %104 = arith.addf %101, %103 : vector<8x32xf32>
    %105 = math.tanh %104 : vector<8x32xf32>
    %c1_i32_57 = arith.constant 1 : i32
    %106 = vector.broadcast %c1_i32_57 : i32 to vector<8x1xi32>
    %107 = arith.cmpi eq, %18, %106 : vector<8x1xi32>
    %108 = vector.shape_cast %107 : vector<8x1xi1> to vector<8x1xi1>
    %109 = vector.broadcast %108 : vector<8x1xi1> to vector<8x32xi1>
    %110 = arith.select %109, %105, %100 : vector<8x32xi1>, vector<8x32xf32>
    %111 = vector.extract_strided_slice %89 {offsets = [16, 0], sizes = [8, 32], strides = [1, 1]} : vector<64x32xf32> to vector<8x32xf32>
    %112 = arith.truncf %105 : vector<8x32xf32> to vector<8x32xbf16>
    %cst_58 = arith.constant dense<0.000000e+00> : vector<8x32xf32>
    %113 = tpu.matmul %112, %83, %cst_58 {dimension_numbers = #tpu.dot_dimension_numbers<[1], [0], [0], [1], [0, 0, 1, 1], [], []>} : vector<8x32xbf16>, vector<32x32xbf16>, vector<8x32xf32> -> vector<8x32xf32>
    %114 = arith.addf %111, %113 : vector<8x32xf32>
    %115 = math.tanh %114 : vector<8x32xf32>
    %c2_i32 = arith.constant 2 : i32
    %116 = vector.broadcast %c2_i32 : i32 to vector<8x1xi32>
    %117 = arith.cmpi eq, %18, %116 : vector<8x1xi32>
    %118 = vector.shape_cast %117 : vector<8x1xi1> to vector<8x1xi1>
    %119 = vector.broadcast %118 : vector<8x1xi1> to vector<8x32xi1>
    %120 = arith.select %119, %115, %110 : vector<8x32xi1>, vector<8x32xf32>
    %121 = vector.extract_strided_slice %89 {offsets = [24, 0], sizes = [8, 32], strides = [1, 1]} : vector<64x32xf32> to vector<8x32xf32>
    %122 = arith.truncf %115 : vector<8x32xf32> to vector<8x32xbf16>
    %cst_59 = arith.constant dense<0.000000e+00> : vector<8x32xf32>
    %123 = tpu.matmul %122, %83, %cst_59 {dimension_numbers = #tpu.dot_dimension_numbers<[1], [0], [0], [1], [0, 0, 1, 1], [], []>} : vector<8x32xbf16>, vector<32x32xbf16>, vector<8x32xf32> -> vector<8x32xf32>
    %124 = arith.addf %121, %123 : vector<8x32xf32>
    %125 = math.tanh %124 : vector<8x32xf32>
    %c3_i32 = arith.constant 3 : i32
    %126 = vector.broadcast %c3_i32 : i32 to vector<8x1xi32>
    %127 = arith.cmpi eq, %18, %126 : vector<8x1xi32>
    %128 = vector.shape_cast %127 : vector<8x1xi1> to vector<8x1xi1>
    %129 = vector.broadcast %128 : vector<8x1xi1> to vector<8x32xi1>
    %130 = arith.select %129, %125, %120 : vector<8x32xi1>, vector<8x32xf32>
    %131 = vector.extract_strided_slice %89 {offsets = [32, 0], sizes = [8, 32], strides = [1, 1]} : vector<64x32xf32> to vector<8x32xf32>
    %132 = arith.truncf %125 : vector<8x32xf32> to vector<8x32xbf16>
    %cst_60 = arith.constant dense<0.000000e+00> : vector<8x32xf32>
    %133 = tpu.matmul %132, %83, %cst_60 {dimension_numbers = #tpu.dot_dimension_numbers<[1], [0], [0], [1], [0, 0, 1, 1], [], []>} : vector<8x32xbf16>, vector<32x32xbf16>, vector<8x32xf32> -> vector<8x32xf32>
    %134 = arith.addf %131, %133 : vector<8x32xf32>
    %135 = math.tanh %134 : vector<8x32xf32>
    %c4_i32 = arith.constant 4 : i32
    %136 = vector.broadcast %c4_i32 : i32 to vector<8x1xi32>
    %137 = arith.cmpi eq, %18, %136 : vector<8x1xi32>
    %138 = vector.shape_cast %137 : vector<8x1xi1> to vector<8x1xi1>
    %139 = vector.broadcast %138 : vector<8x1xi1> to vector<8x32xi1>
    %140 = arith.select %139, %135, %130 : vector<8x32xi1>, vector<8x32xf32>
    %141 = vector.extract_strided_slice %89 {offsets = [40, 0], sizes = [8, 32], strides = [1, 1]} : vector<64x32xf32> to vector<8x32xf32>
    %142 = arith.truncf %135 : vector<8x32xf32> to vector<8x32xbf16>
    %cst_61 = arith.constant dense<0.000000e+00> : vector<8x32xf32>
    %143 = tpu.matmul %142, %83, %cst_61 {dimension_numbers = #tpu.dot_dimension_numbers<[1], [0], [0], [1], [0, 0, 1, 1], [], []>} : vector<8x32xbf16>, vector<32x32xbf16>, vector<8x32xf32> -> vector<8x32xf32>
    %144 = arith.addf %141, %143 : vector<8x32xf32>
    %145 = math.tanh %144 : vector<8x32xf32>
    %c5_i32 = arith.constant 5 : i32
    %146 = vector.broadcast %c5_i32 : i32 to vector<8x1xi32>
    %147 = arith.cmpi eq, %18, %146 : vector<8x1xi32>
    %148 = vector.shape_cast %147 : vector<8x1xi1> to vector<8x1xi1>
    %149 = vector.broadcast %148 : vector<8x1xi1> to vector<8x32xi1>
    %150 = arith.select %149, %145, %140 : vector<8x32xi1>, vector<8x32xf32>
    %151 = vector.extract_strided_slice %89 {offsets = [48, 0], sizes = [8, 32], strides = [1, 1]} : vector<64x32xf32> to vector<8x32xf32>
    %152 = arith.truncf %145 : vector<8x32xf32> to vector<8x32xbf16>
    %cst_62 = arith.constant dense<0.000000e+00> : vector<8x32xf32>
    %153 = tpu.matmul %152, %83, %cst_62 {dimension_numbers = #tpu.dot_dimension_numbers<[1], [0], [0], [1], [0, 0, 1, 1], [], []>} : vector<8x32xbf16>, vector<32x32xbf16>, vector<8x32xf32> -> vector<8x32xf32>
    %154 = arith.addf %151, %153 : vector<8x32xf32>
    %155 = math.tanh %154 : vector<8x32xf32>
    %c6_i32 = arith.constant 6 : i32
    %156 = vector.broadcast %c6_i32 : i32 to vector<8x1xi32>
    %157 = arith.cmpi eq, %18, %156 : vector<8x1xi32>
    %158 = vector.shape_cast %157 : vector<8x1xi1> to vector<8x1xi1>
    %159 = vector.broadcast %158 : vector<8x1xi1> to vector<8x32xi1>
    %160 = arith.select %159, %155, %150 : vector<8x32xi1>, vector<8x32xf32>
    %161 = vector.extract_strided_slice %89 {offsets = [56, 0], sizes = [8, 32], strides = [1, 1]} : vector<64x32xf32> to vector<8x32xf32>
    %162 = arith.truncf %155 : vector<8x32xf32> to vector<8x32xbf16>
    %cst_63 = arith.constant dense<0.000000e+00> : vector<8x32xf32>
    %163 = tpu.matmul %162, %83, %cst_63 {dimension_numbers = #tpu.dot_dimension_numbers<[1], [0], [0], [1], [0, 0, 1, 1], [], []>} : vector<8x32xbf16>, vector<32x32xbf16>, vector<8x32xf32> -> vector<8x32xf32>
    %164 = arith.addf %161, %163 : vector<8x32xf32>
    %165 = math.tanh %164 : vector<8x32xf32>
    %c7_i32 = arith.constant 7 : i32
    %166 = vector.broadcast %c7_i32 : i32 to vector<8x1xi32>
    %167 = arith.cmpi eq, %18, %166 : vector<8x1xi32>
    %168 = vector.shape_cast %167 : vector<8x1xi1> to vector<8x1xi1>
    %169 = vector.broadcast %168 : vector<8x1xi1> to vector<8x32xi1>
    %170 = arith.select %169, %165, %160 : vector<8x32xi1>, vector<8x32xf32>
    %c0_64 = arith.constant 0 : index
    %c0_65 = arith.constant 0 : index
    %171 = vector.load %arg9[%c0_64, %c0_65] : memref<32x64xbf16, #tpu.memory_space<vmem>>, vector<32x64xbf16>
    %172 = arith.truncf %170 : vector<8x32xf32> to vector<8x32xbf16>
    %cst_66 = arith.constant dense<0.000000e+00> : vector<8x64xf32>
    %173 = tpu.matmul %172, %171, %cst_66 {dimension_numbers = #tpu.dot_dimension_numbers<[1], [0], [0], [1], [0, 0, 1, 1], [], []>} : vector<8x32xbf16>, vector<32x64xbf16>, vector<8x64xf32> -> vector<8x64xf32>
    %c0_67 = arith.constant 0 : index
    %c0_68 = arith.constant 0 : index
    %174 = vector.load %arg10[%c0_67, %c0_68] : memref<1x64xf32, #tpu.memory_space<vmem>>, vector<1x64xf32>
    %175 = vector.broadcast %174 : vector<1x64xf32> to vector<8x64xf32>
    %176 = arith.addf %173, %175 : vector<8x64xf32>
    %cst_69 = arith.constant 0.000000e+00 : f32
    %177 = vector.broadcast %cst_69 : f32 to vector<8x64xf32>
    %178 = arith.maximumf %176, %177 : vector<8x64xf32>
    %c0_70 = arith.constant 0 : index
    %c0_71 = arith.constant 0 : index
    %179 = vector.load %arg11[%c0_70, %c0_71] : memref<64x64xbf16, #tpu.memory_space<vmem>>, vector<64x64xbf16>
    %180 = arith.truncf %178 : vector<8x64xf32> to vector<8x64xbf16>
    %cst_72 = arith.constant dense<0.000000e+00> : vector<8x64xf32>
    %181 = tpu.matmul %180, %179, %cst_72 {dimension_numbers = #tpu.dot_dimension_numbers<[1], [0], [0], [1], [0, 0, 1, 1], [], []>} : vector<8x64xbf16>, vector<64x64xbf16>, vector<8x64xf32> -> vector<8x64xf32>
    %c0_73 = arith.constant 0 : index
    %c0_74 = arith.constant 0 : index
    %182 = vector.load %arg12[%c0_73, %c0_74] : memref<1x64xf32, #tpu.memory_space<vmem>>, vector<1x64xf32>
    %183 = vector.broadcast %182 : vector<1x64xf32> to vector<8x64xf32>
    %184 = arith.addf %181, %183 : vector<8x64xf32>
    %cst_75 = arith.constant 0.000000e+00 : f32
    %185 = vector.broadcast %cst_75 : f32 to vector<8x64xf32>
    %186 = arith.maximumf %184, %185 : vector<8x64xf32>
    %c0_76 = arith.constant 0 : index
    %c0_77 = arith.constant 0 : index
    %187 = vector.load %arg13[%c0_76, %c0_77] : memref<8x64xf32, #tpu.memory_space<vmem>>, vector<8x64xf32>
    tpu.vector_store %arg13[%c0_76, %c0_77], %186 {strides = array<i32>} : memref<8x64xf32, #tpu.memory_space<vmem>>, vector<8x64xf32>,
    return
  }
}

module attributes {stable_mosaic.version = 11 : i64} {
  func.func @decoder_kernel(%arg0: memref<64x16xbf16, #tpu.memory_space<vmem>>, %arg1: memref<2x8x32xf32, #tpu.memory_space<vmem>>, %arg2: memref<16x32xbf16, #tpu.memory_space<vmem>>, %arg3: memref<1x32xf32, #tpu.memory_space<vmem>>, %arg4: memref<32x32xbf16, #tpu.memory_space<vmem>>, %arg5: memref<1x32xf32, #tpu.memory_space<vmem>>, %arg6: memref<2x32x32xbf16, #tpu.memory_space<vmem>>, %arg7: memref<2x32x32xbf16, #tpu.memory_space<vmem>>, %arg8: memref<2x1x32xf32, #tpu.memory_space<vmem>>, %arg9: memref<32x32xbf16, #tpu.memory_space<vmem>>, %arg10: memref<1x32xf32, #tpu.memory_space<vmem>>, %arg11: memref<32x16xbf16, #tpu.memory_space<vmem>>, %arg12: memref<1x16xf32, #tpu.memory_space<vmem>>, %arg13: memref<16x32xbf16, #tpu.memory_space<vmem>>, %arg14: memref<8x8x32xf32, #tpu.memory_space<vmem>>, %arg15: memref<64x32xf32, #tpu.memory_space<vmem>>) attributes {dimension_semantics = [], scalar_prefetch = 0 : i64, scratch_operands = 1 : i64, tpu.core_type = #tpu.core_type<tc>} {
    %c0 = arith.constant 0 : index
    %c0_0 = arith.constant 0 : index
    %0 = vector.load %arg0[%c0, %c0_0] : memref<64x16xbf16, #tpu.memory_space<vmem>>, vector<64x16xbf16>
    %c0_1 = arith.constant 0 : index
    %c0_2 = arith.constant 0 : index
    %1 = vector.load %arg2[%c0_1, %c0_2] : memref<16x32xbf16, #tpu.memory_space<vmem>>, vector<16x32xbf16>
    %cst = arith.constant dense<0.000000e+00> : vector<64x32xf32>
    %2 = tpu.matmul %0, %1, %cst {dimension_numbers = #tpu.dot_dimension_numbers<[1], [0], [0], [1], [0, 0, 1, 1], [], []>} : vector<64x16xbf16>, vector<16x32xbf16>, vector<64x32xf32> -> vector<64x32xf32>
    %c0_3 = arith.constant 0 : index
    %c0_4 = arith.constant 0 : index
    %3 = vector.load %arg3[%c0_3, %c0_4] : memref<1x32xf32, #tpu.memory_space<vmem>>, vector<1x32xf32>
    %4 = vector.broadcast %3 : vector<1x32xf32> to vector<64x32xf32>
    %5 = arith.addf %2, %4 : vector<64x32xf32>
    %cst_5 = arith.constant 0.000000e+00 : f32
    %6 = vector.broadcast %cst_5 : f32 to vector<64x32xf32>
    %7 = arith.maximumf %5, %6 : vector<64x32xf32>
    %c0_6 = arith.constant 0 : index
    %c0_7 = arith.constant 0 : index
    %8 = vector.load %arg4[%c0_6, %c0_7] : memref<32x32xbf16, #tpu.memory_space<vmem>>, vector<32x32xbf16>
    %9 = arith.truncf %7 : vector<64x32xf32> to vector<64x32xbf16>
    %cst_8 = arith.constant dense<0.000000e+00> : vector<64x32xf32>
    %10 = tpu.matmul %9, %8, %cst_8 {dimension_numbers = #tpu.dot_dimension_numbers<[1], [0], [0], [1], [0, 0, 1, 1], [], []>} : vector<64x32xbf16>, vector<32x32xbf16>, vector<64x32xf32> -> vector<64x32xf32>
    %c0_9 = arith.constant 0 : index
    %c0_10 = arith.constant 0 : index
    %11 = vector.load %arg5[%c0_9, %c0_10] : memref<1x32xf32, #tpu.memory_space<vmem>>, vector<1x32xf32>
    %12 = vector.broadcast %11 : vector<1x32xf32> to vector<64x32xf32>
    %13 = arith.addf %10, %12 : vector<64x32xf32>
    %cst_11 = arith.constant 0.000000e+00 : f32
    %14 = vector.broadcast %cst_11 : f32 to vector<64x32xf32>
    %15 = arith.maximumf %13, %14 : vector<64x32xf32>
    %c0_12 = arith.constant 0 : index
    %c0_13 = arith.constant 0 : index
    %c0_14 = arith.constant 0 : index
    %16 = vector.load %arg6[%c0_12, %c0_13, %c0_14] : memref<2x32x32xbf16, #tpu.memory_space<vmem>>, vector<1x32x32xbf16>
    %17 = vector.shape_cast %16 : vector<1x32x32xbf16> to vector<32x32xbf16>
    %c0_15 = arith.constant 0 : index
    %c0_16 = arith.constant 0 : index
    %c0_17 = arith.constant 0 : index
    %18 = vector.load %arg7[%c0_15, %c0_16, %c0_17] : memref<2x32x32xbf16, #tpu.memory_space<vmem>>, vector<1x32x32xbf16>
    %19 = vector.shape_cast %18 : vector<1x32x32xbf16> to vector<32x32xbf16>
    %c0_18 = arith.constant 0 : index
    %c0_19 = arith.constant 0 : index
    %c0_20 = arith.constant 0 : index
    %20 = vector.load %arg8[%c0_18, %c0_19, %c0_20] : memref<2x1x32xf32, #tpu.memory_space<vmem>>, vector<1x1x32xf32>
    %21 = vector.shape_cast %20 : vector<1x1x32xf32> to vector<1x32xf32>
    %22 = arith.truncf %15 : vector<64x32xf32> to vector<64x32xbf16>
    %cst_21 = arith.constant dense<0.000000e+00> : vector<64x32xf32>
    %23 = tpu.matmul %22, %17, %cst_21 {dimension_numbers = #tpu.dot_dimension_numbers<[1], [0], [0], [1], [0, 0, 1, 1], [], []>} : vector<64x32xbf16>, vector<32x32xbf16>, vector<64x32xf32> -> vector<64x32xf32>
    %24 = vector.broadcast %21 : vector<1x32xf32> to vector<64x32xf32>
    %25 = arith.addf %23, %24 : vector<64x32xf32>
    %c0_22 = arith.constant 0 : index
    %c0_23 = arith.constant 0 : index
    %c0_24 = arith.constant 0 : index
    %26 = vector.load %arg1[%c0_22, %c0_23, %c0_24] : memref<2x8x32xf32, #tpu.memory_space<vmem>>, vector<1x8x32xf32>
    %27 = vector.shape_cast %26 : vector<1x8x32xf32> to vector<8x32xf32>
    %28 = vector.extract_strided_slice %25 {offsets = [0, 0], sizes = [8, 32], strides = [1, 1]} : vector<64x32xf32> to vector<8x32xf32>
    %29 = arith.truncf %27 : vector<8x32xf32> to vector<8x32xbf16>
    %cst_25 = arith.constant dense<0.000000e+00> : vector<8x32xf32>
    %30 = tpu.matmul %29, %19, %cst_25 {dimension_numbers = #tpu.dot_dimension_numbers<[1], [0], [0], [1], [0, 0, 1, 1], [], []>} : vector<8x32xbf16>, vector<32x32xbf16>, vector<8x32xf32> -> vector<8x32xf32>
    %31 = arith.addf %28, %30 : vector<8x32xf32>
    %32 = math.tanh %31 : vector<8x32xf32>
    %c0_26 = arith.constant 0 : index
    %c0_27 = arith.constant 0 : index
    %33 = vector.load %arg15[%c0_26, %c0_27] : memref<64x32xf32, #tpu.memory_space<vmem>>, vector<8x32xf32>
    tpu.vector_store %arg15[%c0_26, %c0_27], %32 {strides = array<i32>} : memref<64x32xf32, #tpu.memory_space<vmem>>, vector<8x32xf32>,
    %34 = vector.extract_strided_slice %25 {offsets = [8, 0], sizes = [8, 32], strides = [1, 1]} : vector<64x32xf32> to vector<8x32xf32>
    %35 = arith.truncf %32 : vector<8x32xf32> to vector<8x32xbf16>
    %cst_28 = arith.constant dense<0.000000e+00> : vector<8x32xf32>
    %36 = tpu.matmul %35, %19, %cst_28 {dimension_numbers = #tpu.dot_dimension_numbers<[1], [0], [0], [1], [0, 0, 1, 1], [], []>} : vector<8x32xbf16>, vector<32x32xbf16>, vector<8x32xf32> -> vector<8x32xf32>
    %37 = arith.addf %34, %36 : vector<8x32xf32>
    %38 = math.tanh %37 : vector<8x32xf32>
    %c8 = arith.constant 8 : index
    %c0_29 = arith.constant 0 : index
    %39 = vector.load %arg15[%c8, %c0_29] : memref<64x32xf32, #tpu.memory_space<vmem>>, vector<8x32xf32>
    tpu.vector_store %arg15[%c8, %c0_29], %38 {strides = array<i32>} : memref<64x32xf32, #tpu.memory_space<vmem>>, vector<8x32xf32>,
    %40 = vector.extract_strided_slice %25 {offsets = [16, 0], sizes = [8, 32], strides = [1, 1]} : vector<64x32xf32> to vector<8x32xf32>
    %41 = arith.truncf %38 : vector<8x32xf32> to vector<8x32xbf16>
    %cst_30 = arith.constant dense<0.000000e+00> : vector<8x32xf32>
    %42 = tpu.matmul %41, %19, %cst_30 {dimension_numbers = #tpu.dot_dimension_numbers<[1], [0], [0], [1], [0, 0, 1, 1], [], []>} : vector<8x32xbf16>, vector<32x32xbf16>, vector<8x32xf32> -> vector<8x32xf32>
    %43 = arith.addf %40, %42 : vector<8x32xf32>
    %44 = math.tanh %43 : vector<8x32xf32>
    %c16 = arith.constant 16 : index
    %c0_31 = arith.constant 0 : index
    %45 = vector.load %arg15[%c16, %c0_31] : memref<64x32xf32, #tpu.memory_space<vmem>>, vector<8x32xf32>
    tpu.vector_store %arg15[%c16, %c0_31], %44 {strides = array<i32>} : memref<64x32xf32, #tpu.memory_space<vmem>>, vector<8x32xf32>,
    %46 = vector.extract_strided_slice %25 {offsets = [24, 0], sizes = [8, 32], strides = [1, 1]} : vector<64x32xf32> to vector<8x32xf32>
    %47 = arith.truncf %44 : vector<8x32xf32> to vector<8x32xbf16>
    %cst_32 = arith.constant dense<0.000000e+00> : vector<8x32xf32>
    %48 = tpu.matmul %47, %19, %cst_32 {dimension_numbers = #tpu.dot_dimension_numbers<[1], [0], [0], [1], [0, 0, 1, 1], [], []>} : vector<8x32xbf16>, vector<32x32xbf16>, vector<8x32xf32> -> vector<8x32xf32>
    %49 = arith.addf %46, %48 : vector<8x32xf32>
    %50 = math.tanh %49 : vector<8x32xf32>
    %c24 = arith.constant 24 : index
    %c0_33 = arith.constant 0 : index
    %51 = vector.load %arg15[%c24, %c0_33] : memref<64x32xf32, #tpu.memory_space<vmem>>, vector<8x32xf32>
    tpu.vector_store %arg15[%c24, %c0_33], %50 {strides = array<i32>} : memref<64x32xf32, #tpu.memory_space<vmem>>, vector<8x32xf32>,
    %52 = vector.extract_strided_slice %25 {offsets = [32, 0], sizes = [8, 32], strides = [1, 1]} : vector<64x32xf32> to vector<8x32xf32>
    %53 = arith.truncf %50 : vector<8x32xf32> to vector<8x32xbf16>
    %cst_34 = arith.constant dense<0.000000e+00> : vector<8x32xf32>
    %54 = tpu.matmul %53, %19, %cst_34 {dimension_numbers = #tpu.dot_dimension_numbers<[1], [0], [0], [1], [0, 0, 1, 1], [], []>} : vector<8x32xbf16>, vector<32x32xbf16>, vector<8x32xf32> -> vector<8x32xf32>
    %55 = arith.addf %52, %54 : vector<8x32xf32>
    %56 = math.tanh %55 : vector<8x32xf32>
    %c32 = arith.constant 32 : index
    %c0_35 = arith.constant 0 : index
    %57 = vector.load %arg15[%c32, %c0_35] : memref<64x32xf32, #tpu.memory_space<vmem>>, vector<8x32xf32>
    tpu.vector_store %arg15[%c32, %c0_35], %56 {strides = array<i32>} : memref<64x32xf32, #tpu.memory_space<vmem>>, vector<8x32xf32>,
    %58 = vector.extract_strided_slice %25 {offsets = [40, 0], sizes = [8, 32], strides = [1, 1]} : vector<64x32xf32> to vector<8x32xf32>
    %59 = arith.truncf %56 : vector<8x32xf32> to vector<8x32xbf16>
    %cst_36 = arith.constant dense<0.000000e+00> : vector<8x32xf32>
    %60 = tpu.matmul %59, %19, %cst_36 {dimension_numbers = #tpu.dot_dimension_numbers<[1], [0], [0], [1], [0, 0, 1, 1], [], []>} : vector<8x32xbf16>, vector<32x32xbf16>, vector<8x32xf32> -> vector<8x32xf32>
    %61 = arith.addf %58, %60 : vector<8x32xf32>
    %62 = math.tanh %61 : vector<8x32xf32>
    %c40 = arith.constant 40 : index
    %c0_37 = arith.constant 0 : index
    %63 = vector.load %arg15[%c40, %c0_37] : memref<64x32xf32, #tpu.memory_space<vmem>>, vector<8x32xf32>
    tpu.vector_store %arg15[%c40, %c0_37], %62 {strides = array<i32>} : memref<64x32xf32, #tpu.memory_space<vmem>>, vector<8x32xf32>,
    %64 = vector.extract_strided_slice %25 {offsets = [48, 0], sizes = [8, 32], strides = [1, 1]} : vector<64x32xf32> to vector<8x32xf32>
    %65 = arith.truncf %62 : vector<8x32xf32> to vector<8x32xbf16>
    %cst_38 = arith.constant dense<0.000000e+00> : vector<8x32xf32>
    %66 = tpu.matmul %65, %19, %cst_38 {dimension_numbers = #tpu.dot_dimension_numbers<[1], [0], [0], [1], [0, 0, 1, 1], [], []>} : vector<8x32xbf16>, vector<32x32xbf16>, vector<8x32xf32> -> vector<8x32xf32>
    %67 = arith.addf %64, %66 : vector<8x32xf32>
    %68 = math.tanh %67 : vector<8x32xf32>
    %c48 = arith.constant 48 : index
    %c0_39 = arith.constant 0 : index
    %69 = vector.load %arg15[%c48, %c0_39] : memref<64x32xf32, #tpu.memory_space<vmem>>, vector<8x32xf32>
    tpu.vector_store %arg15[%c48, %c0_39], %68 {strides = array<i32>} : memref<64x32xf32, #tpu.memory_space<vmem>>, vector<8x32xf32>,
    %70 = vector.extract_strided_slice %25 {offsets = [56, 0], sizes = [8, 32], strides = [1, 1]} : vector<64x32xf32> to vector<8x32xf32>
    %71 = arith.truncf %68 : vector<8x32xf32> to vector<8x32xbf16>
    %cst_40 = arith.constant dense<0.000000e+00> : vector<8x32xf32>
    %72 = tpu.matmul %71, %19, %cst_40 {dimension_numbers = #tpu.dot_dimension_numbers<[1], [0], [0], [1], [0, 0, 1, 1], [], []>} : vector<8x32xbf16>, vector<32x32xbf16>, vector<8x32xf32> -> vector<8x32xf32>
    %73 = arith.addf %70, %72 : vector<8x32xf32>
    %74 = math.tanh %73 : vector<8x32xf32>
    %c56 = arith.constant 56 : index
    %c0_41 = arith.constant 0 : index
    %75 = vector.load %arg15[%c56, %c0_41] : memref<64x32xf32, #tpu.memory_space<vmem>>, vector<8x32xf32>
    tpu.vector_store %arg15[%c56, %c0_41], %74 {strides = array<i32>} : memref<64x32xf32, #tpu.memory_space<vmem>>, vector<8x32xf32>,
    %c0_42 = arith.constant 0 : index
    %c0_43 = arith.constant 0 : index
    %76 = vector.load %arg15[%c0_42, %c0_43] : memref<64x32xf32, #tpu.memory_space<vmem>>, vector<64x32xf32>
    %c1 = arith.constant 1 : index
    %c0_44 = arith.constant 0 : index
    %c0_45 = arith.constant 0 : index
    %77 = vector.load %arg6[%c1, %c0_44, %c0_45] : memref<2x32x32xbf16, #tpu.memory_space<vmem>>, vector<1x32x32xbf16>
    %78 = vector.shape_cast %77 : vector<1x32x32xbf16> to vector<32x32xbf16>
    %c1_46 = arith.constant 1 : index
    %c0_47 = arith.constant 0 : index
    %c0_48 = arith.constant 0 : index
    %79 = vector.load %arg7[%c1_46, %c0_47, %c0_48] : memref<2x32x32xbf16, #tpu.memory_space<vmem>>, vector<1x32x32xbf16>
    %80 = vector.shape_cast %79 : vector<1x32x32xbf16> to vector<32x32xbf16>
    %c1_49 = arith.constant 1 : index
    %c0_50 = arith.constant 0 : index
    %c0_51 = arith.constant 0 : index
    %81 = vector.load %arg8[%c1_49, %c0_50, %c0_51] : memref<2x1x32xf32, #tpu.memory_space<vmem>>, vector<1x1x32xf32>
    %82 = vector.shape_cast %81 : vector<1x1x32xf32> to vector<1x32xf32>
    %83 = arith.truncf %76 : vector<64x32xf32> to vector<64x32xbf16>
    %cst_52 = arith.constant dense<0.000000e+00> : vector<64x32xf32>
    %84 = tpu.matmul %83, %78, %cst_52 {dimension_numbers = #tpu.dot_dimension_numbers<[1], [0], [0], [1], [0, 0, 1, 1], [], []>} : vector<64x32xbf16>, vector<32x32xbf16>, vector<64x32xf32> -> vector<64x32xf32>
    %85 = vector.broadcast %82 : vector<1x32xf32> to vector<64x32xf32>
    %86 = arith.addf %84, %85 : vector<64x32xf32>
    %c1_53 = arith.constant 1 : index
    %c0_54 = arith.constant 0 : index
    %c0_55 = arith.constant 0 : index
    %87 = vector.load %arg1[%c1_53, %c0_54, %c0_55] : memref<2x8x32xf32, #tpu.memory_space<vmem>>, vector<1x8x32xf32>
    %88 = vector.shape_cast %87 : vector<1x8x32xf32> to vector<8x32xf32>
    %89 = vector.extract_strided_slice %86 {offsets = [0, 0], sizes = [8, 32], strides = [1, 1]} : vector<64x32xf32> to vector<8x32xf32>
    %90 = arith.truncf %88 : vector<8x32xf32> to vector<8x32xbf16>
    %cst_56 = arith.constant dense<0.000000e+00> : vector<8x32xf32>
    %91 = tpu.matmul %90, %80, %cst_56 {dimension_numbers = #tpu.dot_dimension_numbers<[1], [0], [0], [1], [0, 0, 1, 1], [], []>} : vector<8x32xbf16>, vector<32x32xbf16>, vector<8x32xf32> -> vector<8x32xf32>
    %92 = arith.addf %89, %91 : vector<8x32xf32>
    %93 = math.tanh %92 : vector<8x32xf32>
    %c0_57 = arith.constant 0 : index
    %c0_58 = arith.constant 0 : index
    %94 = vector.load %arg15[%c0_57, %c0_58] : memref<64x32xf32, #tpu.memory_space<vmem>>, vector<8x32xf32>
    tpu.vector_store %arg15[%c0_57, %c0_58], %93 {strides = array<i32>} : memref<64x32xf32, #tpu.memory_space<vmem>>, vector<8x32xf32>,
    %95 = vector.extract_strided_slice %86 {offsets = [8, 0], sizes = [8, 32], strides = [1, 1]} : vector<64x32xf32> to vector<8x32xf32>
    %96 = arith.truncf %93 : vector<8x32xf32> to vector<8x32xbf16>
    %cst_59 = arith.constant dense<0.000000e+00> : vector<8x32xf32>
    %97 = tpu.matmul %96, %80, %cst_59 {dimension_numbers = #tpu.dot_dimension_numbers<[1], [0], [0], [1], [0, 0, 1, 1], [], []>} : vector<8x32xbf16>, vector<32x32xbf16>, vector<8x32xf32> -> vector<8x32xf32>
    %98 = arith.addf %95, %97 : vector<8x32xf32>
    %99 = math.tanh %98 : vector<8x32xf32>
    %c8_60 = arith.constant 8 : index
    %c0_61 = arith.constant 0 : index
    %100 = vector.load %arg15[%c8_60, %c0_61] : memref<64x32xf32, #tpu.memory_space<vmem>>, vector<8x32xf32>
    tpu.vector_store %arg15[%c8_60, %c0_61], %99 {strides = array<i32>} : memref<64x32xf32, #tpu.memory_space<vmem>>, vector<8x32xf32>,
    %101 = vector.extract_strided_slice %86 {offsets = [16, 0], sizes = [8, 32], strides = [1, 1]} : vector<64x32xf32> to vector<8x32xf32>
    %102 = arith.truncf %99 : vector<8x32xf32> to vector<8x32xbf16>
    %cst_62 = arith.constant dense<0.000000e+00> : vector<8x32xf32>
    %103 = tpu.matmul %102, %80, %cst_62 {dimension_numbers = #tpu.dot_dimension_numbers<[1], [0], [0], [1], [0, 0, 1, 1], [], []>} : vector<8x32xbf16>, vector<32x32xbf16>, vector<8x32xf32> -> vector<8x32xf32>
    %104 = arith.addf %101, %103 : vector<8x32xf32>
    %105 = math.tanh %104 : vector<8x32xf32>
    %c16_63 = arith.constant 16 : index
    %c0_64 = arith.constant 0 : index
    %106 = vector.load %arg15[%c16_63, %c0_64] : memref<64x32xf32, #tpu.memory_space<vmem>>, vector<8x32xf32>
    tpu.vector_store %arg15[%c16_63, %c0_64], %105 {strides = array<i32>} : memref<64x32xf32, #tpu.memory_space<vmem>>, vector<8x32xf32>,
    %107 = vector.extract_strided_slice %86 {offsets = [24, 0], sizes = [8, 32], strides = [1, 1]} : vector<64x32xf32> to vector<8x32xf32>
    %108 = arith.truncf %105 : vector<8x32xf32> to vector<8x32xbf16>
    %cst_65 = arith.constant dense<0.000000e+00> : vector<8x32xf32>
    %109 = tpu.matmul %108, %80, %cst_65 {dimension_numbers = #tpu.dot_dimension_numbers<[1], [0], [0], [1], [0, 0, 1, 1], [], []>} : vector<8x32xbf16>, vector<32x32xbf16>, vector<8x32xf32> -> vector<8x32xf32>
    %110 = arith.addf %107, %109 : vector<8x32xf32>
    %111 = math.tanh %110 : vector<8x32xf32>
    %c24_66 = arith.constant 24 : index
    %c0_67 = arith.constant 0 : index
    %112 = vector.load %arg15[%c24_66, %c0_67] : memref<64x32xf32, #tpu.memory_space<vmem>>, vector<8x32xf32>
    tpu.vector_store %arg15[%c24_66, %c0_67], %111 {strides = array<i32>} : memref<64x32xf32, #tpu.memory_space<vmem>>, vector<8x32xf32>,
    %113 = vector.extract_strided_slice %86 {offsets = [32, 0], sizes = [8, 32], strides = [1, 1]} : vector<64x32xf32> to vector<8x32xf32>
    %114 = arith.truncf %111 : vector<8x32xf32> to vector<8x32xbf16>
    %cst_68 = arith.constant dense<0.000000e+00> : vector<8x32xf32>
    %115 = tpu.matmul %114, %80, %cst_68 {dimension_numbers = #tpu.dot_dimension_numbers<[1], [0], [0], [1], [0, 0, 1, 1], [], []>} : vector<8x32xbf16>, vector<32x32xbf16>, vector<8x32xf32> -> vector<8x32xf32>
    %116 = arith.addf %113, %115 : vector<8x32xf32>
    %117 = math.tanh %116 : vector<8x32xf32>
    %c32_69 = arith.constant 32 : index
    %c0_70 = arith.constant 0 : index
    %118 = vector.load %arg15[%c32_69, %c0_70] : memref<64x32xf32, #tpu.memory_space<vmem>>, vector<8x32xf32>
    tpu.vector_store %arg15[%c32_69, %c0_70], %117 {strides = array<i32>} : memref<64x32xf32, #tpu.memory_space<vmem>>, vector<8x32xf32>,
    %119 = vector.extract_strided_slice %86 {offsets = [40, 0], sizes = [8, 32], strides = [1, 1]} : vector<64x32xf32> to vector<8x32xf32>
    %120 = arith.truncf %117 : vector<8x32xf32> to vector<8x32xbf16>
    %cst_71 = arith.constant dense<0.000000e+00> : vector<8x32xf32>
    %121 = tpu.matmul %120, %80, %cst_71 {dimension_numbers = #tpu.dot_dimension_numbers<[1], [0], [0], [1], [0, 0, 1, 1], [], []>} : vector<8x32xbf16>, vector<32x32xbf16>, vector<8x32xf32> -> vector<8x32xf32>
    %122 = arith.addf %119, %121 : vector<8x32xf32>
    %123 = math.tanh %122 : vector<8x32xf32>
    %c40_72 = arith.constant 40 : index
    %c0_73 = arith.constant 0 : index
    %124 = vector.load %arg15[%c40_72, %c0_73] : memref<64x32xf32, #tpu.memory_space<vmem>>, vector<8x32xf32>
    tpu.vector_store %arg15[%c40_72, %c0_73], %123 {strides = array<i32>} : memref<64x32xf32, #tpu.memory_space<vmem>>, vector<8x32xf32>,
    %125 = vector.extract_strided_slice %86 {offsets = [48, 0], sizes = [8, 32], strides = [1, 1]} : vector<64x32xf32> to vector<8x32xf32>
    %126 = arith.truncf %123 : vector<8x32xf32> to vector<8x32xbf16>
    %cst_74 = arith.constant dense<0.000000e+00> : vector<8x32xf32>
    %127 = tpu.matmul %126, %80, %cst_74 {dimension_numbers = #tpu.dot_dimension_numbers<[1], [0], [0], [1], [0, 0, 1, 1], [], []>} : vector<8x32xbf16>, vector<32x32xbf16>, vector<8x32xf32> -> vector<8x32xf32>
    %128 = arith.addf %125, %127 : vector<8x32xf32>
    %129 = math.tanh %128 : vector<8x32xf32>
    %c48_75 = arith.constant 48 : index
    %c0_76 = arith.constant 0 : index
    %130 = vector.load %arg15[%c48_75, %c0_76] : memref<64x32xf32, #tpu.memory_space<vmem>>, vector<8x32xf32>
    tpu.vector_store %arg15[%c48_75, %c0_76], %129 {strides = array<i32>} : memref<64x32xf32, #tpu.memory_space<vmem>>, vector<8x32xf32>,
    %131 = vector.extract_strided_slice %86 {offsets = [56, 0], sizes = [8, 32], strides = [1, 1]} : vector<64x32xf32> to vector<8x32xf32>
    %132 = arith.truncf %129 : vector<8x32xf32> to vector<8x32xbf16>
    %cst_77 = arith.constant dense<0.000000e+00> : vector<8x32xf32>
    %133 = tpu.matmul %132, %80, %cst_77 {dimension_numbers = #tpu.dot_dimension_numbers<[1], [0], [0], [1], [0, 0, 1, 1], [], []>} : vector<8x32xbf16>, vector<32x32xbf16>, vector<8x32xf32> -> vector<8x32xf32>
    %134 = arith.addf %131, %133 : vector<8x32xf32>
    %135 = math.tanh %134 : vector<8x32xf32>
    %c56_78 = arith.constant 56 : index
    %c0_79 = arith.constant 0 : index
    %136 = vector.load %arg15[%c56_78, %c0_79] : memref<64x32xf32, #tpu.memory_space<vmem>>, vector<8x32xf32>
    tpu.vector_store %arg15[%c56_78, %c0_79], %135 {strides = array<i32>} : memref<64x32xf32, #tpu.memory_space<vmem>>, vector<8x32xf32>,
    %c0_80 = arith.constant 0 : index
    %c0_81 = arith.constant 0 : index
    %137 = vector.load %arg9[%c0_80, %c0_81] : memref<32x32xbf16, #tpu.memory_space<vmem>>, vector<32x32xbf16>
    %c0_82 = arith.constant 0 : index
    %c0_83 = arith.constant 0 : index
    %138 = vector.load %arg11[%c0_82, %c0_83] : memref<32x16xbf16, #tpu.memory_space<vmem>>, vector<32x16xbf16>
    %c0_84 = arith.constant 0 : index
    %c0_85 = arith.constant 0 : index
    %139 = vector.load %arg10[%c0_84, %c0_85] : memref<1x32xf32, #tpu.memory_space<vmem>>, vector<1x32xf32>
    %140 = vector.shape_cast %139 : vector<1x32xf32> to vector<1x32xf32>
    %141 = vector.broadcast %140 : vector<1x32xf32> to vector<8x32xf32>
    %c0_86 = arith.constant 0 : index
    %c0_87 = arith.constant 0 : index
    %142 = vector.load %arg12[%c0_86, %c0_87] : memref<1x16xf32, #tpu.memory_space<vmem>>, vector<1x16xf32>
    %143 = vector.shape_cast %142 : vector<1x16xf32> to vector<1x16xf32>
    %144 = vector.broadcast %143 : vector<1x16xf32> to vector<8x16xf32>
    %c0_88 = arith.constant 0 : index
    %c0_89 = arith.constant 0 : index
    %145 = vector.load %arg13[%c0_88, %c0_89] : memref<16x32xbf16, #tpu.memory_space<vmem>>, vector<16x32xbf16>
    %c0_90 = arith.constant 0 : index
    %c0_91 = arith.constant 0 : index
    %146 = tpu.strided_load %arg15[%c0_90, %c0_91] {strides = array<i32: 8, 1>} : memref<64x32xf32, #tpu.memory_space<vmem>>, vector<8x32xf32>
    %147 = arith.truncf %146 : vector<8x32xf32> to vector<8x32xbf16>
    %cst_92 = arith.constant dense<0.000000e+00> : vector<8x32xf32>
    %148 = tpu.matmul %147, %137, %cst_92 {dimension_numbers = #tpu.dot_dimension_numbers<[1], [0], [0], [1], [0, 0, 1, 1], [], []>} : vector<8x32xbf16>, vector<32x32xbf16>, vector<8x32xf32> -> vector<8x32xf32>
    %149 = arith.addf %148, %141 : vector<8x32xf32>
    %cst_93 = arith.constant 0.000000e+00 : f32
    %150 = vector.broadcast %cst_93 : f32 to vector<8x32xf32>
    %151 = arith.maximumf %149, %150 : vector<8x32xf32>
    %152 = arith.truncf %151 : vector<8x32xf32> to vector<8x32xbf16>
    %cst_94 = arith.constant dense<0.000000e+00> : vector<8x16xf32>
    %153 = tpu.matmul %152, %138, %cst_94 {dimension_numbers = #tpu.dot_dimension_numbers<[1], [0], [0], [1], [0, 0, 1, 1], [], []>} : vector<8x32xbf16>, vector<32x16xbf16>, vector<8x16xf32> -> vector<8x16xf32>
    %154 = arith.addf %153, %144 : vector<8x16xf32>
    %155 = arith.truncf %154 : vector<8x16xf32> to vector<8x16xbf16>
    %cst_95 = arith.constant dense<0.000000e+00> : vector<8x32xf32>
    %156 = tpu.matmul %155, %145, %cst_95 {dimension_numbers = #tpu.dot_dimension_numbers<[1], [0], [0], [1], [0, 0, 1, 1], [], []>} : vector<8x16xbf16>, vector<16x32xbf16>, vector<8x32xf32> -> vector<8x32xf32>
    %c0_96 = arith.constant 0 : index
    %c0_97 = arith.constant 0 : index
    %c0_98 = arith.constant 0 : index
    %157 = vector.load %arg14[%c0_96, %c0_97, %c0_98] : memref<8x8x32xf32, #tpu.memory_space<vmem>>, vector<1x8x32xf32>
    %158 = vector.shape_cast %157 : vector<1x8x32xf32> to vector<8x32xf32>
    %159 = vector.shape_cast %156 : vector<8x32xf32> to vector<1x8x32xf32>
    tpu.vector_store %arg14[%c0_96, %c0_97, %c0_98], %159 {strides = array<i32>} : memref<8x8x32xf32, #tpu.memory_space<vmem>>, vector<1x8x32xf32>,
    %c1_99 = arith.constant 1 : index
    %c0_100 = arith.constant 0 : index
    %160 = tpu.strided_load %arg15[%c1_99, %c0_100] {strides = array<i32: 8, 1>} : memref<64x32xf32, #tpu.memory_space<vmem>>, vector<8x32xf32>
    %161 = arith.truncf %160 : vector<8x32xf32> to vector<8x32xbf16>
    %cst_101 = arith.constant dense<0.000000e+00> : vector<8x32xf32>
    %162 = tpu.matmul %161, %137, %cst_101 {dimension_numbers = #tpu.dot_dimension_numbers<[1], [0], [0], [1], [0, 0, 1, 1], [], []>} : vector<8x32xbf16>, vector<32x32xbf16>, vector<8x32xf32> -> vector<8x32xf32>
    %163 = arith.addf %162, %141 : vector<8x32xf32>
    %cst_102 = arith.constant 0.000000e+00 : f32
    %164 = vector.broadcast %cst_102 : f32 to vector<8x32xf32>
    %165 = arith.maximumf %163, %164 : vector<8x32xf32>
    %166 = arith.truncf %165 : vector<8x32xf32> to vector<8x32xbf16>
    %cst_103 = arith.constant dense<0.000000e+00> : vector<8x16xf32>
    %167 = tpu.matmul %166, %138, %cst_103 {dimension_numbers = #tpu.dot_dimension_numbers<[1], [0], [0], [1], [0, 0, 1, 1], [], []>} : vector<8x32xbf16>, vector<32x16xbf16>, vector<8x16xf32> -> vector<8x16xf32>
    %168 = arith.addf %167, %144 : vector<8x16xf32>
    %169 = arith.truncf %168 : vector<8x16xf32> to vector<8x16xbf16>
    %cst_104 = arith.constant dense<0.000000e+00> : vector<8x32xf32>
    %170 = tpu.matmul %169, %145, %cst_104 {dimension_numbers = #tpu.dot_dimension_numbers<[1], [0], [0], [1], [0, 0, 1, 1], [], []>} : vector<8x16xbf16>, vector<16x32xbf16>, vector<8x32xf32> -> vector<8x32xf32>
    %c1_105 = arith.constant 1 : index
    %c0_106 = arith.constant 0 : index
    %c0_107 = arith.constant 0 : index
    %171 = vector.load %arg14[%c1_105, %c0_106, %c0_107] : memref<8x8x32xf32, #tpu.memory_space<vmem>>, vector<1x8x32xf32>
    %172 = vector.shape_cast %171 : vector<1x8x32xf32> to vector<8x32xf32>
    %173 = vector.shape_cast %170 : vector<8x32xf32> to vector<1x8x32xf32>
    tpu.vector_store %arg14[%c1_105, %c0_106, %c0_107], %173 {strides = array<i32>} : memref<8x8x32xf32, #tpu.memory_space<vmem>>, vector<1x8x32xf32>,
    %c2 = arith.constant 2 : index
    %c0_108 = arith.constant 0 : index
    %174 = tpu.strided_load %arg15[%c2, %c0_108] {strides = array<i32: 8, 1>} : memref<64x32xf32, #tpu.memory_space<vmem>>, vector<8x32xf32>
    %175 = arith.truncf %174 : vector<8x32xf32> to vector<8x32xbf16>
    %cst_109 = arith.constant dense<0.000000e+00> : vector<8x32xf32>
    %176 = tpu.matmul %175, %137, %cst_109 {dimension_numbers = #tpu.dot_dimension_numbers<[1], [0], [0], [1], [0, 0, 1, 1], [], []>} : vector<8x32xbf16>, vector<32x32xbf16>, vector<8x32xf32> -> vector<8x32xf32>
    %177 = arith.addf %176, %141 : vector<8x32xf32>
    %cst_110 = arith.constant 0.000000e+00 : f32
    %178 = vector.broadcast %cst_110 : f32 to vector<8x32xf32>
    %179 = arith.maximumf %177, %178 : vector<8x32xf32>
    %180 = arith.truncf %179 : vector<8x32xf32> to vector<8x32xbf16>
    %cst_111 = arith.constant dense<0.000000e+00> : vector<8x16xf32>
    %181 = tpu.matmul %180, %138, %cst_111 {dimension_numbers = #tpu.dot_dimension_numbers<[1], [0], [0], [1], [0, 0, 1, 1], [], []>} : vector<8x32xbf16>, vector<32x16xbf16>, vector<8x16xf32> -> vector<8x16xf32>
    %182 = arith.addf %181, %144 : vector<8x16xf32>
    %183 = arith.truncf %182 : vector<8x16xf32> to vector<8x16xbf16>
    %cst_112 = arith.constant dense<0.000000e+00> : vector<8x32xf32>
    %184 = tpu.matmul %183, %145, %cst_112 {dimension_numbers = #tpu.dot_dimension_numbers<[1], [0], [0], [1], [0, 0, 1, 1], [], []>} : vector<8x16xbf16>, vector<16x32xbf16>, vector<8x32xf32> -> vector<8x32xf32>
    %c2_113 = arith.constant 2 : index
    %c0_114 = arith.constant 0 : index
    %c0_115 = arith.constant 0 : index
    %185 = vector.load %arg14[%c2_113, %c0_114, %c0_115] : memref<8x8x32xf32, #tpu.memory_space<vmem>>, vector<1x8x32xf32>
    %186 = vector.shape_cast %185 : vector<1x8x32xf32> to vector<8x32xf32>
    %187 = vector.shape_cast %184 : vector<8x32xf32> to vector<1x8x32xf32>
    tpu.vector_store %arg14[%c2_113, %c0_114, %c0_115], %187 {strides = array<i32>} : memref<8x8x32xf32, #tpu.memory_space<vmem>>, vector<1x8x32xf32>,
    %c3 = arith.constant 3 : index
    %c0_116 = arith.constant 0 : index
    %188 = tpu.strided_load %arg15[%c3, %c0_116] {strides = array<i32: 8, 1>} : memref<64x32xf32, #tpu.memory_space<vmem>>, vector<8x32xf32>
    %189 = arith.truncf %188 : vector<8x32xf32> to vector<8x32xbf16>
    %cst_117 = arith.constant dense<0.000000e+00> : vector<8x32xf32>
    %190 = tpu.matmul %189, %137, %cst_117 {dimension_numbers = #tpu.dot_dimension_numbers<[1], [0], [0], [1], [0, 0, 1, 1], [], []>} : vector<8x32xbf16>, vector<32x32xbf16>, vector<8x32xf32> -> vector<8x32xf32>
    %191 = arith.addf %190, %141 : vector<8x32xf32>
    %cst_118 = arith.constant 0.000000e+00 : f32
    %192 = vector.broadcast %cst_118 : f32 to vector<8x32xf32>
    %193 = arith.maximumf %191, %192 : vector<8x32xf32>
    %194 = arith.truncf %193 : vector<8x32xf32> to vector<8x32xbf16>
    %cst_119 = arith.constant dense<0.000000e+00> : vector<8x16xf32>
    %195 = tpu.matmul %194, %138, %cst_119 {dimension_numbers = #tpu.dot_dimension_numbers<[1], [0], [0], [1], [0, 0, 1, 1], [], []>} : vector<8x32xbf16>, vector<32x16xbf16>, vector<8x16xf32> -> vector<8x16xf32>
    %196 = arith.addf %195, %144 : vector<8x16xf32>
    %197 = arith.truncf %196 : vector<8x16xf32> to vector<8x16xbf16>
    %cst_120 = arith.constant dense<0.000000e+00> : vector<8x32xf32>
    %198 = tpu.matmul %197, %145, %cst_120 {dimension_numbers = #tpu.dot_dimension_numbers<[1], [0], [0], [1], [0, 0, 1, 1], [], []>} : vector<8x16xbf16>, vector<16x32xbf16>, vector<8x32xf32> -> vector<8x32xf32>
    %c3_121 = arith.constant 3 : index
    %c0_122 = arith.constant 0 : index
    %c0_123 = arith.constant 0 : index
    %199 = vector.load %arg14[%c3_121, %c0_122, %c0_123] : memref<8x8x32xf32, #tpu.memory_space<vmem>>, vector<1x8x32xf32>
    %200 = vector.shape_cast %199 : vector<1x8x32xf32> to vector<8x32xf32>
    %201 = vector.shape_cast %198 : vector<8x32xf32> to vector<1x8x32xf32>
    tpu.vector_store %arg14[%c3_121, %c0_122, %c0_123], %201 {strides = array<i32>} : memref<8x8x32xf32, #tpu.memory_space<vmem>>, vector<1x8x32xf32>,
    %c4 = arith.constant 4 : index
    %c0_124 = arith.constant 0 : index
    %202 = tpu.strided_load %arg15[%c4, %c0_124] {strides = array<i32: 8, 1>} : memref<64x32xf32, #tpu.memory_space<vmem>>, vector<8x32xf32>
    %203 = arith.truncf %202 : vector<8x32xf32> to vector<8x32xbf16>
    %cst_125 = arith.constant dense<0.000000e+00> : vector<8x32xf32>
    %204 = tpu.matmul %203, %137, %cst_125 {dimension_numbers = #tpu.dot_dimension_numbers<[1], [0], [0], [1], [0, 0, 1, 1], [], []>} : vector<8x32xbf16>, vector<32x32xbf16>, vector<8x32xf32> -> vector<8x32xf32>
    %205 = arith.addf %204, %141 : vector<8x32xf32>
    %cst_126 = arith.constant 0.000000e+00 : f32
    %206 = vector.broadcast %cst_126 : f32 to vector<8x32xf32>
    %207 = arith.maximumf %205, %206 : vector<8x32xf32>
    %208 = arith.truncf %207 : vector<8x32xf32> to vector<8x32xbf16>
    %cst_127 = arith.constant dense<0.000000e+00> : vector<8x16xf32>
    %209 = tpu.matmul %208, %138, %cst_127 {dimension_numbers = #tpu.dot_dimension_numbers<[1], [0], [0], [1], [0, 0, 1, 1], [], []>} : vector<8x32xbf16>, vector<32x16xbf16>, vector<8x16xf32> -> vector<8x16xf32>
    %210 = arith.addf %209, %144 : vector<8x16xf32>
    %211 = arith.truncf %210 : vector<8x16xf32> to vector<8x16xbf16>
    %cst_128 = arith.constant dense<0.000000e+00> : vector<8x32xf32>
    %212 = tpu.matmul %211, %145, %cst_128 {dimension_numbers = #tpu.dot_dimension_numbers<[1], [0], [0], [1], [0, 0, 1, 1], [], []>} : vector<8x16xbf16>, vector<16x32xbf16>, vector<8x32xf32> -> vector<8x32xf32>
    %c4_129 = arith.constant 4 : index
    %c0_130 = arith.constant 0 : index
    %c0_131 = arith.constant 0 : index
    %213 = vector.load %arg14[%c4_129, %c0_130, %c0_131] : memref<8x8x32xf32, #tpu.memory_space<vmem>>, vector<1x8x32xf32>
    %214 = vector.shape_cast %213 : vector<1x8x32xf32> to vector<8x32xf32>
    %215 = vector.shape_cast %212 : vector<8x32xf32> to vector<1x8x32xf32>
    tpu.vector_store %arg14[%c4_129, %c0_130, %c0_131], %215 {strides = array<i32>} : memref<8x8x32xf32, #tpu.memory_space<vmem>>, vector<1x8x32xf32>,
    %c5 = arith.constant 5 : index
    %c0_132 = arith.constant 0 : index
    %216 = tpu.strided_load %arg15[%c5, %c0_132] {strides = array<i32: 8, 1>} : memref<64x32xf32, #tpu.memory_space<vmem>>, vector<8x32xf32>
    %217 = arith.truncf %216 : vector<8x32xf32> to vector<8x32xbf16>
    %cst_133 = arith.constant dense<0.000000e+00> : vector<8x32xf32>
    %218 = tpu.matmul %217, %137, %cst_133 {dimension_numbers = #tpu.dot_dimension_numbers<[1], [0], [0], [1], [0, 0, 1, 1], [], []>} : vector<8x32xbf16>, vector<32x32xbf16>, vector<8x32xf32> -> vector<8x32xf32>
    %219 = arith.addf %218, %141 : vector<8x32xf32>
    %cst_134 = arith.constant 0.000000e+00 : f32
    %220 = vector.broadcast %cst_134 : f32 to vector<8x32xf32>
    %221 = arith.maximumf %219, %220 : vector<8x32xf32>
    %222 = arith.truncf %221 : vector<8x32xf32> to vector<8x32xbf16>
    %cst_135 = arith.constant dense<0.000000e+00> : vector<8x16xf32>
    %223 = tpu.matmul %222, %138, %cst_135 {dimension_numbers = #tpu.dot_dimension_numbers<[1], [0], [0], [1], [0, 0, 1, 1], [], []>} : vector<8x32xbf16>, vector<32x16xbf16>, vector<8x16xf32> -> vector<8x16xf32>
    %224 = arith.addf %223, %144 : vector<8x16xf32>
    %225 = arith.truncf %224 : vector<8x16xf32> to vector<8x16xbf16>
    %cst_136 = arith.constant dense<0.000000e+00> : vector<8x32xf32>
    %226 = tpu.matmul %225, %145, %cst_136 {dimension_numbers = #tpu.dot_dimension_numbers<[1], [0], [0], [1], [0, 0, 1, 1], [], []>} : vector<8x16xbf16>, vector<16x32xbf16>, vector<8x32xf32> -> vector<8x32xf32>
    %c5_137 = arith.constant 5 : index
    %c0_138 = arith.constant 0 : index
    %c0_139 = arith.constant 0 : index
    %227 = vector.load %arg14[%c5_137, %c0_138, %c0_139] : memref<8x8x32xf32, #tpu.memory_space<vmem>>, vector<1x8x32xf32>
    %228 = vector.shape_cast %227 : vector<1x8x32xf32> to vector<8x32xf32>
    %229 = vector.shape_cast %226 : vector<8x32xf32> to vector<1x8x32xf32>
    tpu.vector_store %arg14[%c5_137, %c0_138, %c0_139], %229 {strides = array<i32>} : memref<8x8x32xf32, #tpu.memory_space<vmem>>, vector<1x8x32xf32>,
    %c6 = arith.constant 6 : index
    %c0_140 = arith.constant 0 : index
    %230 = tpu.strided_load %arg15[%c6, %c0_140] {strides = array<i32: 8, 1>} : memref<64x32xf32, #tpu.memory_space<vmem>>, vector<8x32xf32>
    %231 = arith.truncf %230 : vector<8x32xf32> to vector<8x32xbf16>
    %cst_141 = arith.constant dense<0.000000e+00> : vector<8x32xf32>
    %232 = tpu.matmul %231, %137, %cst_141 {dimension_numbers = #tpu.dot_dimension_numbers<[1], [0], [0], [1], [0, 0, 1, 1], [], []>} : vector<8x32xbf16>, vector<32x32xbf16>, vector<8x32xf32> -> vector<8x32xf32>
    %233 = arith.addf %232, %141 : vector<8x32xf32>
    %cst_142 = arith.constant 0.000000e+00 : f32
    %234 = vector.broadcast %cst_142 : f32 to vector<8x32xf32>
    %235 = arith.maximumf %233, %234 : vector<8x32xf32>
    %236 = arith.truncf %235 : vector<8x32xf32> to vector<8x32xbf16>
    %cst_143 = arith.constant dense<0.000000e+00> : vector<8x16xf32>
    %237 = tpu.matmul %236, %138, %cst_143 {dimension_numbers = #tpu.dot_dimension_numbers<[1], [0], [0], [1], [0, 0, 1, 1], [], []>} : vector<8x32xbf16>, vector<32x16xbf16>, vector<8x16xf32> -> vector<8x16xf32>
    %238 = arith.addf %237, %144 : vector<8x16xf32>
    %239 = arith.truncf %238 : vector<8x16xf32> to vector<8x16xbf16>
    %cst_144 = arith.constant dense<0.000000e+00> : vector<8x32xf32>
    %240 = tpu.matmul %239, %145, %cst_144 {dimension_numbers = #tpu.dot_dimension_numbers<[1], [0], [0], [1], [0, 0, 1, 1], [], []>} : vector<8x16xbf16>, vector<16x32xbf16>, vector<8x32xf32> -> vector<8x32xf32>
    %c6_145 = arith.constant 6 : index
    %c0_146 = arith.constant 0 : index
    %c0_147 = arith.constant 0 : index
    %241 = vector.load %arg14[%c6_145, %c0_146, %c0_147] : memref<8x8x32xf32, #tpu.memory_space<vmem>>, vector<1x8x32xf32>
    %242 = vector.shape_cast %241 : vector<1x8x32xf32> to vector<8x32xf32>
    %243 = vector.shape_cast %240 : vector<8x32xf32> to vector<1x8x32xf32>
    tpu.vector_store %arg14[%c6_145, %c0_146, %c0_147], %243 {strides = array<i32>} : memref<8x8x32xf32, #tpu.memory_space<vmem>>, vector<1x8x32xf32>,
    %c7 = arith.constant 7 : index
    %c0_148 = arith.constant 0 : index
    %244 = tpu.strided_load %arg15[%c7, %c0_148] {strides = array<i32: 8, 1>} : memref<64x32xf32, #tpu.memory_space<vmem>>, vector<8x32xf32>
    %245 = arith.truncf %244 : vector<8x32xf32> to vector<8x32xbf16>
    %cst_149 = arith.constant dense<0.000000e+00> : vector<8x32xf32>
    %246 = tpu.matmul %245, %137, %cst_149 {dimension_numbers = #tpu.dot_dimension_numbers<[1], [0], [0], [1], [0, 0, 1, 1], [], []>} : vector<8x32xbf16>, vector<32x32xbf16>, vector<8x32xf32> -> vector<8x32xf32>
    %247 = arith.addf %246, %141 : vector<8x32xf32>
    %cst_150 = arith.constant 0.000000e+00 : f32
    %248 = vector.broadcast %cst_150 : f32 to vector<8x32xf32>
    %249 = arith.maximumf %247, %248 : vector<8x32xf32>
    %250 = arith.truncf %249 : vector<8x32xf32> to vector<8x32xbf16>
    %cst_151 = arith.constant dense<0.000000e+00> : vector<8x16xf32>
    %251 = tpu.matmul %250, %138, %cst_151 {dimension_numbers = #tpu.dot_dimension_numbers<[1], [0], [0], [1], [0, 0, 1, 1], [], []>} : vector<8x32xbf16>, vector<32x16xbf16>, vector<8x16xf32> -> vector<8x16xf32>
    %252 = arith.addf %251, %144 : vector<8x16xf32>
    %253 = arith.truncf %252 : vector<8x16xf32> to vector<8x16xbf16>
    %cst_152 = arith.constant dense<0.000000e+00> : vector<8x32xf32>
    %254 = tpu.matmul %253, %145, %cst_152 {dimension_numbers = #tpu.dot_dimension_numbers<[1], [0], [0], [1], [0, 0, 1, 1], [], []>} : vector<8x16xbf16>, vector<16x32xbf16>, vector<8x32xf32> -> vector<8x32xf32>
    %c7_153 = arith.constant 7 : index
    %c0_154 = arith.constant 0 : index
    %c0_155 = arith.constant 0 : index
    %255 = vector.load %arg14[%c7_153, %c0_154, %c0_155] : memref<8x8x32xf32, #tpu.memory_space<vmem>>, vector<1x8x32xf32>
    %256 = vector.shape_cast %255 : vector<1x8x32xf32> to vector<8x32xf32>
    %257 = vector.shape_cast %254 : vector<8x32xf32> to vector<1x8x32xf32>
    tpu.vector_store %arg14[%c7_153, %c0_154, %c0_155], %257 {strides = array<i32>} : memref<8x8x32xf32, #tpu.memory_space<vmem>>, vector<1x8x32xf32>,
    return
  }
}

</mosaic_0001>

<llo_original>
// kernel: _lambda_.2
$region0: #{_lambda_.2}
  #allocation0 [shape = 'u32[]', space=smem, size = 0x4, offset = 0x4, fixed_abs, tag = 'smem constant byte address 0x4 - core index']
  #allocation1 [shape = 'u32[144,128]{1,0:T(1,128)}', space=vmem, size = 0x12000, scoped, tag = 'internal scratch']
  #allocation2 [shape = 'f32[64,32]{1,0:T(8,128)}', space=vmem, size = 0x8000, scoped, tag = 'scratch operand']
  %s0 = inlined_call_operand.vmem [shape: bf16[64,16], index: 0, kind: input, shape index: {}]
  %s1 = inlined_call_operand.vmem [shape: s32[8,1], index: 1, kind: input, shape index: {}]
  %s2 = inlined_call_operand.vmem [shape: bf16[16,32], index: 2, kind: input, shape index: {}]
  %s3 = inlined_call_operand.vmem [shape: f32[1,32], index: 3, kind: input, shape index: {}]
  %s4 = inlined_call_operand.vmem [shape: bf16[32,32], index: 4, kind: input, shape index: {}]
  %s5 = inlined_call_operand.vmem [shape: f32[1,32], index: 5, kind: input, shape index: {}]
  %s6 = inlined_call_operand.vmem [shape: bf16[2,32,32], index: 6, kind: input, shape index: {}]
  %s7 = inlined_call_operand.vmem [shape: bf16[2,32,32], index: 7, kind: input, shape index: {}]
  %s8 = inlined_call_operand.vmem [shape: f32[2,1,32], index: 8, kind: input, shape index: {}]
  %s9 = inlined_call_operand.vmem [shape: bf16[32,64], index: 9, kind: input, shape index: {}]
  %s10 = inlined_call_operand.vmem [shape: f32[1,64], index: 10, kind: input, shape index: {}]
  %s11 = inlined_call_operand.vmem [shape: bf16[64,64], index: 11, kind: input, shape index: {}]
  %s12 = inlined_call_operand.vmem [shape: f32[1,64], index: 12, kind: input, shape index: {}]
  %s13 = inlined_call_operand.vmem [shape: f32[8,64], index: 13, kind: output, shape index: {}]
  %s14 = sld [smem:[#allocation0]]
  $region62: #{_lambda_.2} parent=0
    _
  %s16 = ssub.s32 1, %s14
  %s17 = scalar_select 0, %s16, %s14
  // Predicated region
  $region2: #{_lambda_.2} parent=0 // pred_check
    _
  $region3: #{_lambda_.2} parent=0 // pred_check_branch
    %19 = sbr.rel (0) target = $region5
  $region4: #{_lambda_.2} parent=0 // pred_region
    _
  $region5: #{_lambda_.2} parent=0 // pred_fallthru
    _
  // Predicated region
  $region6: #{_lambda_.2} parent=0 // pred_check
    _
  $region7: #{_lambda_.2} parent=0 // pred_check_branch
    %21 = sbr.rel (0) target = $region9
  $region8: #{_lambda_.2} parent=0 // pred_region
    _
  $region9: #{_lambda_.2} parent=0 // pred_fallthru
    _
  // Predicated region
  $region10: #{_lambda_.2} parent=0 // pred_check
    _
  $region11: #{_lambda_.2} parent=0 // pred_check_branch
    %23 = sbr.rel (0) target = $region13
  $region12: #{_lambda_.2} parent=0 // pred_region
    _
  $region13: #{_lambda_.2} parent=0 // pred_fallthru
    _
  // Predicated region
  $region14: #{_lambda_.2} parent=0 // pred_check
    _
  $region15: #{_lambda_.2} parent=0 // pred_check_branch
    %25 = sbr.rel (0) target = $region17
  $region16: #{_lambda_.2} parent=0 // pred_region
    _
  $region17: #{_lambda_.2} parent=0 // pred_fallthru
    _
  // Predicated region
  $region18: #{_lambda_.2} parent=0 // pred_check
    _
  $region19: #{_lambda_.2} parent=0 // pred_check_branch
    %27 = sbr.rel (0) target = $region21
  $region20: #{_lambda_.2} parent=0 // pred_region
    _
  $region21: #{_lambda_.2} parent=0 // pred_fallthru
    _
  // Predicated region
  $region22: #{_lambda_.2} parent=0 // pred_check
    _
  $region23: #{_lambda_.2} parent=0 // pred_check_branch
    %29 = sbr.rel (0) target = $region25
  $region24: #{_lambda_.2} parent=0 // pred_region
    _
  $region25: #{_lambda_.2} parent=0 // pred_fallthru
    _
  // Predicated region
  $region26: #{_lambda_.2} parent=0 // pred_check
    _
  $region27: #{_lambda_.2} parent=0 // pred_check_branch
    %31 = sbr.rel (0) target = $region29
  $region28: #{_lambda_.2} parent=0 // pred_region
    _
  $region29: #{_lambda_.2} parent=0 // pred_fallthru
    _
  // Predicated region
  $region30: #{_lambda_.2} parent=0 // pred_check
    _
  $region31: #{_lambda_.2} parent=0 // pred_check_branch
    %33 = sbr.rel (0) target = $region33
  $region32: #{_lambda_.2} parent=0 // pred_region
    _
  $region33: #{_lambda_.2} parent=0 // pred_fallthru
    _
  // Predicated region
  $region34: #{_lambda_.2} parent=0 // pred_check
    _
  $region35: #{_lambda_.2} parent=0 // pred_check_branch
    %35 = sbr.rel (0) target = $region37
  $region36: #{_lambda_.2} parent=0 // pred_region
    _
  $region37: #{_lambda_.2} parent=0 // pred_fallthru
    _
  // Predicated region
  $region38: #{_lambda_.2} parent=0 // pred_check
    _
  $region39: #{_lambda_.2} parent=0 // pred_check_branch
    %37 = sbr.rel (0) target = $region41
  $region40: #{_lambda_.2} parent=0 // pred_region
    _
  $region41: #{_lambda_.2} parent=0 // pred_fallthru
    _
  // Predicated region
  $region42: #{_lambda_.2} parent=0 // pred_check
    _
  $region43: #{_lambda_.2} parent=0 // pred_check_branch
    %39 = sbr.rel (0) target = $region45
  $region44: #{_lambda_.2} parent=0 // pred_region
    _
  $region45: #{_lambda_.2} parent=0 // pred_fallthru
    _
  // Predicated region
  $region46: #{_lambda_.2} parent=0 // pred_check
    _
  $region47: #{_lambda_.2} parent=0 // pred_check_branch
    %41 = sbr.rel (0) target = $region49
  $region48: #{_lambda_.2} parent=0 // pred_region
    _
  $region49: #{_lambda_.2} parent=0 // pred_fallthru
    _
  // Predicated region
  $region50: #{_lambda_.2} parent=0 // pred_check
    _
  $region51: #{_lambda_.2} parent=0 // pred_check_branch
    %43 = sbr.rel (0) target = $region53
  $region52: #{_lambda_.2} parent=0 // pred_region
    _
  $region53: #{_lambda_.2} parent=0 // pred_fallthru
    _
  %v45 = vld [vmem:[%s0] sm:$0xf]
  %v46 = vld [vmem:[%s0 + $0x4] sm:$0xf]
  %v47 = vld [vmem:[%s0 + $0x8] sm:$0xf]
  %v48 = vld [vmem:[%s0 + $0xc] sm:$0xf]
  %v49 = vld [vmem:[%s0 + $0x10] sm:$0xf]
  %v50 = vld [vmem:[%s0 + $0x14] sm:$0xf]
  %v51 = vld [vmem:[%s0 + $0x18] sm:$0xf]
  %v52 = vld [vmem:[%s0 + $0x1c] sm:$0xf]
  %v53 = vld [vmem:[%s2] sm:$0xf]
  %v54 = vld [vmem:[%s2 + $0x4] sm:$0xf]
  %v55 = vld [vmem:[%s3] sm:$0x1]
  %v57 = vlaneseq
  %v58 = vshrl.u32 %v57, 7
  %v59 = vsub.s32 0, %v58
  %v60 = vrot.slane %v55, %v59
  %v70 = vunpack.c.l.b16 %v45
  %v71 = vunpack.c.l.b16 %v46
  %v72 = vunpack.c.l.b16 %v47
  %v73 = vunpack.c.l.b16 %v48
  %v74 = vunpack.c.l.b16 %v49
  %v75 = vunpack.c.l.b16 %v50
  %v76 = vunpack.c.l.b16 %v51
  %v77 = vunpack.c.l.b16 %v52
  %v78 = vpack.c.b16 %v71, %v70
  %v79 = vpack.c.b16 %v73, %v72
  %v80 = vpack.c.b16 %v75, %v74
  %v81 = vpack.c.b16 %v77, %v76
  %v84 = vunpack.c.l.b16 %v53
  %v85 = vunpack.c.l.b16 %v54
  %v86 = vpack.c.b16 %v85, %v84
  %vm88 = vcmask 130048
  %v90 = vsel %vm88, %v78, 0
  %v93 = vsel %vm88, %v79, 0
  %v96 = vsel %vm88, %v80, 0
  %v99 = vsel %vm88, %v81, 0
  %101 = vmatprep.subr.bf16.mxu0 0
  %102 = vmatpush1.bf16.msra.mxu0 0
  %103 = vmatprep.subr.bf16.mxu0 0
  %104 = vmatpush1.bf16.msra.mxu0 0
  %105 = vmatprep.subr.bf16.mxu0 0
  %106 = vmatpush1.bf16.msra.mxu0 0
  %107 = vmatprep.subr.bf16.mxu0 0
  %108 = vmatpush1.bf16.msra.mxu0 0
  %109 = vmatprep.subr.bf16.mxu0 0
  %110 = vmatpush1.bf16.msra.mxu0 0
  %111 = vmatprep.subr.bf16.mxu0 0
  %112 = vmatpush1.bf16.msra.mxu0 0
  %113 = vmatprep.subr.bf16.mxu0 0
  %114 = vmatpush1.bf16.msra.mxu0 0
  %115 = vmatprep.subr.bf16.mxu0 0
  %116 = vmatpush1.bf16.msra.mxu0 %v86
  %117 = vmatprep.subr.bf16.mxu0 0
  %118 = vmatpush2.bf16.msra.mxu0 0
  %119 = vmatprep.subr.bf16.mxu0 0
  %120 = vmatpush2.bf16.msra.mxu0 0
  %121 = vmatprep.subr.bf16.mxu0 0
  %122 = vmatpush2.bf16.msra.mxu0 0
  %123 = vmatprep.subr.bf16.mxu0 0
  %124 = vmatpush2.bf16.msra.mxu0 0
  %125 = vmatprep.subr.bf16.mxu0 0
  %126 = vmatpush2.bf16.msra.mxu0 0
  %127 = vmatprep.subr.bf16.mxu0 0
  %128 = vmatpush2.bf16.msra.mxu0 0
  %129 = vmatprep.subr.bf16.mxu0 0
  %130 = vmatpush2.bf16.msra.mxu0 0
  %131 = vmatprep.subr.bf16.mxu0 0
  %132 = vmatpush2.bf16.msra.mxu0 0
  %133 = vmatprep.mubr.bf16.mxu0 0
  %134 = vmatmul.mubr.bf16.gmra.mxu0 %v90
  %v135 = vpop.f32.mrf.mxu0
  %v136 = vadd.f32 %v60, %v135
  %v137 = vpop.f32.mrf.mxu0
  %v138 = vpop.f32.mrf.mxu0
  %v139 = vadd.f32 %v60, %v138
  %v140 = vpop.f32.mrf.mxu0
  %141 = vmatprep.mubr.bf16.mxu0 0
  %142 = vmatmul.mubr.bf16.gmra.mxu0 %v93
  %v143 = vpop.f32.mrf.mxu0
  %v144 = vadd.f32 %v60, %v143
  %v145 = vpop.f32.mrf.mxu0
  %v146 = vpop.f32.mrf.mxu0
  %v147 = vadd.f32 %v60, %v146
  %v148 = vpop.f32.mrf.mxu0
  %149 = vmatprep.mubr.bf16.mxu0 0
  %150 = vmatmul.mubr.bf16.gmra.mxu0 %v96
  %v151 = vpop.f32.mrf.mxu0
  %v152 = vadd.f32 %v60, %v151
  %v153 = vpop.f32.mrf.mxu0
  %v154 = vpop.f32.mrf.mxu0
  %v155 = vadd.f32 %v60, %v154
  %v156 = vpop.f32.mrf.mxu0
  %157 = vmatprep.mubr.bf16.mxu0 0
  %158 = vmatmul.mubr.bf16.gmra.mxu0 %v99
  %v159 = vpop.f32.mrf.mxu0
  %v160 = vadd.f32 %v60, %v159
  %v161 = vpop.f32.mrf.mxu0
  %v162 = vpop.f32.mrf.mxu0
  %v163 = vadd.f32 %v60, %v162
  %v164 = vpop.f32.mrf.mxu0
  %165 = vdwg.mxu0
  %v166 = vmax.f32 %v136, 0.0
  %v167 = vmax.f32 %v139, 0.0
  %v168 = vmax.f32 %v144, 0.0
  %v169 = vmax.f32 %v147, 0.0
  %v170 = vmax.f32 %v152, 0.0
  %v171 = vmax.f32 %v155, 0.0
  %v172 = vmax.f32 %v160, 0.0
  %v173 = vmax.f32 %v163, 0.0
  %v174 = vld [vmem:[%s4] sm:$0xf]
  %v175 = vld [vmem:[%s4 + $0x4] sm:$0xf]
  %v176 = vld [vmem:[%s4 + $0x8] sm:$0xf]
  %v177 = vld [vmem:[%s4 + $0xc] sm:$0xf]
  %v178 = vpack.c.bf16 %v167, %v166
  %v179 = vpack.c.bf16 %v169, %v168
  %v180 = vpack.c.bf16 %v171, %v170
  %v181 = vpack.c.bf16 %v173, %v172
  %v182 = vld [vmem:[%s5] sm:$0x1]
  %v184 = vlaneseq
  %v185 = vshrl.u32 %v184, 7
  %v186 = vsub.s32 0, %v185
  %v187 = vrot.slane %v182, %v186
  %v193 = vunpack.c.l.b16 %v174
  %v194 = vunpack.c.l.b16 %v175
  %v195 = vunpack.c.l.b16 %v176
  %v196 = vunpack.c.l.b16 %v177
  %v197 = vpack.c.b16 %v194, %v193
  %v198 = vpack.c.b16 %v196, %v195
  %vm201 = vcmask 261120
  %v203 = vsel %vm201, %v178, 0
  %v206 = vsel %vm201, %v179, 0
  %v209 = vsel %vm201, %v180, 0
  %v212 = vsel %vm201, %v181, 0
  %214 = vmatprep.subr.bf16.mxu0 0
  %215 = vmatpush1.bf16.msra.mxu0 0
  %216 = vmatprep.subr.bf16.mxu0 0
  %217 = vmatpush1.bf16.msra.mxu0 0
  %218 = vmatprep.subr.bf16.mxu0 0
  %219 = vmatpush1.bf16.msra.mxu0 0
  %220 = vmatprep.subr.bf16.mxu0 0
  %221 = vmatpush1.bf16.msra.mxu0 0
  %222 = vmatprep.subr.bf16.mxu0 0
  %223 = vmatpush1.bf16.msra.mxu0 0
  %224 = vmatprep.subr.bf16.mxu0 0
  %225 = vmatpush1.bf16.msra.mxu0 0
  %226 = vmatprep.subr.bf16.mxu0 0
  %227 = vmatpush1.bf16.msra.mxu0 %v198
  %228 = vmatprep.subr.bf16.mxu0 0
  %229 = vmatpush1.bf16.msra.mxu0 %v197
  %230 = vmatprep.subr.bf16.mxu0 0
  %231 = vmatpush2.bf16.msra.mxu0 0
  %232 = vmatprep.subr.bf16.mxu0 0
  %233 = vmatpush2.bf16.msra.mxu0 0
  %234 = vmatprep.subr.bf16.mxu0 0
  %235 = vmatpush2.bf16.msra.mxu0 0
  %236 = vmatprep.subr.bf16.mxu0 0
  %237 = vmatpush2.bf16.msra.mxu0 0
  %238 = vmatprep.subr.bf16.mxu0 0
  %239 = vmatpush2.bf16.msra.mxu0 0
  %240 = vmatprep.subr.bf16.mxu0 0
  %241 = vmatpush2.bf16.msra.mxu0 0
  %242 = vmatprep.subr.bf16.mxu0 0
  %243 = vmatpush2.bf16.msra.mxu0 0
  %244 = vmatprep.subr.bf16.mxu0 0
  %245 = vmatpush2.bf16.msra.mxu0 0
  %246 = vmatprep.mubr.bf16.mxu0 0
  %247 = vmatmul.mubr.bf16.gmra.mxu0 %v203
  %v248 = vpop.f32.mrf.mxu0
  %v249 = vadd.f32 %v187, %v248
  %v250 = vpop.f32.mrf.mxu0
  %v251 = vpop.f32.mrf.mxu0
  %v252 = vadd.f32 %v187, %v251
  %v253 = vpop.f32.mrf.mxu0
  %254 = vmatprep.mubr.bf16.mxu0 0
  %255 = vmatmul.mubr.bf16.gmra.mxu0 %v206
  %v256 = vpop.f32.mrf.mxu0
  %v257 = vadd.f32 %v187, %v256
  %v258 = vpop.f32.mrf.mxu0
  %v259 = vpop.f32.mrf.mxu0
  %v260 = vadd.f32 %v187, %v259
  %v261 = vpop.f32.mrf.mxu0
  %262 = vmatprep.mubr.bf16.mxu0 0
  %263 = vmatmul.mubr.bf16.gmra.mxu0 %v209
  %v264 = vpop.f32.mrf.mxu0
  %v265 = vadd.f32 %v187, %v264
  %v266 = vpop.f32.mrf.mxu0
  %v267 = vpop.f32.mrf.mxu0
  %v268 = vadd.f32 %v187, %v267
  %v269 = vpop.f32.mrf.mxu0
  %270 = vmatprep.mubr.bf16.mxu0 0
  %271 = vmatmul.mubr.bf16.gmra.mxu0 %v212
  %v272 = vpop.f32.mrf.mxu0
  %v273 = vadd.f32 %v187, %v272
  %v274 = vpop.f32.mrf.mxu0
  %v275 = vpop.f32.mrf.mxu0
  %v276 = vadd.f32 %v187, %v275
  %v277 = vpop.f32.mrf.mxu0
  %278 = vdwg.mxu0
  %v279 = vmax.f32 %v249, 0.0
  %v280 = vmax.f32 %v252, 0.0
  %v281 = vmax.f32 %v257, 0.0
  %v282 = vmax.f32 %v260, 0.0
  %v283 = vmax.f32 %v265, 0.0
  %v284 = vmax.f32 %v268, 0.0
  %v285 = vmax.f32 %v273, 0.0
  %v286 = vmax.f32 %v276, 0.0
  %v287 = vld [vmem:[%s1] sm:$0xff]
  %v288 = vsub.s32 %v287, 1
  %v289 = vld [vmem:[%s6] sm:$0xf]
  %v290 = vld [vmem:[%s6 + $0x4] sm:$0xf]
  %v291 = vld [vmem:[%s6 + $0x8] sm:$0xf]
  %v292 = vld [vmem:[%s6 + $0xc] sm:$0xf]
  %v293 = vld [vmem:[%s7] sm:$0xf]
  %v294 = vld [vmem:[%s7 + $0x4] sm:$0xf]
  %v295 = vld [vmem:[%s7 + $0x8] sm:$0xf]
  %v296 = vld [vmem:[%s7 + $0xc] sm:$0xf]
  %v297 = vld [vmem:[%s8] sm:$0x1]
  %v298 = vpack.c.bf16 %v280, %v279
  %v299 = vpack.c.bf16 %v282, %v281
  %v300 = vpack.c.bf16 %v284, %v283
  %v301 = vpack.c.bf16 %v286, %v285
  %v303 = vlaneseq
  %v304 = vshrl.u32 %v303, 7
  %v305 = vsub.s32 0, %v304
  %v306 = vrot.slane %v297, %v305
  %v312 = vunpack.c.l.b16 %v289
  %v313 = vunpack.c.l.b16 %v290
  %v314 = vunpack.c.l.b16 %v291
  %v315 = vunpack.c.l.b16 %v292
  %v316 = vpack.c.b16 %v313, %v312
  %v317 = vpack.c.b16 %v315, %v314
  %v321 = vsel %vm201, %v298, 0
  %v324 = vsel %vm201, %v299, 0
  %v327 = vsel %vm201, %v300, 0
  %v330 = vsel %vm201, %v301, 0
  %332 = vmatprep.subr.bf16.mxu0 0
  %333 = vmatpush1.bf16.msra.mxu0 0
  %334 = vmatprep.subr.bf16.mxu0 0
  %335 = vmatpush1.bf16.msra.mxu0 0
  %336 = vmatprep.subr.bf16.mxu0 0
  %337 = vmatpush1.bf16.msra.mxu0 0
  %338 = vmatprep.subr.bf16.mxu0 0
  %339 = vmatpush1.bf16.msra.mxu0 0
  %340 = vmatprep.subr.bf16.mxu0 0
  %341 = vmatpush1.bf16.msra.mxu0 0
  %342 = vmatprep.subr.bf16.mxu0 0
  %343 = vmatpush1.bf16.msra.mxu0 0
  %344 = vmatprep.subr.bf16.mxu0 0
  %345 = vmatpush1.bf16.msra.mxu0 %v317
  %346 = vmatprep.subr.bf16.mxu0 0
  %347 = vmatpush1.bf16.msra.mxu0 %v316
  %348 = vmatprep.subr.bf16.mxu0 0
  %349 = vmatpush2.bf16.msra.mxu0 0
  %350 = vmatprep.subr.bf16.mxu0 0
  %351 = vmatpush2.bf16.msra.mxu0 0
  %352 = vmatprep.subr.bf16.mxu0 0
  %353 = vmatpush2.bf16.msra.mxu0 0
  %354 = vmatprep.subr.bf16.mxu0 0
  %355 = vmatpush2.bf16.msra.mxu0 0
  %356 = vmatprep.subr.bf16.mxu0 0
  %357 = vmatpush2.bf16.msra.mxu0 0
  %358 = vmatprep.subr.bf16.mxu0 0
  %359 = vmatpush2.bf16.msra.mxu0 0
  %360 = vmatprep.subr.bf16.mxu0 0
  %361 = vmatpush2.bf16.msra.mxu0 0
  %362 = vmatprep.subr.bf16.mxu0 0
  %363 = vmatpush2.bf16.msra.mxu0 0
  %364 = vmatprep.mubr.bf16.mxu0 0
  %365 = vmatmul.mubr.bf16.gmra.mxu0 %v321
  %v366 = vpop.f32.mrf.mxu0
  %v367 = vadd.f32 %v306, %v366
  %v368 = vpop.f32.mrf.mxu0
  %v369 = vpop.f32.mrf.mxu0
  %v370 = vadd.f32 %v306, %v369
  %v371 = vpop.f32.mrf.mxu0
  %372 = vmatprep.mubr.bf16.mxu0 0
  %373 = vmatmul.mubr.bf16.gmra.mxu0 %v324
  %v374 = vpop.f32.mrf.mxu0
  %v375 = vadd.f32 %v306, %v374
  %v376 = vpop.f32.mrf.mxu0
  %v377 = vpop.f32.mrf.mxu0
  %v378 = vadd.f32 %v306, %v377
  %v379 = vpop.f32.mrf.mxu0
  %380 = vmatprep.mubr.bf16.mxu0 0
  %381 = vmatmul.mubr.bf16.gmra.mxu0 %v327
  %v382 = vpop.f32.mrf.mxu0
  %v383 = vadd.f32 %v306, %v382
  %v384 = vpop.f32.mrf.mxu0
  %v385 = vpop.f32.mrf.mxu0
  %v386 = vadd.f32 %v306, %v385
  %v387 = vpop.f32.mrf.mxu0
  %388 = vmatprep.mubr.bf16.mxu0 0
  %389 = vmatmul.mubr.bf16.gmra.mxu0 %v330
  %v390 = vpop.f32.mrf.mxu0
  %v391 = vadd.f32 %v306, %v390
  %v392 = vpop.f32.mrf.mxu0
  %v393 = vpop.f32.mrf.mxu0
  %v394 = vadd.f32 %v306, %v393
  %v395 = vpop.f32.mrf.mxu0
  %396 = vdwg.mxu0
  %v401 = vunpack.c.l.b16 %v293
  %v402 = vunpack.c.l.b16 %v294
  %v403 = vunpack.c.l.b16 %v295
  %v404 = vunpack.c.l.b16 %v296
  %v405 = vpack.c.b16 %v402, %v401
  %v406 = vpack.c.b16 %v404, %v403
  %v410 = vsel %vm201, 0, 0
  %412 = vmatprep.subr.bf16.mxu0 0
  %413 = vmatpush1.bf16.msra.mxu0 0
  %414 = vmatprep.subr.bf16.mxu0 0
  %415 = vmatpush1.bf16.msra.mxu0 0
  %416 = vmatprep.subr.bf16.mxu0 0
  %417 = vmatpush1.bf16.msra.mxu0 0
  %418 = vmatprep.subr.bf16.mxu0 0
  %419 = vmatpush1.bf16.msra.mxu0 0
  %420 = vmatprep.subr.bf16.mxu0 0
  %421 = vmatpush1.bf16.msra.mxu0 0
  %422 = vmatprep.subr.bf16.mxu0 0
  %423 = vmatpush1.bf16.msra.mxu0 0
  %424 = vmatprep.subr.bf16.mxu0 0
  %425 = vmatpush1.bf16.msra.mxu0 %v406
  %426 = vmatprep.subr.bf16.mxu0 0
  %427 = vmatpush1.bf16.msra.mxu0 %v405
  %428 = vmatprep.subr.bf16.mxu0 0
  %429 = vmatpush2.bf16.msra.mxu0 0
  %430 = vmatprep.subr.bf16.mxu0 0
  %431 = vmatpush2.bf16.msra.mxu0 0
  %432 = vmatprep.subr.bf16.mxu0 0
  %433 = vmatpush2.bf16.msra.mxu0 0
  %434 = vmatprep.subr.bf16.mxu0 0
  %435 = vmatpush2.bf16.msra.mxu0 0
  %436 = vmatprep.subr.bf16.mxu0 0
  %437 = vmatpush2.bf16.msra.mxu0 0
  %438 = vmatprep.subr.bf16.mxu0 0
  %439 = vmatpush2.bf16.msra.mxu0 0
  %440 = vmatprep.subr.bf16.mxu0 0
  %441 = vmatpush2.bf16.msra.mxu0 0
  %442 = vmatprep.subr.bf16.mxu0 0
  %443 = vmatpush2.bf16.msra.mxu0 0
  %444 = vmatprep.mubr.bf16.mxu0 0
  %445 = vmatmul.mubr.bf16.gmra.mxu0 %v410
  %v446 = vpop.f32.mrf.mxu0
  %v447 = vadd.f32 0.0, %v446
  %v448 = vpop.f32.mrf.mxu0
  %v449 = vpop.f32.mrf.mxu0
  %v450 = vpop.f32.mrf.mxu0
  %451 = vdwg.mxu0
  %v452 = vadd.f32 %v367, %v447
  %v453 = vtanh.pop %v452
  %454 = vst.msk [vmem:[#allocation2] sm:$0xff] %vm201, %v453
  %v455 = vpack.c.bf16 %v453, %v453
  %v457 = vsel %vm201, %v455, 0
  %459 = vmatprep.subr.bf16.mxu0 0
  %460 = vmatpush1.bf16.msra.mxu0 0
  %461 = vmatprep.subr.bf16.mxu0 0
  %462 = vmatpush1.bf16.msra.mxu0 0
  %463 = vmatprep.subr.bf16.mxu0 0
  %464 = vmatpush1.bf16.msra.mxu0 0
  %465 = vmatprep.subr.bf16.mxu0 0
  %466 = vmatpush1.bf16.msra.mxu0 0
  %467 = vmatprep.subr.bf16.mxu0 0
  %468 = vmatpush1.bf16.msra.mxu0 0
  %469 = vmatprep.subr.bf16.mxu0 0
  %470 = vmatpush1.bf16.msra.mxu0 0
  %471 = vmatprep.subr.bf16.mxu0 0
  %472 = vmatpush1.bf16.msra.mxu0 %v406
  %473 = vmatprep.subr.bf16.mxu0 0
  %474 = vmatpush1.bf16.msra.mxu0 %v405
  %475 = vmatprep.subr.bf16.mxu0 0
  %476 = vmatpush2.bf16.msra.mxu0 0
  %477 = vmatprep.subr.bf16.mxu0 0
  %478 = vmatpush2.bf16.msra.mxu0 0
  %479 = vmatprep.subr.bf16.mxu0 0
  %480 = vmatpush2.bf16.msra.mxu0 0
  %481 = vmatprep.subr.bf16.mxu0 0
  %482 = vmatpush2.bf16.msra.mxu0 0
  %483 = vmatprep.subr.bf16.mxu0 0
  %484 = vmatpush2.bf16.msra.mxu0 0
  %485 = vmatprep.subr.bf16.mxu0 0
  %486 = vmatpush2.bf16.msra.mxu0 0
  %487 = vmatprep.subr.bf16.mxu0 0
  %488 = vmatpush2.bf16.msra.mxu0 0
  %489 = vmatprep.subr.bf16.mxu0 0
  %490 = vmatpush2.bf16.msra.mxu0 0
  %491 = vmatprep.mubr.bf16.mxu0 0
  %492 = vmatmul.mubr.bf16.gmra.mxu0 %v457
  %v493 = vpop.f32.mrf.mxu0
  %v494 = vadd.f32 0.0, %v493
  %v495 = vpop.f32.mrf.mxu0
  %v496 = vpop.f32.mrf.mxu0
  %v497 = vpop.f32.mrf.mxu0
  %498 = vdwg.mxu0
  %v499 = vadd.f32 %v370, %v494
  %v500 = vtanh.pop %v499
  %501 = vst.msk [vmem:[#allocation2 + $0x8] sm:$0xff] %vm201, %v500
  %v502 = vpack.c.bf16 %v500, %v500
  %v504 = vsel %vm201, %v502, 0
  %506 = vmatprep.subr.bf16.mxu0 0
  %507 = vmatpush1.bf16.msra.mxu0 0
  %508 = vmatprep.subr.bf16.mxu0 0
  %509 = vmatpush1.bf16.msra.mxu0 0
  %510 = vmatprep.subr.bf16.mxu0 0
  %511 = vmatpush1.bf16.msra.mxu0 0
  %512 = vmatprep.subr.bf16.mxu0 0
  %513 = vmatpush1.bf16.msra.mxu0 0
  %514 = vmatprep.subr.bf16.mxu0 0
  %515 = vmatpush1.bf16.msra.mxu0 0
  %516 = vmatprep.subr.bf16.mxu0 0
  %517 = vmatpush1.bf16.msra.mxu0 0
  %518 = vmatprep.subr.bf16.mxu0 0
  %519 = vmatpush1.bf16.msra.mxu0 %v406
  %520 = vmatprep.subr.bf16.mxu0 0
  %521 = vmatpush1.bf16.msra.mxu0 %v405
  %522 = vmatprep.subr.bf16.mxu0 0
  %523 = vmatpush2.bf16.msra.mxu0 0
  %524 = vmatprep.subr.bf16.mxu0 0
  %525 = vmatpush2.bf16.msra.mxu0 0
  %526 = vmatprep.subr.bf16.mxu0 0
  %527 = vmatpush2.bf16.msra.mxu0 0
  %528 = vmatprep.subr.bf16.mxu0 0
  %529 = vmatpush2.bf16.msra.mxu0 0
  %530 = vmatprep.subr.bf16.mxu0 0
  %531 = vmatpush2.bf16.msra.mxu0 0
  %532 = vmatprep.subr.bf16.mxu0 0
  %533 = vmatpush2.bf16.msra.mxu0 0
  %534 = vmatprep.subr.bf16.mxu0 0
  %535 = vmatpush2.bf16.msra.mxu0 0
  %536 = vmatprep.subr.bf16.mxu0 0
  %537 = vmatpush2.bf16.msra.mxu0 0
  %538 = vmatprep.mubr.bf16.mxu0 0
  %539 = vmatmul.mubr.bf16.gmra.mxu0 %v504
  %v540 = vpop.f32.mrf.mxu0
  %v541 = vadd.f32 0.0, %v540
  %v542 = vpop.f32.mrf.mxu0
  %v543 = vpop.f32.mrf.mxu0
  %v544 = vpop.f32.mrf.mxu0
  %545 = vdwg.mxu0
  %v546 = vadd.f32 %v375, %v541
  %v547 = vtanh.pop %v546
  %548 = vst.msk [vmem:[#allocation2 + $0x10] sm:$0xff] %vm201, %v547
  %v549 = vpack.c.bf16 %v547, %v547
  %v551 = vsel %vm201, %v549, 0
  %553 = vmatprep.subr.bf16.mxu0 0
  %554 = vmatpush1.bf16.msra.mxu0 0
  %555 = vmatprep.subr.bf16.mxu0 0
  %556 = vmatpush1.bf16.msra.mxu0 0
  %557 = vmatprep.subr.bf16.mxu0 0
  %558 = vmatpush1.bf16.msra.mxu0 0
  %559 = vmatprep.subr.bf16.mxu0 0
  %560 = vmatpush1.bf16.msra.mxu0 0
  %561 = vmatprep.subr.bf16.mxu0 0
  %562 = vmatpush1.bf16.msra.mxu0 0
  %563 = vmatprep.subr.bf16.mxu0 0
  %564 = vmatpush1.bf16.msra.mxu0 0
  %565 = vmatprep.subr.bf16.mxu0 0
  %566 = vmatpush1.bf16.msra.mxu0 %v406
  %567 = vmatprep.subr.bf16.mxu0 0
  %568 = vmatpush1.bf16.msra.mxu0 %v405
  %569 = vmatprep.subr.bf16.mxu0 0
  %570 = vmatpush2.bf16.msra.mxu0 0
  %571 = vmatprep.subr.bf16.mxu0 0
  %572 = vmatpush2.bf16.msra.mxu0 0
  %573 = vmatprep.subr.bf16.mxu0 0
  %574 = vmatpush2.bf16.msra.mxu0 0
  %575 = vmatprep.subr.bf16.mxu0 0
  %576 = vmatpush2.bf16.msra.mxu0 0
  %577 = vmatprep.subr.bf16.mxu0 0
  %578 = vmatpush2.bf16.msra.mxu0 0
  %579 = vmatprep.subr.bf16.mxu0 0
  %580 = vmatpush2.bf16.msra.mxu0 0
  %581 = vmatprep.subr.bf16.mxu0 0
  %582 = vmatpush2.bf16.msra.mxu0 0
  %583 = vmatprep.subr.bf16.mxu0 0
  %584 = vmatpush2.bf16.msra.mxu0 0
  %585 = vmatprep.mubr.bf16.mxu0 0
  %586 = vmatmul.mubr.bf16.gmra.mxu0 %v551
  %v587 = vpop.f32.mrf.mxu0
  %v588 = vadd.f32 0.0, %v587
  %v589 = vpop.f32.mrf.mxu0
  %v590 = vpop.f32.mrf.mxu0
  %v591 = vpop.f32.mrf.mxu0
  %592 = vdwg.mxu0
  %v593 = vadd.f32 %v378, %v588
  %v594 = vtanh.pop %v593
  %595 = vst.msk [vmem:[#allocation2 + $0x18] sm:$0xff] %vm201, %v594
  %v596 = vpack.c.bf16 %v594, %v594
  %v598 = vsel %vm201, %v596, 0
  %600 = vmatprep.subr.bf16.mxu0 0
  %601 = vmatpush1.bf16.msra.mxu0 0
  %602 = vmatprep.subr.bf16.mxu0 0
  %603 = vmatpush1.bf16.msra.mxu0 0
  %604 = vmatprep.subr.bf16.mxu0 0
  %605 = vmatpush1.bf16.msra.mxu0 0
  %606 = vmatprep.subr.bf16.mxu0 0
  %607 = vmatpush1.bf16.msra.mxu0 0
  %608 = vmatprep.subr.bf16.mxu0 0
  %609 = vmatpush1.bf16.msra.mxu0 0
  %610 = vmatprep.subr.bf16.mxu0 0
  %611 = vmatpush1.bf16.msra.mxu0 0
  %612 = vmatprep.subr.bf16.mxu0 0
  %613 = vmatpush1.bf16.msra.mxu0 %v406
  %614 = vmatprep.subr.bf16.mxu0 0
  %615 = vmatpush1.bf16.msra.mxu0 %v405
  %616 = vmatprep.subr.bf16.mxu0 0
  %617 = vmatpush2.bf16.msra.mxu0 0
  %618 = vmatprep.subr.bf16.mxu0 0
  %619 = vmatpush2.bf16.msra.mxu0 0
  %620 = vmatprep.subr.bf16.mxu0 0
  %621 = vmatpush2.bf16.msra.mxu0 0
  %622 = vmatprep.subr.bf16.mxu0 0
  %623 = vmatpush2.bf16.msra.mxu0 0
  %624 = vmatprep.subr.bf16.mxu0 0
  %625 = vmatpush2.bf16.msra.mxu0 0
  %626 = vmatprep.subr.bf16.mxu0 0
  %627 = vmatpush2.bf16.msra.mxu0 0
  %628 = vmatprep.subr.bf16.mxu0 0
  %629 = vmatpush2.bf16.msra.mxu0 0
  %630 = vmatprep.subr.bf16.mxu0 0
  %631 = vmatpush2.bf16.msra.mxu0 0
  %632 = vmatprep.mubr.bf16.mxu0 0
  %633 = vmatmul.mubr.bf16.gmra.mxu0 %v598
  %v634 = vpop.f32.mrf.mxu0
  %v635 = vadd.f32 0.0, %v634
  %v636 = vpop.f32.mrf.mxu0
  %v637 = vpop.f32.mrf.mxu0
  %v638 = vpop.f32.mrf.mxu0
  %639 = vdwg.mxu0
  %v640 = vadd.f32 %v383, %v635
  %v641 = vtanh.pop %v640
  %642 = vst.msk [vmem:[#allocation2 + $0x20] sm:$0xff] %vm201, %v641
  %v643 = vpack.c.bf16 %v641, %v641
  %v645 = vsel %vm201, %v643, 0
  %647 = vmatprep.subr.bf16.mxu0 0
  %648 = vmatpush1.bf16.msra.mxu0 0
  %649 = vmatprep.subr.bf16.mxu0 0
  %650 = vmatpush1.bf16.msra.mxu0 0
  %651 = vmatprep.subr.bf16.mxu0 0
  %652 = vmatpush1.bf16.msra.mxu0 0
  %653 = vmatprep.subr.bf16.mxu0 0
  %654 = vmatpush1.bf16.msra.mxu0 0
  %655 = vmatprep.subr.bf16.mxu0 0
  %656 = vmatpush1.bf16.msra.mxu0 0
  %657 = vmatprep.subr.bf16.mxu0 0
  %658 = vmatpush1.bf16.msra.mxu0 0
  %659 = vmatprep.subr.bf16.mxu0 0
  %660 = vmatpush1.bf16.msra.mxu0 %v406
  %661 = vmatprep.subr.bf16.mxu0 0
  %662 = vmatpush1.bf16.msra.mxu0 %v405
  %663 = vmatprep.subr.bf16.mxu0 0
  %664 = vmatpush2.bf16.msra.mxu0 0
  %665 = vmatprep.subr.bf16.mxu0 0
  %666 = vmatpush2.bf16.msra.mxu0 0
  %667 = vmatprep.subr.bf16.mxu0 0
  %668 = vmatpush2.bf16.msra.mxu0 0
  %669 = vmatprep.subr.bf16.mxu0 0
  %670 = vmatpush2.bf16.msra.mxu0 0
  %671 = vmatprep.subr.bf16.mxu0 0
  %672 = vmatpush2.bf16.msra.mxu0 0
  %673 = vmatprep.subr.bf16.mxu0 0
  %674 = vmatpush2.bf16.msra.mxu0 0
  %675 = vmatprep.subr.bf16.mxu0 0
  %676 = vmatpush2.bf16.msra.mxu0 0
  %677 = vmatprep.subr.bf16.mxu0 0
  %678 = vmatpush2.bf16.msra.mxu0 0
  %679 = vmatprep.mubr.bf16.mxu0 0
  %680 = vmatmul.mubr.bf16.gmra.mxu0 %v645
  %v681 = vpop.f32.mrf.mxu0
  %v682 = vadd.f32 0.0, %v681
  %v683 = vpop.f32.mrf.mxu0
  %v684 = vpop.f32.mrf.mxu0
  %v685 = vpop.f32.mrf.mxu0
  %686 = vdwg.mxu0
  %v687 = vadd.f32 %v386, %v682
  %v688 = vtanh.pop %v687
  %689 = vst.msk [vmem:[#allocation2 + $0x28] sm:$0xff] %vm201, %v688
  %v690 = vpack.c.bf16 %v688, %v688
  %v692 = vsel %vm201, %v690, 0
  %694 = vmatprep.subr.bf16.mxu0 0
  %695 = vmatpush1.bf16.msra.mxu0 0
  %696 = vmatprep.subr.bf16.mxu0 0
  %697 = vmatpush1.bf16.msra.mxu0 0
  %698 = vmatprep.subr.bf16.mxu0 0
  %699 = vmatpush1.bf16.msra.mxu0 0
  %700 = vmatprep.subr.bf16.mxu0 0
  %701 = vmatpush1.bf16.msra.mxu0 0
  %702 = vmatprep.subr.bf16.mxu0 0
  %703 = vmatpush1.bf16.msra.mxu0 0
  %704 = vmatprep.subr.bf16.mxu0 0
  %705 = vmatpush1.bf16.msra.mxu0 0
  %706 = vmatprep.subr.bf16.mxu0 0
  %707 = vmatpush1.bf16.msra.mxu0 %v406
  %708 = vmatprep.subr.bf16.mxu0 0
  %709 = vmatpush1.bf16.msra.mxu0 %v405
  %710 = vmatprep.subr.bf16.mxu0 0
  %711 = vmatpush2.bf16.msra.mxu0 0
  %712 = vmatprep.subr.bf16.mxu0 0
  %713 = vmatpush2.bf16.msra.mxu0 0
  %714 = vmatprep.subr.bf16.mxu0 0
  %715 = vmatpush2.bf16.msra.mxu0 0
  %716 = vmatprep.subr.bf16.mxu0 0
  %717 = vmatpush2.bf16.msra.mxu0 0
  %718 = vmatprep.subr.bf16.mxu0 0
  %719 = vmatpush2.bf16.msra.mxu0 0
  %720 = vmatprep.subr.bf16.mxu0 0
  %721 = vmatpush2.bf16.msra.mxu0 0
  %722 = vmatprep.subr.bf16.mxu0 0
  %723 = vmatpush2.bf16.msra.mxu0 0
  %724 = vmatprep.subr.bf16.mxu0 0
  %725 = vmatpush2.bf16.msra.mxu0 0
  %726 = vmatprep.mubr.bf16.mxu0 0
  %727 = vmatmul.mubr.bf16.gmra.mxu0 %v692
  %v728 = vpop.f32.mrf.mxu0
  %v729 = vadd.f32 0.0, %v728
  %v730 = vpop.f32.mrf.mxu0
  %v731 = vpop.f32.mrf.mxu0
  %v732 = vpop.f32.mrf.mxu0
  %733 = vdwg.mxu0
  %v734 = vadd.f32 %v391, %v729
  %v735 = vtanh.pop %v734
  %736 = vst.msk [vmem:[#allocation2 + $0x30] sm:$0xff] %vm201, %v735
  %v737 = vpack.c.bf16 %v735, %v735
  %v739 = vsel %vm201, %v737, 0
  %741 = vmatprep.subr.bf16.mxu0 0
  %742 = vmatpush1.bf16.msra.mxu0 0
  %743 = vmatprep.subr.bf16.mxu0 0
  %744 = vmatpush1.bf16.msra.mxu0 0
  %745 = vmatprep.subr.bf16.mxu0 0
  %746 = vmatpush1.bf16.msra.mxu0 0
  %747 = vmatprep.subr.bf16.mxu0 0
  %748 = vmatpush1.bf16.msra.mxu0 0
  %749 = vmatprep.subr.bf16.mxu0 0
  %750 = vmatpush1.bf16.msra.mxu0 0
  %751 = vmatprep.subr.bf16.mxu0 0
  %752 = vmatpush1.bf16.msra.mxu0 0
  %753 = vmatprep.subr.bf16.mxu0 0
  %754 = vmatpush1.bf16.msra.mxu0 %v406
  %755 = vmatprep.subr.bf16.mxu0 0
  %756 = vmatpush1.bf16.msra.mxu0 %v405
  %757 = vmatprep.subr.bf16.mxu0 0
  %758 = vmatpush2.bf16.msra.mxu0 0
  %759 = vmatprep.subr.bf16.mxu0 0
  %760 = vmatpush2.bf16.msra.mxu0 0
  %761 = vmatprep.subr.bf16.mxu0 0
  %762 = vmatpush2.bf16.msra.mxu0 0
  %763 = vmatprep.subr.bf16.mxu0 0
  %764 = vmatpush2.bf16.msra.mxu0 0
  %765 = vmatprep.subr.bf16.mxu0 0
  %766 = vmatpush2.bf16.msra.mxu0 0
  %767 = vmatprep.subr.bf16.mxu0 0
  %768 = vmatpush2.bf16.msra.mxu0 0
  %769 = vmatprep.subr.bf16.mxu0 0
  %770 = vmatpush2.bf16.msra.mxu0 0
  %771 = vmatprep.subr.bf16.mxu0 0
  %772 = vmatpush2.bf16.msra.mxu0 0
  %773 = vmatprep.mubr.bf16.mxu0 0
  %774 = vmatmul.mubr.bf16.gmra.mxu0 %v739
  %v775 = vpop.f32.mrf.mxu0
  %v776 = vadd.f32 0.0, %v775
  %v777 = vpop.f32.mrf.mxu0
  %v778 = vpop.f32.mrf.mxu0
  %v779 = vpop.f32.mrf.mxu0
  %780 = vdwg.mxu0
  %v781 = vadd.f32 %v394, %v776
  %v782 = vtanh.pop %v781
  %783 = vst.msk [vmem:[#allocation2 + $0x38] sm:$0xff] %vm201, %v782
  %v784 = vld [vmem:[#allocation2] sm:$0xff]
  %v785 = vld [vmem:[#allocation2 + $0x8] sm:$0xff]
  %v786 = vld [vmem:[#allocation2 + $0x10] sm:$0xff]
  %v787 = vld [vmem:[#allocation2 + $0x18] sm:$0xff]
  %v788 = vld [vmem:[#allocation2 + $0x20] sm:$0xff]
  %v789 = vld [vmem:[#allocation2 + $0x28] sm:$0xff]
  %v790 = vld [vmem:[#allocation2 + $0x30] sm:$0xff]
  %v791 = vld [vmem:[#allocation2 + $0x38] sm:$0xff]
  %s792 = scalar_lea.vmem %s6, 16
  %v793 = vld [vmem:[%s792] sm:$0xf]
  %v794 = vld [vmem:[%s792 + $0x4] sm:$0xf]
  %v795 = vld [vmem:[%s792 + $0x8] sm:$0xf]
  %v796 = vld [vmem:[%s792 + $0xc] sm:$0xf]
  %s797 = scalar_lea.vmem %s7, 16
  %v798 = vld [vmem:[%s797] sm:$0xf]
  %v799 = vld [vmem:[%s797 + $0x4] sm:$0xf]
  %v800 = vld [vmem:[%s797 + $0x8] sm:$0xf]
  %v801 = vld [vmem:[%s797 + $0xc] sm:$0xf]
  %s802 = scalar_lea.vmem %s8, 1
  %v803 = vld [vmem:[%s802] sm:$0x1]
  %v804 = vpack.c.bf16 %v785, %v784
  %v805 = vpack.c.bf16 %v787, %v786
  %v806 = vpack.c.bf16 %v789, %v788
  %v807 = vpack.c.bf16 %v791, %v790
  %v809 = vlaneseq
  %v810 = vshrl.u32 %v809, 7
  %v811 = vsub.s32 0, %v810
  %v812 = vrot.slane %v803, %v811
  %v818 = vunpack.c.l.b16 %v793
  %v819 = vunpack.c.l.b16 %v794
  %v820 = vunpack.c.l.b16 %v795
  %v821 = vunpack.c.l.b16 %v796
  %v822 = vpack.c.b16 %v819, %v818
  %v823 = vpack.c.b16 %v821, %v820
  %v827 = vsel %vm201, %v804, 0
  %v830 = vsel %vm201, %v805, 0
  %v833 = vsel %vm201, %v806, 0
  %v836 = vsel %vm201, %v807, 0
  %838 = vmatprep.subr.bf16.mxu0 0
  %839 = vmatpush1.bf16.msra.mxu0 0
  %840 = vmatprep.subr.bf16.mxu0 0
  %841 = vmatpush1.bf16.msra.mxu0 0
  %842 = vmatprep.subr.bf16.mxu0 0
  %843 = vmatpush1.bf16.msra.mxu0 0
  %844 = vmatprep.subr.bf16.mxu0 0
  %845 = vmatpush1.bf16.msra.mxu0 0
  %846 = vmatprep.subr.bf16.mxu0 0
  %847 = vmatpush1.bf16.msra.mxu0 0
  %848 = vmatprep.subr.bf16.mxu0 0
  %849 = vmatpush1.bf16.msra.mxu0 0
  %850 = vmatprep.subr.bf16.mxu0 0
  %851 = vmatpush1.bf16.msra.mxu0 %v823
  %852 = vmatprep.subr.bf16.mxu0 0
  %853 = vmatpush1.bf16.msra.mxu0 %v822
  %854 = vmatprep.subr.bf16.mxu0 0
  %855 = vmatpush2.bf16.msra.mxu0 0
  %856 = vmatprep.subr.bf16.mxu0 0
  %857 = vmatpush2.bf16.msra.mxu0 0
  %858 = vmatprep.subr.bf16.mxu0 0
  %859 = vmatpush2.bf16.msra.mxu0 0
  %860 = vmatprep.subr.bf16.mxu0 0
  %861 = vmatpush2.bf16.msra.mxu0 0
  %862 = vmatprep.subr.bf16.mxu0 0
  %863 = vmatpush2.bf16.msra.mxu0 0
  %864 = vmatprep.subr.bf16.mxu0 0
  %865 = vmatpush2.bf16.msra.mxu0 0
  %866 = vmatprep.subr.bf16.mxu0 0
  %867 = vmatpush2.bf16.msra.mxu0 0
  %868 = vmatprep.subr.bf16.mxu0 0
  %869 = vmatpush2.bf16.msra.mxu0 0
  %870 = vmatprep.mubr.bf16.mxu0 0
  %871 = vmatmul.mubr.bf16.gmra.mxu0 %v827
  %v872 = vpop.f32.mrf.mxu0
  %v873 = vadd.f32 %v812, %v872
  %v874 = vpop.f32.mrf.mxu0
  %v875 = vpop.f32.mrf.mxu0
  %v876 = vadd.f32 %v812, %v875
  %v877 = vpop.f32.mrf.mxu0
  %878 = vmatprep.mubr.bf16.mxu0 0
  %879 = vmatmul.mubr.bf16.gmra.mxu0 %v830
  %v880 = vpop.f32.mrf.mxu0
  %v881 = vadd.f32 %v812, %v880
  %v882 = vpop.f32.mrf.mxu0
  %v883 = vpop.f32.mrf.mxu0
  %v884 = vadd.f32 %v812, %v883
  %v885 = vpop.f32.mrf.mxu0
  %886 = vmatprep.mubr.bf16.mxu0 0
  %887 = vmatmul.mubr.bf16.gmra.mxu0 %v833
  %v888 = vpop.f32.mrf.mxu0
  %v889 = vadd.f32 %v812, %v888
  %v890 = vpop.f32.mrf.mxu0
  %v891 = vpop.f32.mrf.mxu0
  %v892 = vadd.f32 %v812, %v891
  %v893 = vpop.f32.mrf.mxu0
  %894 = vmatprep.mubr.bf16.mxu0 0
  %895 = vmatmul.mubr.bf16.gmra.mxu0 %v836
  %v896 = vpop.f32.mrf.mxu0
  %v897 = vadd.f32 %v812, %v896
  %v898 = vpop.f32.mrf.mxu0
  %v899 = vpop.f32.mrf.mxu0
  %v900 = vadd.f32 %v812, %v899
  %v901 = vpop.f32.mrf.mxu0
  %902 = vdwg.mxu0
  %v907 = vunpack.c.l.b16 %v798
  %v908 = vunpack.c.l.b16 %v799
  %v909 = vunpack.c.l.b16 %v800
  %v910 = vunpack.c.l.b16 %v801
  %v911 = vpack.c.b16 %v908, %v907
  %v912 = vpack.c.b16 %v910, %v909
  %915 = vmatprep.subr.bf16.mxu0 0
  %916 = vmatpush1.bf16.msra.mxu0 0
  %917 = vmatprep.subr.bf16.mxu0 0
  %918 = vmatpush1.bf16.msra.mxu0 0
  %919 = vmatprep.subr.bf16.mxu0 0
  %920 = vmatpush1.bf16.msra.mxu0 0
  %921 = vmatprep.subr.bf16.mxu0 0
  %922 = vmatpush1.bf16.msra.mxu0 0
  %923 = vmatprep.subr.bf16.mxu0 0
  %924 = vmatpush1.bf16.msra.mxu0 0
  %925 = vmatprep.subr.bf16.mxu0 0
  %926 = vmatpush1.bf16.msra.mxu0 0
  %927 = vmatprep.subr.bf16.mxu0 0
  %928 = vmatpush1.bf16.msra.mxu0 %v912
  %929 = vmatprep.subr.bf16.mxu0 0
  %930 = vmatpush1.bf16.msra.mxu0 %v911
  %931 = vmatprep.subr.bf16.mxu0 0
  %932 = vmatpush2.bf16.msra.mxu0 0
  %933 = vmatprep.subr.bf16.mxu0 0
  %934 = vmatpush2.bf16.msra.mxu0 0
  %935 = vmatprep.subr.bf16.mxu0 0
  %936 = vmatpush2.bf16.msra.mxu0 0
  %937 = vmatprep.subr.bf16.mxu0 0
  %938 = vmatpush2.bf16.msra.mxu0 0
  %939 = vmatprep.subr.bf16.mxu0 0
  %940 = vmatpush2.bf16.msra.mxu0 0
  %941 = vmatprep.subr.bf16.mxu0 0
  %942 = vmatpush2.bf16.msra.mxu0 0
  %943 = vmatprep.subr.bf16.mxu0 0
  %944 = vmatpush2.bf16.msra.mxu0 0
  %945 = vmatprep.subr.bf16.mxu0 0
  %946 = vmatpush2.bf16.msra.mxu0 0
  %947 = vmatprep.mubr.bf16.mxu0 0
  %948 = vmatmul.mubr.bf16.gmra.mxu0 %v410
  %v949 = vpop.f32.mrf.mxu0
  %v950 = vadd.f32 0.0, %v949
  %v951 = vpop.f32.mrf.mxu0
  %v952 = vpop.f32.mrf.mxu0
  %v953 = vpop.f32.mrf.mxu0
  %954 = vdwg.mxu0
  %v955 = vadd.f32 %v873, %v950
  %v956 = vtanh.pop %v955
  %vm957 = vcmp.eq.s32.totalorder %v288, 0
  %v958 = vsel %vm957, 1, 0
  %959 = vset.pattern.permute.xlu0 0
  %960 = vperm.xlu0 %959, %v958
  %v961 = vpop.permute.xlu0 %960
  %vm962 = vcmp.eq.s32.totalorder %v961, 1
  %v963 = vsel %vm962, %v956, 0.0
  %v964 = vpack.c.bf16 %v956, %v956
  %v966 = vsel %vm201, %v964, 0
  %968 = vmatprep.subr.bf16.mxu0 0
  %969 = vmatpush1.bf16.msra.mxu0 0
  %970 = vmatprep.subr.bf16.mxu0 0
  %971 = vmatpush1.bf16.msra.mxu0 0
  %972 = vmatprep.subr.bf16.mxu0 0
  %973 = vmatpush1.bf16.msra.mxu0 0
  %974 = vmatprep.subr.bf16.mxu0 0
  %975 = vmatpush1.bf16.msra.mxu0 0
  %976 = vmatprep.subr.bf16.mxu0 0
  %977 = vmatpush1.bf16.msra.mxu0 0
  %978 = vmatprep.subr.bf16.mxu0 0
  %979 = vmatpush1.bf16.msra.mxu0 0
  %980 = vmatprep.subr.bf16.mxu0 0
  %981 = vmatpush1.bf16.msra.mxu0 %v912
  %982 = vmatprep.subr.bf16.mxu0 0
  %983 = vmatpush1.bf16.msra.mxu0 %v911
  %984 = vmatprep.subr.bf16.mxu0 0
  %985 = vmatpush2.bf16.msra.mxu0 0
  %986 = vmatprep.subr.bf16.mxu0 0
  %987 = vmatpush2.bf16.msra.mxu0 0
  %988 = vmatprep.subr.bf16.mxu0 0
  %989 = vmatpush2.bf16.msra.mxu0 0
  %990 = vmatprep.subr.bf16.mxu0 0
  %991 = vmatpush2.bf16.msra.mxu0 0
  %992 = vmatprep.subr.bf16.mxu0 0
  %993 = vmatpush2.bf16.msra.mxu0 0
  %994 = vmatprep.subr.bf16.mxu0 0
  %995 = vmatpush2.bf16.msra.mxu0 0
  %996 = vmatprep.subr.bf16.mxu0 0
  %997 = vmatpush2.bf16.msra.mxu0 0
  %998 = vmatprep.subr.bf16.mxu0 0
  %999 = vmatpush2.bf16.msra.mxu0 0
  %1000 = vmatprep.mubr.bf16.mxu0 0
  %1001 = vmatmul.mubr.bf16.gmra.mxu0 %v966
  %v1002 = vpop.f32.mrf.mxu0
  %v1003 = vadd.f32 0.0, %v1002
  %v1004 = vpop.f32.mrf.mxu0
  %v1005 = vpop.f32.mrf.mxu0
  %v1006 = vpop.f32.mrf.mxu0
  %1007 = vdwg.mxu0
  %v1008 = vadd.f32 %v876, %v1003
  %v1009 = vtanh.pop %v1008
  %vm1010 = vcmp.eq.s32.totalorder %v288, 1
  %v1011 = vsel %vm1010, 1, 0
  %1012 = vset.pattern.permute.xlu0 0
  %1013 = vperm.xlu0 %1012, %v1011
  %v1014 = vpop.permute.xlu0 %1013
  %vm1015 = vcmp.eq.s32.totalorder %v1014, 1
  %v1016 = vsel %vm1015, %v1009, %v963
  %v1017 = vpack.c.bf16 %v1009, %v1009
  %v1019 = vsel %vm201, %v1017, 0
  %1021 = vmatprep.subr.bf16.mxu0 0
  %1022 = vmatpush1.bf16.msra.mxu0 0
  %1023 = vmatprep.subr.bf16.mxu0 0
  %1024 = vmatpush1.bf16.msra.mxu0 0
  %1025 = vmatprep.subr.bf16.mxu0 0
  %1026 = vmatpush1.bf16.msra.mxu0 0
  %1027 = vmatprep.subr.bf16.mxu0 0
  %1028 = vmatpush1.bf16.msra.mxu0 0
  %1029 = vmatprep.subr.bf16.mxu0 0
  %1030 = vmatpush1.bf16.msra.mxu0 0
  %1031 = vmatprep.subr.bf16.mxu0 0
  %1032 = vmatpush1.bf16.msra.mxu0 0
  %1033 = vmatprep.subr.bf16.mxu0 0
  %1034 = vmatpush1.bf16.msra.mxu0 %v912
  %1035 = vmatprep.subr.bf16.mxu0 0
  %1036 = vmatpush1.bf16.msra.mxu0 %v911
  %1037 = vmatprep.subr.bf16.mxu0 0
  %1038 = vmatpush2.bf16.msra.mxu0 0
  %1039 = vmatprep.subr.bf16.mxu0 0
  %1040 = vmatpush2.bf16.msra.mxu0 0
  %1041 = vmatprep.subr.bf16.mxu0 0
  %1042 = vmatpush2.bf16.msra.mxu0 0
  %1043 = vmatprep.subr.bf16.mxu0 0
  %1044 = vmatpush2.bf16.msra.mxu0 0
  %1045 = vmatprep.subr.bf16.mxu0 0
  %1046 = vmatpush2.bf16.msra.mxu0 0
  %1047 = vmatprep.subr.bf16.mxu0 0
  %1048 = vmatpush2.bf16.msra.mxu0 0
  %1049 = vmatprep.subr.bf16.mxu0 0
  %1050 = vmatpush2.bf16.msra.mxu0 0
  %1051 = vmatprep.subr.bf16.mxu0 0
  %1052 = vmatpush2.bf16.msra.mxu0 0
  %1053 = vmatprep.mubr.bf16.mxu0 0
  %1054 = vmatmul.mubr.bf16.gmra.mxu0 %v1019
  %v1055 = vpop.f32.mrf.mxu0
  %v1056 = vadd.f32 0.0, %v1055
  %v1057 = vpop.f32.mrf.mxu0
  %v1058 = vpop.f32.mrf.mxu0
  %v1059 = vpop.f32.mrf.mxu0
  %1060 = vdwg.mxu0
  %v1061 = vadd.f32 %v881, %v1056
  %v1062 = vtanh.pop %v1061
  %vm1063 = vcmp.eq.s32.totalorder %v288, 2
  %v1064 = vsel %vm1063, 1, 0
  %1065 = vset.pattern.permute.xlu0 0
  %1066 = vperm.xlu0 %1065, %v1064
  %v1067 = vpop.permute.xlu0 %1066
  %vm1068 = vcmp.eq.s32.totalorder %v1067, 1
  %v1069 = vsel %vm1068, %v1062, %v1016
  %v1070 = vpack.c.bf16 %v1062, %v1062
  %v1072 = vsel %vm201, %v1070, 0
  %1074 = vmatprep.subr.bf16.mxu0 0
  %1075 = vmatpush1.bf16.msra.mxu0 0
  %1076 = vmatprep.subr.bf16.mxu0 0
  %1077 = vmatpush1.bf16.msra.mxu0 0
  %1078 = vmatprep.subr.bf16.mxu0 0
  %1079 = vmatpush1.bf16.msra.mxu0 0
  %1080 = vmatprep.subr.bf16.mxu0 0
  %1081 = vmatpush1.bf16.msra.mxu0 0
  %1082 = vmatprep.subr.bf16.mxu0 0
  %1083 = vmatpush1.bf16.msra.mxu0 0
  %1084 = vmatprep.subr.bf16.mxu0 0
  %1085 = vmatpush1.bf16.msra.mxu0 0
  %1086 = vmatprep.subr.bf16.mxu0 0
  %1087 = vmatpush1.bf16.msra.mxu0 %v912
  %1088 = vmatprep.subr.bf16.mxu0 0
  %1089 = vmatpush1.bf16.msra.mxu0 %v911
  %1090 = vmatprep.subr.bf16.mxu0 0
  %1091 = vmatpush2.bf16.msra.mxu0 0
  %1092 = vmatprep.subr.bf16.mxu0 0
  %1093 = vmatpush2.bf16.msra.mxu0 0
  %1094 = vmatprep.subr.bf16.mxu0 0
  %1095 = vmatpush2.bf16.msra.mxu0 0
  %1096 = vmatprep.subr.bf16.mxu0 0
  %1097 = vmatpush2.bf16.msra.mxu0 0
  %1098 = vmatprep.subr.bf16.mxu0 0
  %1099 = vmatpush2.bf16.msra.mxu0 0
  %1100 = vmatprep.subr.bf16.mxu0 0
  %1101 = vmatpush2.bf16.msra.mxu0 0
  %1102 = vmatprep.subr.bf16.mxu0 0
  %1103 = vmatpush2.bf16.msra.mxu0 0
  %1104 = vmatprep.subr.bf16.mxu0 0
  %1105 = vmatpush2.bf16.msra.mxu0 0
  %1106 = vmatprep.mubr.bf16.mxu0 0
  %1107 = vmatmul.mubr.bf16.gmra.mxu0 %v1072
  %v1108 = vpop.f32.mrf.mxu0
  %v1109 = vadd.f32 0.0, %v1108
  %v1110 = vpop.f32.mrf.mxu0
  %v1111 = vpop.f32.mrf.mxu0
  %v1112 = vpop.f32.mrf.mxu0
  %1113 = vdwg.mxu0
  %v1114 = vadd.f32 %v884, %v1109
  %v1115 = vtanh.pop %v1114
  %vm1116 = vcmp.eq.s32.totalorder %v288, 3
  %v1117 = vsel %vm1116, 1, 0
  %1118 = vset.pattern.permute.xlu0 0
  %1119 = vperm.xlu0 %1118, %v1117
  %v1120 = vpop.permute.xlu0 %1119
  %vm1121 = vcmp.eq.s32.totalorder %v1120, 1
  %v1122 = vsel %vm1121, %v1115, %v1069
  %v1123 = vpack.c.bf16 %v1115, %v1115
  %v1125 = vsel %vm201, %v1123, 0
  %1127 = vmatprep.subr.bf16.mxu0 0
  %1128 = vmatpush1.bf16.msra.mxu0 0
  %1129 = vmatprep.subr.bf16.mxu0 0
  %1130 = vmatpush1.bf16.msra.mxu0 0
  %1131 = vmatprep.subr.bf16.mxu0 0
  %1132 = vmatpush1.bf16.msra.mxu0 0
  %1133 = vmatprep.subr.bf16.mxu0 0
  %1134 = vmatpush1.bf16.msra.mxu0 0
  %1135 = vmatprep.subr.bf16.mxu0 0
  %1136 = vmatpush1.bf16.msra.mxu0 0
  %1137 = vmatprep.subr.bf16.mxu0 0
  %1138 = vmatpush1.bf16.msra.mxu0 0
  %1139 = vmatprep.subr.bf16.mxu0 0
  %1140 = vmatpush1.bf16.msra.mxu0 %v912
  %1141 = vmatprep.subr.bf16.mxu0 0
  %1142 = vmatpush1.bf16.msra.mxu0 %v911
  %1143 = vmatprep.subr.bf16.mxu0 0
  %1144 = vmatpush2.bf16.msra.mxu0 0
  %1145 = vmatprep.subr.bf16.mxu0 0
  %1146 = vmatpush2.bf16.msra.mxu0 0
  %1147 = vmatprep.subr.bf16.mxu0 0
  %1148 = vmatpush2.bf16.msra.mxu0 0
  %1149 = vmatprep.subr.bf16.mxu0 0
  %1150 = vmatpush2.bf16.msra.mxu0 0
  %1151 = vmatprep.subr.bf16.mxu0 0
  %1152 = vmatpush2.bf16.msra.mxu0 0
  %1153 = vmatprep.subr.bf16.mxu0 0
  %1154 = vmatpush2.bf16.msra.mxu0 0
  %1155 = vmatprep.subr.bf16.mxu0 0
  %1156 = vmatpush2.bf16.msra.mxu0 0
  %1157 = vmatprep.subr.bf16.mxu0 0
  %1158 = vmatpush2.bf16.msra.mxu0 0
  %1159 = vmatprep.mubr.bf16.mxu0 0
  %1160 = vmatmul.mubr.bf16.gmra.mxu0 %v1125
  %v1161 = vpop.f32.mrf.mxu0
  %v1162 = vadd.f32 0.0, %v1161
  %v1163 = vpop.f32.mrf.mxu0
  %v1164 = vpop.f32.mrf.mxu0
  %v1165 = vpop.f32.mrf.mxu0
  %1166 = vdwg.mxu0
  %v1167 = vadd.f32 %v889, %v1162
  %v1168 = vtanh.pop %v1167
  %vm1169 = vcmp.eq.s32.totalorder %v288, 4
  %v1170 = vsel %vm1169, 1, 0
  %1171 = vset.pattern.permute.xlu0 0
  %1172 = vperm.xlu0 %1171, %v1170
  %v1173 = vpop.permute.xlu0 %1172
  %vm1174 = vcmp.eq.s32.totalorder %v1173, 1
  %v1175 = vsel %vm1174, %v1168, %v1122
  %v1176 = vpack.c.bf16 %v1168, %v1168
  %v1178 = vsel %vm201, %v1176, 0
  %1180 = vmatprep.subr.bf16.mxu0 0
  %1181 = vmatpush1.bf16.msra.mxu0 0
  %1182 = vmatprep.subr.bf16.mxu0 0
  %1183 = vmatpush1.bf16.msra.mxu0 0
  %1184 = vmatprep.subr.bf16.mxu0 0
  %1185 = vmatpush1.bf16.msra.mxu0 0
  %1186 = vmatprep.subr.bf16.mxu0 0
  %1187 = vmatpush1.bf16.msra.mxu0 0
  %1188 = vmatprep.subr.bf16.mxu0 0
  %1189 = vmatpush1.bf16.msra.mxu0 0
  %1190 = vmatprep.subr.bf16.mxu0 0
  %1191 = vmatpush1.bf16.msra.mxu0 0
  %1192 = vmatprep.subr.bf16.mxu0 0
  %1193 = vmatpush1.bf16.msra.mxu0 %v912
  %1194 = vmatprep.subr.bf16.mxu0 0
  %1195 = vmatpush1.bf16.msra.mxu0 %v911
  %1196 = vmatprep.subr.bf16.mxu0 0
  %1197 = vmatpush2.bf16.msra.mxu0 0
  %1198 = vmatprep.subr.bf16.mxu0 0
  %1199 = vmatpush2.bf16.msra.mxu0 0
  %1200 = vmatprep.subr.bf16.mxu0 0
  %1201 = vmatpush2.bf16.msra.mxu0 0
  %1202 = vmatprep.subr.bf16.mxu0 0
  %1203 = vmatpush2.bf16.msra.mxu0 0
  %1204 = vmatprep.subr.bf16.mxu0 0
  %1205 = vmatpush2.bf16.msra.mxu0 0
  %1206 = vmatprep.subr.bf16.mxu0 0
  %1207 = vmatpush2.bf16.msra.mxu0 0
  %1208 = vmatprep.subr.bf16.mxu0 0
  %1209 = vmatpush2.bf16.msra.mxu0 0
  %1210 = vmatprep.subr.bf16.mxu0 0
  %1211 = vmatpush2.bf16.msra.mxu0 0
  %1212 = vmatprep.mubr.bf16.mxu0 0
  %1213 = vmatmul.mubr.bf16.gmra.mxu0 %v1178
  %v1214 = vpop.f32.mrf.mxu0
  %v1215 = vadd.f32 0.0, %v1214
  %v1216 = vpop.f32.mrf.mxu0
  %v1217 = vpop.f32.mrf.mxu0
  %v1218 = vpop.f32.mrf.mxu0
  %1219 = vdwg.mxu0
  %v1220 = vadd.f32 %v892, %v1215
  %v1221 = vtanh.pop %v1220
  %vm1222 = vcmp.eq.s32.totalorder %v288, 5
  %v1223 = vsel %vm1222, 1, 0
  %1224 = vset.pattern.permute.xlu0 0
  %1225 = vperm.xlu0 %1224, %v1223
  %v1226 = vpop.permute.xlu0 %1225
  %vm1227 = vcmp.eq.s32.totalorder %v1226, 1
  %v1228 = vsel %vm1227, %v1221, %v1175
  %v1229 = vpack.c.bf16 %v1221, %v1221
  %v1231 = vsel %vm201, %v1229, 0
  %1233 = vmatprep.subr.bf16.mxu0 0
  %1234 = vmatpush1.bf16.msra.mxu0 0
  %1235 = vmatprep.subr.bf16.mxu0 0
  %1236 = vmatpush1.bf16.msra.mxu0 0
  %1237 = vmatprep.subr.bf16.mxu0 0
  %1238 = vmatpush1.bf16.msra.mxu0 0
  %1239 = vmatprep.subr.bf16.mxu0 0
  %1240 = vmatpush1.bf16.msra.mxu0 0
  %1241 = vmatprep.subr.bf16.mxu0 0
  %1242 = vmatpush1.bf16.msra.mxu0 0
  %1243 = vmatprep.subr.bf16.mxu0 0
  %1244 = vmatpush1.bf16.msra.mxu0 0
  %1245 = vmatprep.subr.bf16.mxu0 0
  %1246 = vmatpush1.bf16.msra.mxu0 %v912
  %1247 = vmatprep.subr.bf16.mxu0 0
  %1248 = vmatpush1.bf16.msra.mxu0 %v911
  %1249 = vmatprep.subr.bf16.mxu0 0
  %1250 = vmatpush2.bf16.msra.mxu0 0
  %1251 = vmatprep.subr.bf16.mxu0 0
  %1252 = vmatpush2.bf16.msra.mxu0 0
  %1253 = vmatprep.subr.bf16.mxu0 0
  %1254 = vmatpush2.bf16.msra.mxu0 0
  %1255 = vmatprep.subr.bf16.mxu0 0
  %1256 = vmatpush2.bf16.msra.mxu0 0
  %1257 = vmatprep.subr.bf16.mxu0 0
  %1258 = vmatpush2.bf16.msra.mxu0 0
  %1259 = vmatprep.subr.bf16.mxu0 0
  %1260 = vmatpush2.bf16.msra.mxu0 0
  %1261 = vmatprep.subr.bf16.mxu0 0
  %1262 = vmatpush2.bf16.msra.mxu0 0
  %1263 = vmatprep.subr.bf16.mxu0 0
  %1264 = vmatpush2.bf16.msra.mxu0 0
  %1265 = vmatprep.mubr.bf16.mxu0 0
  %1266 = vmatmul.mubr.bf16.gmra.mxu0 %v1231
  %v1267 = vpop.f32.mrf.mxu0
  %v1268 = vadd.f32 0.0, %v1267
  %v1269 = vpop.f32.mrf.mxu0
  %v1270 = vpop.f32.mrf.mxu0
  %v1271 = vpop.f32.mrf.mxu0
  %1272 = vdwg.mxu0
  %v1273 = vadd.f32 %v897, %v1268
  %v1274 = vtanh.pop %v1273
  %vm1275 = vcmp.eq.s32.totalorder %v288, 6
  %v1276 = vsel %vm1275, 1, 0
  %1277 = vset.pattern.permute.xlu0 0
  %1278 = vperm.xlu0 %1277, %v1276
  %v1279 = vpop.permute.xlu0 %1278
  %vm1280 = vcmp.eq.s32.totalorder %v1279, 1
  %v1281 = vsel %vm1280, %v1274, %v1228
  %v1282 = vpack.c.bf16 %v1274, %v1274
  %v1284 = vsel %vm201, %v1282, 0
  %1286 = vmatprep.subr.bf16.mxu0 0
  %1287 = vmatpush1.bf16.msra.mxu0 0
  %1288 = vmatprep.subr.bf16.mxu0 0
  %1289 = vmatpush1.bf16.msra.mxu0 0
  %1290 = vmatprep.subr.bf16.mxu0 0
  %1291 = vmatpush1.bf16.msra.mxu0 0
  %1292 = vmatprep.subr.bf16.mxu0 0
  %1293 = vmatpush1.bf16.msra.mxu0 0
  %1294 = vmatprep.subr.bf16.mxu0 0
  %1295 = vmatpush1.bf16.msra.mxu0 0
  %1296 = vmatprep.subr.bf16.mxu0 0
  %1297 = vmatpush1.bf16.msra.mxu0 0
  %1298 = vmatprep.subr.bf16.mxu0 0
  %1299 = vmatpush1.bf16.msra.mxu0 %v912
  %1300 = vmatprep.subr.bf16.mxu0 0
  %1301 = vmatpush1.bf16.msra.mxu0 %v911
  %1302 = vmatprep.subr.bf16.mxu0 0
  %1303 = vmatpush2.bf16.msra.mxu0 0
  %1304 = vmatprep.subr.bf16.mxu0 0
  %1305 = vmatpush2.bf16.msra.mxu0 0
  %1306 = vmatprep.subr.bf16.mxu0 0
  %1307 = vmatpush2.bf16.msra.mxu0 0
  %1308 = vmatprep.subr.bf16.mxu0 0
  %1309 = vmatpush2.bf16.msra.mxu0 0
  %1310 = vmatprep.subr.bf16.mxu0 0
  %1311 = vmatpush2.bf16.msra.mxu0 0
  %1312 = vmatprep.subr.bf16.mxu0 0
  %1313 = vmatpush2.bf16.msra.mxu0 0
  %1314 = vmatprep.subr.bf16.mxu0 0
  %1315 = vmatpush2.bf16.msra.mxu0 0
  %1316 = vmatprep.subr.bf16.mxu0 0
  %1317 = vmatpush2.bf16.msra.mxu0 0
  %1318 = vmatprep.mubr.bf16.mxu0 0
  %1319 = vmatmul.mubr.bf16.gmra.mxu0 %v1284
  %v1320 = vpop.f32.mrf.mxu0
  %v1321 = vadd.f32 0.0, %v1320
  %v1322 = vpop.f32.mrf.mxu0
  %v1323 = vpop.f32.mrf.mxu0
  %v1324 = vpop.f32.mrf.mxu0
  %1325 = vdwg.mxu0
  %v1326 = vadd.f32 %v900, %v1321
  %v1327 = vtanh.pop %v1326
  %vm1328 = vcmp.eq.s32.totalorder %v288, 7
  %v1329 = vsel %vm1328, 1, 0
  %1330 = vset.pattern.permute.xlu0 0
  %1331 = vperm.xlu0 %1330, %v1329
  %v1332 = vpop.permute.xlu0 %1331
  %vm1333 = vcmp.eq.s32.totalorder %v1332, 1
  %v1334 = vsel %vm1333, %v1327, %v1281
  %v1335 = vld [vmem:[%s9] sm:$0xf]
  %v1336 = vld [vmem:[%s9 + $0x4] sm:$0xf]
  %v1337 = vld [vmem:[%s9 + $0x8] sm:$0xf]
  %v1338 = vld [vmem:[%s9 + $0xc] sm:$0xf]
  %v1339 = vpack.c.bf16 %v1334, %v1334
  %v1340 = vld [vmem:[%s10] sm:$0x1]
  %v1342 = vlaneseq
  %v1343 = vshrl.u32 %v1342, 7
  %v1344 = vsub.s32 0, %v1343
  %v1345 = vrot.slane %v1340, %v1344
  %v1351 = vunpack.c.l.b16 %v1335
  %v1352 = vunpack.c.l.b16 %v1336
  %v1353 = vunpack.c.l.b16 %v1337
  %v1354 = vunpack.c.l.b16 %v1338
  %v1355 = vpack.c.b16 %v1352, %v1351
  %v1356 = vpack.c.b16 %v1354, %v1353
  %v1360 = vsel %vm201, %v1339, 0
  %1362 = vmatprep.subr.bf16.mxu0 0
  %1363 = vmatpush1.bf16.msra.mxu0 0
  %1364 = vmatprep.subr.bf16.mxu0 0
  %1365 = vmatpush1.bf16.msra.mxu0 0
  %1366 = vmatprep.subr.bf16.mxu0 0
  %1367 = vmatpush1.bf16.msra.mxu0 0
  %1368 = vmatprep.subr.bf16.mxu0 0
  %1369 = vmatpush1.bf16.msra.mxu0 0
  %1370 = vmatprep.subr.bf16.mxu0 0
  %1371 = vmatpush1.bf16.msra.mxu0 0
  %1372 = vmatprep.subr.bf16.mxu0 0
  %1373 = vmatpush1.bf16.msra.mxu0 0
  %1374 = vmatprep.subr.bf16.mxu0 0
  %1375 = vmatpush1.bf16.msra.mxu0 %v1356
  %1376 = vmatprep.subr.bf16.mxu0 0
  %1377 = vmatpush1.bf16.msra.mxu0 %v1355
  %1378 = vmatprep.subr.bf16.mxu0 0
  %1379 = vmatpush2.bf16.msra.mxu0 0
  %1380 = vmatprep.subr.bf16.mxu0 0
  %1381 = vmatpush2.bf16.msra.mxu0 0
  %1382 = vmatprep.subr.bf16.mxu0 0
  %1383 = vmatpush2.bf16.msra.mxu0 0
  %1384 = vmatprep.subr.bf16.mxu0 0
  %1385 = vmatpush2.bf16.msra.mxu0 0
  %1386 = vmatprep.subr.bf16.mxu0 0
  %1387 = vmatpush2.bf16.msra.mxu0 0
  %1388 = vmatprep.subr.bf16.mxu0 0
  %1389 = vmatpush2.bf16.msra.mxu0 0
  %1390 = vmatprep.subr.bf16.mxu0 0
  %1391 = vmatpush2.bf16.msra.mxu0 0
  %1392 = vmatprep.subr.bf16.mxu0 0
  %1393 = vmatpush2.bf16.msra.mxu0 0
  %1394 = vmatprep.mubr.bf16.mxu0 0
  %1395 = vmatmul.mubr.bf16.gmra.mxu0 %v1360
  %v1396 = vpop.f32.mrf.mxu0
  %v1397 = vadd.f32 %v1345, %v1396
  %v1398 = vpop.f32.mrf.mxu0
  %v1399 = vpop.f32.mrf.mxu0
  %v1400 = vpop.f32.mrf.mxu0
  %1401 = vdwg.mxu0
  %v1402 = vmax.f32 %v1397, 0.0
  %v1403 = vld [vmem:[%s11] sm:$0xf]
  %v1404 = vld [vmem:[%s11 + $0x4] sm:$0xf]
  %v1405 = vld [vmem:[%s11 + $0x8] sm:$0xf]
  %v1406 = vld [vmem:[%s11 + $0xc] sm:$0xf]
  %v1407 = vld [vmem:[%s11 + $0x10] sm:$0xf]
  %v1408 = vld [vmem:[%s11 + $0x14] sm:$0xf]
  %v1409 = vld [vmem:[%s11 + $0x18] sm:$0xf]
  %v1410 = vld [vmem:[%s11 + $0x1c] sm:$0xf]
  %v1411 = vpack.c.bf16 %v1402, %v1402
  %v1412 = vld [vmem:[%s12] sm:$0x1]
  %v1414 = vlaneseq
  %v1415 = vshrl.u32 %v1414, 7
  %v1416 = vsub.s32 0, %v1415
  %v1417 = vrot.slane %v1412, %v1416
  %v1427 = vunpack.c.l.b16 %v1403
  %v1428 = vunpack.c.l.b16 %v1404
  %v1429 = vunpack.c.l.b16 %v1405
  %v1430 = vunpack.c.l.b16 %v1406
  %v1431 = vunpack.c.l.b16 %v1407
  %v1432 = vunpack.c.l.b16 %v1408
  %v1433 = vunpack.c.l.b16 %v1409
  %v1434 = vunpack.c.l.b16 %v1410
  %v1435 = vpack.c.b16 %v1428, %v1427
  %v1436 = vpack.c.b16 %v1430, %v1429
  %v1437 = vpack.c.b16 %v1432, %v1431
  %v1438 = vpack.c.b16 %v1434, %v1433
  %vm1443 = vcmask 523264
  %v1445 = vsel %vm1443, %v1411, 0
  %1447 = vmatprep.subr.bf16.mxu0 0
  %1448 = vmatpush1.bf16.msra.mxu0 0
  %1449 = vmatprep.subr.bf16.mxu0 0
  %1450 = vmatpush1.bf16.msra.mxu0 0
  %1451 = vmatprep.subr.bf16.mxu0 0
  %1452 = vmatpush1.bf16.msra.mxu0 0
  %1453 = vmatprep.subr.bf16.mxu0 0
  %1454 = vmatpush1.bf16.msra.mxu0 0
  %1455 = vmatprep.subr.bf16.mxu0 0
  %1456 = vmatpush1.bf16.msra.mxu0 %v1438
  %1457 = vmatprep.subr.bf16.mxu0 0
  %1458 = vmatpush1.bf16.msra.mxu0 %v1437
  %1459 = vmatprep.subr.bf16.mxu0 0
  %1460 = vmatpush1.bf16.msra.mxu0 %v1436
  %1461 = vmatprep.subr.bf16.mxu0 0
  %1462 = vmatpush1.bf16.msra.mxu0 %v1435
  %1463 = vmatprep.subr.bf16.mxu0 0
  %1464 = vmatpush2.bf16.msra.mxu0 0
  %1465 = vmatprep.subr.bf16.mxu0 0
  %1466 = vmatpush2.bf16.msra.mxu0 0
  %1467 = vmatprep.subr.bf16.mxu0 0
  %1468 = vmatpush2.bf16.msra.mxu0 0
  %1469 = vmatprep.subr.bf16.mxu0 0
  %1470 = vmatpush2.bf16.msra.mxu0 0
  %1471 = vmatprep.subr.bf16.mxu0 0
  %1472 = vmatpush2.bf16.msra.mxu0 0
  %1473 = vmatprep.subr.bf16.mxu0 0
  %1474 = vmatpush2.bf16.msra.mxu0 0
  %1475 = vmatprep.subr.bf16.mxu0 0
  %1476 = vmatpush2.bf16.msra.mxu0 0
  %1477 = vmatprep.subr.bf16.mxu0 0
  %1478 = vmatpush2.bf16.msra.mxu0 0
  %1479 = vmatprep.mubr.bf16.mxu0 0
  %1480 = vmatmul.mubr.bf16.gmra.mxu0 %v1445
  %v1481 = vpop.f32.mrf.mxu0
  %v1482 = vadd.f32 %v1417, %v1481
  %v1483 = vpop.f32.mrf.mxu0
  %v1484 = vpop.f32.mrf.mxu0
  %v1485 = vpop.f32.mrf.mxu0
  %1486 = vdwg.mxu0
  %v1487 = vmax.f32 %v1482, 0.0
  %1488 = vst.msk [vmem:[%s13] sm:$0xff] %vm1443, %v1487
  // Predicated region
  $region54: #{_lambda_.2} parent=0 // pred_check
    _
  $region55: #{_lambda_.2} parent=0 // pred_check_branch
    %1490 = sbr.rel (0) target = $region57
  $region56: #{_lambda_.2} parent=0 // pred_region
    _
  $region57: #{_lambda_.2} parent=0 // pred_fallthru
    _
  // Predicated region
  $region58: #{_lambda_.2} parent=0 // pred_check
    _
  $region59: #{_lambda_.2} parent=0 // pred_check_branch
    %1492 = sbr.rel (0) target = $region61
  $region60: #{_lambda_.2} parent=0 // pred_region
    _
  $region61: #{_lambda_.2} parent=0 // pred_fallthru
    _

// kernel: _lambda_.3
$region0: #{_lambda_.3}
  #allocation0 [shape = 'u32[]', space=smem, size = 0x4, offset = 0x4, fixed_abs, tag = 'smem constant byte address 0x4 - core index']
  #allocation1 [shape = 'u32[144,128]{1,0:T(1,128)}', space=vmem, size = 0x12000, scoped, tag = 'internal scratch']
  #allocation2 [shape = 'f32[64,32]{1,0:T(8,128)}', space=vmem, size = 0x8000, scoped, tag = 'scratch operand']
  %s0 = inlined_call_operand.vmem [shape: bf16[64,16], index: 0, kind: input, shape index: {}]
  %s1 = inlined_call_operand.vmem [shape: f32[2,8,32], index: 1, kind: input, shape index: {}]
  %s2 = inlined_call_operand.vmem [shape: bf16[16,32], index: 2, kind: input, shape index: {}]
  %s3 = inlined_call_operand.vmem [shape: f32[1,32], index: 3, kind: input, shape index: {}]
  %s4 = inlined_call_operand.vmem [shape: bf16[32,32], index: 4, kind: input, shape index: {}]
  %s5 = inlined_call_operand.vmem [shape: f32[1,32], index: 5, kind: input, shape index: {}]
  %s6 = inlined_call_operand.vmem [shape: bf16[2,32,32], index: 6, kind: input, shape index: {}]
  %s7 = inlined_call_operand.vmem [shape: bf16[2,32,32], index: 7, kind: input, shape index: {}]
  %s8 = inlined_call_operand.vmem [shape: f32[2,1,32], index: 8, kind: input, shape index: {}]
  %s9 = inlined_call_operand.vmem [shape: bf16[32,32], index: 9, kind: input, shape index: {}]
  %s10 = inlined_call_operand.vmem [shape: f32[1,32], index: 10, kind: input, shape index: {}]
  %s11 = inlined_call_operand.vmem [shape: bf16[32,16], index: 11, kind: input, shape index: {}]
  %s12 = inlined_call_operand.vmem [shape: f32[1,16], index: 12, kind: input, shape index: {}]
  %s13 = inlined_call_operand.vmem [shape: bf16[16,32], index: 13, kind: input, shape index: {}]
  %s14 = inlined_call_operand.vmem [shape: f32[8,8,32], index: 14, kind: output, shape index: {}]
  %s15 = sld [smem:[#allocation0]]
  $region66: #{_lambda_.3} parent=0
    _
  %s17 = ssub.s32 1, %s15
  %s18 = scalar_select 0, %s17, %s15
  // Predicated region
  $region2: #{_lambda_.3} parent=0 // pred_check
    _
  $region3: #{_lambda_.3} parent=0 // pred_check_branch
    %20 = sbr.rel (0) target = $region5
  $region4: #{_lambda_.3} parent=0 // pred_region
    _
  $region5: #{_lambda_.3} parent=0 // pred_fallthru
    _
  // Predicated region
  $region6: #{_lambda_.3} parent=0 // pred_check
    _
  $region7: #{_lambda_.3} parent=0 // pred_check_branch
    %22 = sbr.rel (0) target = $region9
  $region8: #{_lambda_.3} parent=0 // pred_region
    _
  $region9: #{_lambda_.3} parent=0 // pred_fallthru
    _
  // Predicated region
  $region10: #{_lambda_.3} parent=0 // pred_check
    _
  $region11: #{_lambda_.3} parent=0 // pred_check_branch
    %24 = sbr.rel (0) target = $region13
  $region12: #{_lambda_.3} parent=0 // pred_region
    _
  $region13: #{_lambda_.3} parent=0 // pred_fallthru
    _
  // Predicated region
  $region14: #{_lambda_.3} parent=0 // pred_check
    _
  $region15: #{_lambda_.3} parent=0 // pred_check_branch
    %26 = sbr.rel (0) target = $region17
  $region16: #{_lambda_.3} parent=0 // pred_region
    _
  $region17: #{_lambda_.3} parent=0 // pred_fallthru
    _
  // Predicated region
  $region18: #{_lambda_.3} parent=0 // pred_check
    _
  $region19: #{_lambda_.3} parent=0 // pred_check_branch
    %28 = sbr.rel (0) target = $region21
  $region20: #{_lambda_.3} parent=0 // pred_region
    _
  $region21: #{_lambda_.3} parent=0 // pred_fallthru
    _
  // Predicated region
  $region22: #{_lambda_.3} parent=0 // pred_check
    _
  $region23: #{_lambda_.3} parent=0 // pred_check_branch
    %30 = sbr.rel (0) target = $region25
  $region24: #{_lambda_.3} parent=0 // pred_region
    _
  $region25: #{_lambda_.3} parent=0 // pred_fallthru
    _
  // Predicated region
  $region26: #{_lambda_.3} parent=0 // pred_check
    _
  $region27: #{_lambda_.3} parent=0 // pred_check_branch
    %32 = sbr.rel (0) target = $region29
  $region28: #{_lambda_.3} parent=0 // pred_region
    _
  $region29: #{_lambda_.3} parent=0 // pred_fallthru
    _
  // Predicated region
  $region30: #{_lambda_.3} parent=0 // pred_check
    _
  $region31: #{_lambda_.3} parent=0 // pred_check_branch
    %34 = sbr.rel (0) target = $region33
  $region32: #{_lambda_.3} parent=0 // pred_region
    _
  $region33: #{_lambda_.3} parent=0 // pred_fallthru
    _
  // Predicated region
  $region34: #{_lambda_.3} parent=0 // pred_check
    _
  $region35: #{_lambda_.3} parent=0 // pred_check_branch
    %36 = sbr.rel (0) target = $region37
  $region36: #{_lambda_.3} parent=0 // pred_region
    _
  $region37: #{_lambda_.3} parent=0 // pred_fallthru
    _
  // Predicated region
  $region38: #{_lambda_.3} parent=0 // pred_check
    _
  $region39: #{_lambda_.3} parent=0 // pred_check_branch
    %38 = sbr.rel (0) target = $region41
  $region40: #{_lambda_.3} parent=0 // pred_region
    _
  $region41: #{_lambda_.3} parent=0 // pred_fallthru
    _
  // Predicated region
  $region42: #{_lambda_.3} parent=0 // pred_check
    _
  $region43: #{_lambda_.3} parent=0 // pred_check_branch
    %40 = sbr.rel (0) target = $region45
  $region44: #{_lambda_.3} parent=0 // pred_region
    _
  $region45: #{_lambda_.3} parent=0 // pred_fallthru
    _
  // Predicated region
  $region46: #{_lambda_.3} parent=0 // pred_check
    _
  $region47: #{_lambda_.3} parent=0 // pred_check_branch
    %42 = sbr.rel (0) target = $region49
  $region48: #{_lambda_.3} parent=0 // pred_region
    _
  $region49: #{_lambda_.3} parent=0 // pred_fallthru
    _
  // Predicated region
  $region50: #{_lambda_.3} parent=0 // pred_check
    _
  $region51: #{_lambda_.3} parent=0 // pred_check_branch
    %44 = sbr.rel (0) target = $region53
  $region52: #{_lambda_.3} parent=0 // pred_region
    _
  $region53: #{_lambda_.3} parent=0 // pred_fallthru
    _
  // Predicated region
  $region54: #{_lambda_.3} parent=0 // pred_check
    _
  $region55: #{_lambda_.3} parent=0 // pred_check_branch
    %46 = sbr.rel (0) target = $region57
  $region56: #{_lambda_.3} parent=0 // pred_region
    _
  $region57: #{_lambda_.3} parent=0 // pred_fallthru
    _
  %v48 = vld [vmem:[%s0] sm:$0xf]
  %v49 = vld [vmem:[%s0 + $0x4] sm:$0xf]
  %v50 = vld [vmem:[%s0 + $0x8] sm:$0xf]
  %v51 = vld [vmem:[%s0 + $0xc] sm:$0xf]
  %v52 = vld [vmem:[%s0 + $0x10] sm:$0xf]
  %v53 = vld [vmem:[%s0 + $0x14] sm:$0xf]
  %v54 = vld [vmem:[%s0 + $0x18] sm:$0xf]
  %v55 = vld [vmem:[%s0 + $0x1c] sm:$0xf]
  %v56 = vld [vmem:[%s2] sm:$0xf]
  %v57 = vld [vmem:[%s2 + $0x4] sm:$0xf]
  %v58 = vld [vmem:[%s3] sm:$0x1]
  %v60 = vlaneseq
  %v61 = vshrl.u32 %v60, 7
  %v62 = vsub.s32 0, %v61
  %v63 = vrot.slane %v58, %v62
  %v73 = vunpack.c.l.b16 %v48
  %v74 = vunpack.c.l.b16 %v49
  %v75 = vunpack.c.l.b16 %v50
  %v76 = vunpack.c.l.b16 %v51
  %v77 = vunpack.c.l.b16 %v52
  %v78 = vunpack.c.l.b16 %v53
  %v79 = vunpack.c.l.b16 %v54
  %v80 = vunpack.c.l.b16 %v55
  %v81 = vpack.c.b16 %v74, %v73
  %v82 = vpack.c.b16 %v76, %v75
  %v83 = vpack.c.b16 %v78, %v77
  %v84 = vpack.c.b16 %v80, %v79
  %v87 = vunpack.c.l.b16 %v56
  %v88 = vunpack.c.l.b16 %v57
  %v89 = vpack.c.b16 %v88, %v87
  %vm91 = vcmask 130048
  %v93 = vsel %vm91, %v81, 0
  %v96 = vsel %vm91, %v82, 0
  %v99 = vsel %vm91, %v83, 0
  %v102 = vsel %vm91, %v84, 0
  %104 = vmatprep.subr.bf16.mxu0 0
  %105 = vmatpush1.bf16.msra.mxu0 0
  %106 = vmatprep.subr.bf16.mxu0 0
  %107 = vmatpush1.bf16.msra.mxu0 0
  %108 = vmatprep.subr.bf16.mxu0 0
  %109 = vmatpush1.bf16.msra.mxu0 0
  %110 = vmatprep.subr.bf16.mxu0 0
  %111 = vmatpush1.bf16.msra.mxu0 0
  %112 = vmatprep.subr.bf16.mxu0 0
  %113 = vmatpush1.bf16.msra.mxu0 0
  %114 = vmatprep.subr.bf16.mxu0 0
  %115 = vmatpush1.bf16.msra.mxu0 0
  %116 = vmatprep.subr.bf16.mxu0 0
  %117 = vmatpush1.bf16.msra.mxu0 0
  %118 = vmatprep.subr.bf16.mxu0 0
  %119 = vmatpush1.bf16.msra.mxu0 %v89
  %120 = vmatprep.subr.bf16.mxu0 0
  %121 = vmatpush2.bf16.msra.mxu0 0
  %122 = vmatprep.subr.bf16.mxu0 0
  %123 = vmatpush2.bf16.msra.mxu0 0
  %124 = vmatprep.subr.bf16.mxu0 0
  %125 = vmatpush2.bf16.msra.mxu0 0
  %126 = vmatprep.subr.bf16.mxu0 0
  %127 = vmatpush2.bf16.msra.mxu0 0
  %128 = vmatprep.subr.bf16.mxu0 0
  %129 = vmatpush2.bf16.msra.mxu0 0
  %130 = vmatprep.subr.bf16.mxu0 0
  %131 = vmatpush2.bf16.msra.mxu0 0
  %132 = vmatprep.subr.bf16.mxu0 0
  %133 = vmatpush2.bf16.msra.mxu0 0
  %134 = vmatprep.subr.bf16.mxu0 0
  %135 = vmatpush2.bf16.msra.mxu0 0
  %136 = vmatprep.mubr.bf16.mxu0 0
  %137 = vmatmul.mubr.bf16.gmra.mxu0 %v93
  %v138 = vpop.f32.mrf.mxu0
  %v139 = vadd.f32 %v63, %v138
  %v140 = vpop.f32.mrf.mxu0
  %v141 = vpop.f32.mrf.mxu0
  %v142 = vadd.f32 %v63, %v141
  %v143 = vpop.f32.mrf.mxu0
  %144 = vmatprep.mubr.bf16.mxu0 0
  %145 = vmatmul.mubr.bf16.gmra.mxu0 %v96
  %v146 = vpop.f32.mrf.mxu0
  %v147 = vadd.f32 %v63, %v146
  %v148 = vpop.f32.mrf.mxu0
  %v149 = vpop.f32.mrf.mxu0
  %v150 = vadd.f32 %v63, %v149
  %v151 = vpop.f32.mrf.mxu0
  %152 = vmatprep.mubr.bf16.mxu0 0
  %153 = vmatmul.mubr.bf16.gmra.mxu0 %v99
  %v154 = vpop.f32.mrf.mxu0
  %v155 = vadd.f32 %v63, %v154
  %v156 = vpop.f32.mrf.mxu0
  %v157 = vpop.f32.mrf.mxu0
  %v158 = vadd.f32 %v63, %v157
  %v159 = vpop.f32.mrf.mxu0
  %160 = vmatprep.mubr.bf16.mxu0 0
  %161 = vmatmul.mubr.bf16.gmra.mxu0 %v102
  %v162 = vpop.f32.mrf.mxu0
  %v163 = vadd.f32 %v63, %v162
  %v164 = vpop.f32.mrf.mxu0
  %v165 = vpop.f32.mrf.mxu0
  %v166 = vadd.f32 %v63, %v165
  %v167 = vpop.f32.mrf.mxu0
  %168 = vdwg.mxu0
  %v169 = vmax.f32 %v139, 0.0
  %v170 = vmax.f32 %v142, 0.0
  %v171 = vmax.f32 %v147, 0.0
  %v172 = vmax.f32 %v150, 0.0
  %v173 = vmax.f32 %v155, 0.0
  %v174 = vmax.f32 %v158, 0.0
  %v175 = vmax.f32 %v163, 0.0
  %v176 = vmax.f32 %v166, 0.0
  %v177 = vld [vmem:[%s4] sm:$0xf]
  %v178 = vld [vmem:[%s4 + $0x4] sm:$0xf]
  %v179 = vld [vmem:[%s4 + $0x8] sm:$0xf]
  %v180 = vld [vmem:[%s4 + $0xc] sm:$0xf]
  %v181 = vpack.c.bf16 %v170, %v169
  %v182 = vpack.c.bf16 %v172, %v171
  %v183 = vpack.c.bf16 %v174, %v173
  %v184 = vpack.c.bf16 %v176, %v175
  %v185 = vld [vmem:[%s5] sm:$0x1]
  %v187 = vlaneseq
  %v188 = vshrl.u32 %v187, 7
  %v189 = vsub.s32 0, %v188
  %v190 = vrot.slane %v185, %v189
  %v196 = vunpack.c.l.b16 %v177
  %v197 = vunpack.c.l.b16 %v178
  %v198 = vunpack.c.l.b16 %v179
  %v199 = vunpack.c.l.b16 %v180
  %v200 = vpack.c.b16 %v197, %v196
  %v201 = vpack.c.b16 %v199, %v198
  %vm204 = vcmask 261120
  %v206 = vsel %vm204, %v181, 0
  %v209 = vsel %vm204, %v182, 0
  %v212 = vsel %vm204, %v183, 0
  %v215 = vsel %vm204, %v184, 0
  %217 = vmatprep.subr.bf16.mxu0 0
  %218 = vmatpush1.bf16.msra.mxu0 0
  %219 = vmatprep.subr.bf16.mxu0 0
  %220 = vmatpush1.bf16.msra.mxu0 0
  %221 = vmatprep.subr.bf16.mxu0 0
  %222 = vmatpush1.bf16.msra.mxu0 0
  %223 = vmatprep.subr.bf16.mxu0 0
  %224 = vmatpush1.bf16.msra.mxu0 0
  %225 = vmatprep.subr.bf16.mxu0 0
  %226 = vmatpush1.bf16.msra.mxu0 0
  %227 = vmatprep.subr.bf16.mxu0 0
  %228 = vmatpush1.bf16.msra.mxu0 0
  %229 = vmatprep.subr.bf16.mxu0 0
  %230 = vmatpush1.bf16.msra.mxu0 %v201
  %231 = vmatprep.subr.bf16.mxu0 0
  %232 = vmatpush1.bf16.msra.mxu0 %v200
  %233 = vmatprep.subr.bf16.mxu0 0
  %234 = vmatpush2.bf16.msra.mxu0 0
  %235 = vmatprep.subr.bf16.mxu0 0
  %236 = vmatpush2.bf16.msra.mxu0 0
  %237 = vmatprep.subr.bf16.mxu0 0
  %238 = vmatpush2.bf16.msra.mxu0 0
  %239 = vmatprep.subr.bf16.mxu0 0
  %240 = vmatpush2.bf16.msra.mxu0 0
  %241 = vmatprep.subr.bf16.mxu0 0
  %242 = vmatpush2.bf16.msra.mxu0 0
  %243 = vmatprep.subr.bf16.mxu0 0
  %244 = vmatpush2.bf16.msra.mxu0 0
  %245 = vmatprep.subr.bf16.mxu0 0
  %246 = vmatpush2.bf16.msra.mxu0 0
  %247 = vmatprep.subr.bf16.mxu0 0
  %248 = vmatpush2.bf16.msra.mxu0 0
  %249 = vmatprep.mubr.bf16.mxu0 0
  %250 = vmatmul.mubr.bf16.gmra.mxu0 %v206
  %v251 = vpop.f32.mrf.mxu0
  %v252 = vadd.f32 %v190, %v251
  %v253 = vpop.f32.mrf.mxu0
  %v254 = vpop.f32.mrf.mxu0
  %v255 = vadd.f32 %v190, %v254
  %v256 = vpop.f32.mrf.mxu0
  %257 = vmatprep.mubr.bf16.mxu0 0
  %258 = vmatmul.mubr.bf16.gmra.mxu0 %v209
  %v259 = vpop.f32.mrf.mxu0
  %v260 = vadd.f32 %v190, %v259
  %v261 = vpop.f32.mrf.mxu0
  %v262 = vpop.f32.mrf.mxu0
  %v263 = vadd.f32 %v190, %v262
  %v264 = vpop.f32.mrf.mxu0
  %265 = vmatprep.mubr.bf16.mxu0 0
  %266 = vmatmul.mubr.bf16.gmra.mxu0 %v212
  %v267 = vpop.f32.mrf.mxu0
  %v268 = vadd.f32 %v190, %v267
  %v269 = vpop.f32.mrf.mxu0
  %v270 = vpop.f32.mrf.mxu0
  %v271 = vadd.f32 %v190, %v270
  %v272 = vpop.f32.mrf.mxu0
  %273 = vmatprep.mubr.bf16.mxu0 0
  %274 = vmatmul.mubr.bf16.gmra.mxu0 %v215
  %v275 = vpop.f32.mrf.mxu0
  %v276 = vadd.f32 %v190, %v275
  %v277 = vpop.f32.mrf.mxu0
  %v278 = vpop.f32.mrf.mxu0
  %v279 = vadd.f32 %v190, %v278
  %v280 = vpop.f32.mrf.mxu0
  %281 = vdwg.mxu0
  %v282 = vmax.f32 %v252, 0.0
  %v283 = vmax.f32 %v255, 0.0
  %v284 = vmax.f32 %v260, 0.0
  %v285 = vmax.f32 %v263, 0.0
  %v286 = vmax.f32 %v268, 0.0
  %v287 = vmax.f32 %v271, 0.0
  %v288 = vmax.f32 %v276, 0.0
  %v289 = vmax.f32 %v279, 0.0
  %v290 = vld [vmem:[%s6] sm:$0xf]
  %v291 = vld [vmem:[%s6 + $0x4] sm:$0xf]
  %v292 = vld [vmem:[%s6 + $0x8] sm:$0xf]
  %v293 = vld [vmem:[%s6 + $0xc] sm:$0xf]
  %v294 = vld [vmem:[%s7] sm:$0xf]
  %v295 = vld [vmem:[%s7 + $0x4] sm:$0xf]
  %v296 = vld [vmem:[%s7 + $0x8] sm:$0xf]
  %v297 = vld [vmem:[%s7 + $0xc] sm:$0xf]
  %v298 = vld [vmem:[%s8] sm:$0x1]
  %v299 = vpack.c.bf16 %v283, %v282
  %v300 = vpack.c.bf16 %v285, %v284
  %v301 = vpack.c.bf16 %v287, %v286
  %v302 = vpack.c.bf16 %v289, %v288
  %v304 = vlaneseq
  %v305 = vshrl.u32 %v304, 7
  %v306 = vsub.s32 0, %v305
  %v307 = vrot.slane %v298, %v306
  %v313 = vunpack.c.l.b16 %v290
  %v314 = vunpack.c.l.b16 %v291
  %v315 = vunpack.c.l.b16 %v292
  %v316 = vunpack.c.l.b16 %v293
  %v317 = vpack.c.b16 %v314, %v313
  %v318 = vpack.c.b16 %v316, %v315
  %v322 = vsel %vm204, %v299, 0
  %v325 = vsel %vm204, %v300, 0
  %v328 = vsel %vm204, %v301, 0
  %v331 = vsel %vm204, %v302, 0
  %333 = vmatprep.subr.bf16.mxu0 0
  %334 = vmatpush1.bf16.msra.mxu0 0
  %335 = vmatprep.subr.bf16.mxu0 0
  %336 = vmatpush1.bf16.msra.mxu0 0
  %337 = vmatprep.subr.bf16.mxu0 0
  %338 = vmatpush1.bf16.msra.mxu0 0
  %339 = vmatprep.subr.bf16.mxu0 0
  %340 = vmatpush1.bf16.msra.mxu0 0
  %341 = vmatprep.subr.bf16.mxu0 0
  %342 = vmatpush1.bf16.msra.mxu0 0
  %343 = vmatprep.subr.bf16.mxu0 0
  %344 = vmatpush1.bf16.msra.mxu0 0
  %345 = vmatprep.subr.bf16.mxu0 0
  %346 = vmatpush1.bf16.msra.mxu0 %v318
  %347 = vmatprep.subr.bf16.mxu0 0
  %348 = vmatpush1.bf16.msra.mxu0 %v317
  %349 = vmatprep.subr.bf16.mxu0 0
  %350 = vmatpush2.bf16.msra.mxu0 0
  %351 = vmatprep.subr.bf16.mxu0 0
  %352 = vmatpush2.bf16.msra.mxu0 0
  %353 = vmatprep.subr.bf16.mxu0 0
  %354 = vmatpush2.bf16.msra.mxu0 0
  %355 = vmatprep.subr.bf16.mxu0 0
  %356 = vmatpush2.bf16.msra.mxu0 0
  %357 = vmatprep.subr.bf16.mxu0 0
  %358 = vmatpush2.bf16.msra.mxu0 0
  %359 = vmatprep.subr.bf16.mxu0 0
  %360 = vmatpush2.bf16.msra.mxu0 0
  %361 = vmatprep.subr.bf16.mxu0 0
  %362 = vmatpush2.bf16.msra.mxu0 0
  %363 = vmatprep.subr.bf16.mxu0 0
  %364 = vmatpush2.bf16.msra.mxu0 0
  %365 = vmatprep.mubr.bf16.mxu0 0
  %366 = vmatmul.mubr.bf16.gmra.mxu0 %v322
  %v367 = vpop.f32.mrf.mxu0
  %v368 = vadd.f32 %v307, %v367
  %v369 = vpop.f32.mrf.mxu0
  %v370 = vpop.f32.mrf.mxu0
  %v371 = vadd.f32 %v307, %v370
  %v372 = vpop.f32.mrf.mxu0
  %373 = vmatprep.mubr.bf16.mxu0 0
  %374 = vmatmul.mubr.bf16.gmra.mxu0 %v325
  %v375 = vpop.f32.mrf.mxu0
  %v376 = vadd.f32 %v307, %v375
  %v377 = vpop.f32.mrf.mxu0
  %v378 = vpop.f32.mrf.mxu0
  %v379 = vadd.f32 %v307, %v378
  %v380 = vpop.f32.mrf.mxu0
  %381 = vmatprep.mubr.bf16.mxu0 0
  %382 = vmatmul.mubr.bf16.gmra.mxu0 %v328
  %v383 = vpop.f32.mrf.mxu0
  %v384 = vadd.f32 %v307, %v383
  %v385 = vpop.f32.mrf.mxu0
  %v386 = vpop.f32.mrf.mxu0
  %v387 = vadd.f32 %v307, %v386
  %v388 = vpop.f32.mrf.mxu0
  %389 = vmatprep.mubr.bf16.mxu0 0
  %390 = vmatmul.mubr.bf16.gmra.mxu0 %v331
  %v391 = vpop.f32.mrf.mxu0
  %v392 = vadd.f32 %v307, %v391
  %v393 = vpop.f32.mrf.mxu0
  %v394 = vpop.f32.mrf.mxu0
  %v395 = vadd.f32 %v307, %v394
  %v396 = vpop.f32.mrf.mxu0
  %397 = vdwg.mxu0
  %v398 = vld [vmem:[%s1] sm:$0xff]
  %v399 = vpack.c.bf16 %v398, %v398
  %v404 = vunpack.c.l.b16 %v294
  %v405 = vunpack.c.l.b16 %v295
  %v406 = vunpack.c.l.b16 %v296
  %v407 = vunpack.c.l.b16 %v297
  %v408 = vpack.c.b16 %v405, %v404
  %v409 = vpack.c.b16 %v407, %v406
  %v413 = vsel %vm204, %v399, 0
  %415 = vmatprep.subr.bf16.mxu0 0
  %416 = vmatpush1.bf16.msra.mxu0 0
  %417 = vmatprep.subr.bf16.mxu0 0
  %418 = vmatpush1.bf16.msra.mxu0 0
  %419 = vmatprep.subr.bf16.mxu0 0
  %420 = vmatpush1.bf16.msra.mxu0 0
  %421 = vmatprep.subr.bf16.mxu0 0
  %422 = vmatpush1.bf16.msra.mxu0 0
  %423 = vmatprep.subr.bf16.mxu0 0
  %424 = vmatpush1.bf16.msra.mxu0 0
  %425 = vmatprep.subr.bf16.mxu0 0
  %426 = vmatpush1.bf16.msra.mxu0 0
  %427 = vmatprep.subr.bf16.mxu0 0
  %428 = vmatpush1.bf16.msra.mxu0 %v409
  %429 = vmatprep.subr.bf16.mxu0 0
  %430 = vmatpush1.bf16.msra.mxu0 %v408
  %431 = vmatprep.subr.bf16.mxu0 0
  %432 = vmatpush2.bf16.msra.mxu0 0
  %433 = vmatprep.subr.bf16.mxu0 0
  %434 = vmatpush2.bf16.msra.mxu0 0
  %435 = vmatprep.subr.bf16.mxu0 0
  %436 = vmatpush2.bf16.msra.mxu0 0
  %437 = vmatprep.subr.bf16.mxu0 0
  %438 = vmatpush2.bf16.msra.mxu0 0
  %439 = vmatprep.subr.bf16.mxu0 0
  %440 = vmatpush2.bf16.msra.mxu0 0
  %441 = vmatprep.subr.bf16.mxu0 0
  %442 = vmatpush2.bf16.msra.mxu0 0
  %443 = vmatprep.subr.bf16.mxu0 0
  %444 = vmatpush2.bf16.msra.mxu0 0
  %445 = vmatprep.subr.bf16.mxu0 0
  %446 = vmatpush2.bf16.msra.mxu0 0
  %447 = vmatprep.mubr.bf16.mxu0 0
  %448 = vmatmul.mubr.bf16.gmra.mxu0 %v413
  %v449 = vpop.f32.mrf.mxu0
  %v450 = vadd.f32 0.0, %v449
  %v451 = vpop.f32.mrf.mxu0
  %v452 = vpop.f32.mrf.mxu0
  %v453 = vpop.f32.mrf.mxu0
  %454 = vdwg.mxu0
  %v455 = vadd.f32 %v368, %v450
  %v456 = vtanh.pop %v455
  %457 = vst.msk [vmem:[#allocation2] sm:$0xff] %vm204, %v456
  %v458 = vpack.c.bf16 %v456, %v456
  %v460 = vsel %vm204, %v458, 0
  %462 = vmatprep.subr.bf16.mxu0 0
  %463 = vmatpush1.bf16.msra.mxu0 0
  %464 = vmatprep.subr.bf16.mxu0 0
  %465 = vmatpush1.bf16.msra.mxu0 0
  %466 = vmatprep.subr.bf16.mxu0 0
  %467 = vmatpush1.bf16.msra.mxu0 0
  %468 = vmatprep.subr.bf16.mxu0 0
  %469 = vmatpush1.bf16.msra.mxu0 0
  %470 = vmatprep.subr.bf16.mxu0 0
  %471 = vmatpush1.bf16.msra.mxu0 0
  %472 = vmatprep.subr.bf16.mxu0 0
  %473 = vmatpush1.bf16.msra.mxu0 0
  %474 = vmatprep.subr.bf16.mxu0 0
  %475 = vmatpush1.bf16.msra.mxu0 %v409
  %476 = vmatprep.subr.bf16.mxu0 0
  %477 = vmatpush1.bf16.msra.mxu0 %v408
  %478 = vmatprep.subr.bf16.mxu0 0
  %479 = vmatpush2.bf16.msra.mxu0 0
  %480 = vmatprep.subr.bf16.mxu0 0
  %481 = vmatpush2.bf16.msra.mxu0 0
  %482 = vmatprep.subr.bf16.mxu0 0
  %483 = vmatpush2.bf16.msra.mxu0 0
  %484 = vmatprep.subr.bf16.mxu0 0
  %485 = vmatpush2.bf16.msra.mxu0 0
  %486 = vmatprep.subr.bf16.mxu0 0
  %487 = vmatpush2.bf16.msra.mxu0 0
  %488 = vmatprep.subr.bf16.mxu0 0
  %489 = vmatpush2.bf16.msra.mxu0 0
  %490 = vmatprep.subr.bf16.mxu0 0
  %491 = vmatpush2.bf16.msra.mxu0 0
  %492 = vmatprep.subr.bf16.mxu0 0
  %493 = vmatpush2.bf16.msra.mxu0 0
  %494 = vmatprep.mubr.bf16.mxu0 0
  %495 = vmatmul.mubr.bf16.gmra.mxu0 %v460
  %v496 = vpop.f32.mrf.mxu0
  %v497 = vadd.f32 0.0, %v496
  %v498 = vpop.f32.mrf.mxu0
  %v499 = vpop.f32.mrf.mxu0
  %v500 = vpop.f32.mrf.mxu0
  %501 = vdwg.mxu0
  %v502 = vadd.f32 %v371, %v497
  %v503 = vtanh.pop %v502
  %504 = vst.msk [vmem:[#allocation2 + $0x8] sm:$0xff] %vm204, %v503
  %v505 = vpack.c.bf16 %v503, %v503
  %v507 = vsel %vm204, %v505, 0
  %509 = vmatprep.subr.bf16.mxu0 0
  %510 = vmatpush1.bf16.msra.mxu0 0
  %511 = vmatprep.subr.bf16.mxu0 0
  %512 = vmatpush1.bf16.msra.mxu0 0
  %513 = vmatprep.subr.bf16.mxu0 0
  %514 = vmatpush1.bf16.msra.mxu0 0
  %515 = vmatprep.subr.bf16.mxu0 0
  %516 = vmatpush1.bf16.msra.mxu0 0
  %517 = vmatprep.subr.bf16.mxu0 0
  %518 = vmatpush1.bf16.msra.mxu0 0
  %519 = vmatprep.subr.bf16.mxu0 0
  %520 = vmatpush1.bf16.msra.mxu0 0
  %521 = vmatprep.subr.bf16.mxu0 0
  %522 = vmatpush1.bf16.msra.mxu0 %v409
  %523 = vmatprep.subr.bf16.mxu0 0
  %524 = vmatpush1.bf16.msra.mxu0 %v408
  %525 = vmatprep.subr.bf16.mxu0 0
  %526 = vmatpush2.bf16.msra.mxu0 0
  %527 = vmatprep.subr.bf16.mxu0 0
  %528 = vmatpush2.bf16.msra.mxu0 0
  %529 = vmatprep.subr.bf16.mxu0 0
  %530 = vmatpush2.bf16.msra.mxu0 0
  %531 = vmatprep.subr.bf16.mxu0 0
  %532 = vmatpush2.bf16.msra.mxu0 0
  %533 = vmatprep.subr.bf16.mxu0 0
  %534 = vmatpush2.bf16.msra.mxu0 0
  %535 = vmatprep.subr.bf16.mxu0 0
  %536 = vmatpush2.bf16.msra.mxu0 0
  %537 = vmatprep.subr.bf16.mxu0 0
  %538 = vmatpush2.bf16.msra.mxu0 0
  %539 = vmatprep.subr.bf16.mxu0 0
  %540 = vmatpush2.bf16.msra.mxu0 0
  %541 = vmatprep.mubr.bf16.mxu0 0
  %542 = vmatmul.mubr.bf16.gmra.mxu0 %v507
  %v543 = vpop.f32.mrf.mxu0
  %v544 = vadd.f32 0.0, %v543
  %v545 = vpop.f32.mrf.mxu0
  %v546 = vpop.f32.mrf.mxu0
  %v547 = vpop.f32.mrf.mxu0
  %548 = vdwg.mxu0
  %v549 = vadd.f32 %v376, %v544
  %v550 = vtanh.pop %v549
  %551 = vst.msk [vmem:[#allocation2 + $0x10] sm:$0xff] %vm204, %v550
  %v552 = vpack.c.bf16 %v550, %v550
  %v554 = vsel %vm204, %v552, 0
  %556 = vmatprep.subr.bf16.mxu0 0
  %557 = vmatpush1.bf16.msra.mxu0 0
  %558 = vmatprep.subr.bf16.mxu0 0
  %559 = vmatpush1.bf16.msra.mxu0 0
  %560 = vmatprep.subr.bf16.mxu0 0
  %561 = vmatpush1.bf16.msra.mxu0 0
  %562 = vmatprep.subr.bf16.mxu0 0
  %563 = vmatpush1.bf16.msra.mxu0 0
  %564 = vmatprep.subr.bf16.mxu0 0
  %565 = vmatpush1.bf16.msra.mxu0 0
  %566 = vmatprep.subr.bf16.mxu0 0
  %567 = vmatpush1.bf16.msra.mxu0 0
  %568 = vmatprep.subr.bf16.mxu0 0
  %569 = vmatpush1.bf16.msra.mxu0 %v409
  %570 = vmatprep.subr.bf16.mxu0 0
  %571 = vmatpush1.bf16.msra.mxu0 %v408
  %572 = vmatprep.subr.bf16.mxu0 0
  %573 = vmatpush2.bf16.msra.mxu0 0
  %574 = vmatprep.subr.bf16.mxu0 0
  %575 = vmatpush2.bf16.msra.mxu0 0
  %576 = vmatprep.subr.bf16.mxu0 0
  %577 = vmatpush2.bf16.msra.mxu0 0
  %578 = vmatprep.subr.bf16.mxu0 0
  %579 = vmatpush2.bf16.msra.mxu0 0
  %580 = vmatprep.subr.bf16.mxu0 0
  %581 = vmatpush2.bf16.msra.mxu0 0
  %582 = vmatprep.subr.bf16.mxu0 0
  %583 = vmatpush2.bf16.msra.mxu0 0
  %584 = vmatprep.subr.bf16.mxu0 0
  %585 = vmatpush2.bf16.msra.mxu0 0
  %586 = vmatprep.subr.bf16.mxu0 0
  %587 = vmatpush2.bf16.msra.mxu0 0
  %588 = vmatprep.mubr.bf16.mxu0 0
  %589 = vmatmul.mubr.bf16.gmra.mxu0 %v554
  %v590 = vpop.f32.mrf.mxu0
  %v591 = vadd.f32 0.0, %v590
  %v592 = vpop.f32.mrf.mxu0
  %v593 = vpop.f32.mrf.mxu0
  %v594 = vpop.f32.mrf.mxu0
  %595 = vdwg.mxu0
  %v596 = vadd.f32 %v379, %v591
  %v597 = vtanh.pop %v596
  %598 = vst.msk [vmem:[#allocation2 + $0x18] sm:$0xff] %vm204, %v597
  %v599 = vpack.c.bf16 %v597, %v597
  %v601 = vsel %vm204, %v599, 0
  %603 = vmatprep.subr.bf16.mxu0 0
  %604 = vmatpush1.bf16.msra.mxu0 0
  %605 = vmatprep.subr.bf16.mxu0 0
  %606 = vmatpush1.bf16.msra.mxu0 0
  %607 = vmatprep.subr.bf16.mxu0 0
  %608 = vmatpush1.bf16.msra.mxu0 0
  %609 = vmatprep.subr.bf16.mxu0 0
  %610 = vmatpush1.bf16.msra.mxu0 0
  %611 = vmatprep.subr.bf16.mxu0 0
  %612 = vmatpush1.bf16.msra.mxu0 0
  %613 = vmatprep.subr.bf16.mxu0 0
  %614 = vmatpush1.bf16.msra.mxu0 0
  %615 = vmatprep.subr.bf16.mxu0 0
  %616 = vmatpush1.bf16.msra.mxu0 %v409
  %617 = vmatprep.subr.bf16.mxu0 0
  %618 = vmatpush1.bf16.msra.mxu0 %v408
  %619 = vmatprep.subr.bf16.mxu0 0
  %620 = vmatpush2.bf16.msra.mxu0 0
  %621 = vmatprep.subr.bf16.mxu0 0
  %622 = vmatpush2.bf16.msra.mxu0 0
  %623 = vmatprep.subr.bf16.mxu0 0
  %624 = vmatpush2.bf16.msra.mxu0 0
  %625 = vmatprep.subr.bf16.mxu0 0
  %626 = vmatpush2.bf16.msra.mxu0 0
  %627 = vmatprep.subr.bf16.mxu0 0
  %628 = vmatpush2.bf16.msra.mxu0 0
  %629 = vmatprep.subr.bf16.mxu0 0
  %630 = vmatpush2.bf16.msra.mxu0 0
  %631 = vmatprep.subr.bf16.mxu0 0
  %632 = vmatpush2.bf16.msra.mxu0 0
  %633 = vmatprep.subr.bf16.mxu0 0
  %634 = vmatpush2.bf16.msra.mxu0 0
  %635 = vmatprep.mubr.bf16.mxu0 0
  %636 = vmatmul.mubr.bf16.gmra.mxu0 %v601
  %v637 = vpop.f32.mrf.mxu0
  %v638 = vadd.f32 0.0, %v637
  %v639 = vpop.f32.mrf.mxu0
  %v640 = vpop.f32.mrf.mxu0
  %v641 = vpop.f32.mrf.mxu0
  %642 = vdwg.mxu0
  %v643 = vadd.f32 %v384, %v638
  %v644 = vtanh.pop %v643
  %645 = vst.msk [vmem:[#allocation2 + $0x20] sm:$0xff] %vm204, %v644
  %v646 = vpack.c.bf16 %v644, %v644
  %v648 = vsel %vm204, %v646, 0
  %650 = vmatprep.subr.bf16.mxu0 0
  %651 = vmatpush1.bf16.msra.mxu0 0
  %652 = vmatprep.subr.bf16.mxu0 0
  %653 = vmatpush1.bf16.msra.mxu0 0
  %654 = vmatprep.subr.bf16.mxu0 0
  %655 = vmatpush1.bf16.msra.mxu0 0
  %656 = vmatprep.subr.bf16.mxu0 0
  %657 = vmatpush1.bf16.msra.mxu0 0
  %658 = vmatprep.subr.bf16.mxu0 0
  %659 = vmatpush1.bf16.msra.mxu0 0
  %660 = vmatprep.subr.bf16.mxu0 0
  %661 = vmatpush1.bf16.msra.mxu0 0
  %662 = vmatprep.subr.bf16.mxu0 0
  %663 = vmatpush1.bf16.msra.mxu0 %v409
  %664 = vmatprep.subr.bf16.mxu0 0
  %665 = vmatpush1.bf16.msra.mxu0 %v408
  %666 = vmatprep.subr.bf16.mxu0 0
  %667 = vmatpush2.bf16.msra.mxu0 0
  %668 = vmatprep.subr.bf16.mxu0 0
  %669 = vmatpush2.bf16.msra.mxu0 0
  %670 = vmatprep.subr.bf16.mxu0 0
  %671 = vmatpush2.bf16.msra.mxu0 0
  %672 = vmatprep.subr.bf16.mxu0 0
  %673 = vmatpush2.bf16.msra.mxu0 0
  %674 = vmatprep.subr.bf16.mxu0 0
  %675 = vmatpush2.bf16.msra.mxu0 0
  %676 = vmatprep.subr.bf16.mxu0 0
  %677 = vmatpush2.bf16.msra.mxu0 0
  %678 = vmatprep.subr.bf16.mxu0 0
  %679 = vmatpush2.bf16.msra.mxu0 0
  %680 = vmatprep.subr.bf16.mxu0 0
  %681 = vmatpush2.bf16.msra.mxu0 0
  %682 = vmatprep.mubr.bf16.mxu0 0
  %683 = vmatmul.mubr.bf16.gmra.mxu0 %v648
  %v684 = vpop.f32.mrf.mxu0
  %v685 = vadd.f32 0.0, %v684
  %v686 = vpop.f32.mrf.mxu0
  %v687 = vpop.f32.mrf.mxu0
  %v688 = vpop.f32.mrf.mxu0
  %689 = vdwg.mxu0
  %v690 = vadd.f32 %v387, %v685
  %v691 = vtanh.pop %v690
  %692 = vst.msk [vmem:[#allocation2 + $0x28] sm:$0xff] %vm204, %v691
  %v693 = vpack.c.bf16 %v691, %v691
  %v695 = vsel %vm204, %v693, 0
  %697 = vmatprep.subr.bf16.mxu0 0
  %698 = vmatpush1.bf16.msra.mxu0 0
  %699 = vmatprep.subr.bf16.mxu0 0
  %700 = vmatpush1.bf16.msra.mxu0 0
  %701 = vmatprep.subr.bf16.mxu0 0
  %702 = vmatpush1.bf16.msra.mxu0 0
  %703 = vmatprep.subr.bf16.mxu0 0
  %704 = vmatpush1.bf16.msra.mxu0 0
  %705 = vmatprep.subr.bf16.mxu0 0
  %706 = vmatpush1.bf16.msra.mxu0 0
  %707 = vmatprep.subr.bf16.mxu0 0
  %708 = vmatpush1.bf16.msra.mxu0 0
  %709 = vmatprep.subr.bf16.mxu0 0
  %710 = vmatpush1.bf16.msra.mxu0 %v409
  %711 = vmatprep.subr.bf16.mxu0 0
  %712 = vmatpush1.bf16.msra.mxu0 %v408
  %713 = vmatprep.subr.bf16.mxu0 0
  %714 = vmatpush2.bf16.msra.mxu0 0
  %715 = vmatprep.subr.bf16.mxu0 0
  %716 = vmatpush2.bf16.msra.mxu0 0
  %717 = vmatprep.subr.bf16.mxu0 0
  %718 = vmatpush2.bf16.msra.mxu0 0
  %719 = vmatprep.subr.bf16.mxu0 0
  %720 = vmatpush2.bf16.msra.mxu0 0
  %721 = vmatprep.subr.bf16.mxu0 0
  %722 = vmatpush2.bf16.msra.mxu0 0
  %723 = vmatprep.subr.bf16.mxu0 0
  %724 = vmatpush2.bf16.msra.mxu0 0
  %725 = vmatprep.subr.bf16.mxu0 0
  %726 = vmatpush2.bf16.msra.mxu0 0
  %727 = vmatprep.subr.bf16.mxu0 0
  %728 = vmatpush2.bf16.msra.mxu0 0
  %729 = vmatprep.mubr.bf16.mxu0 0
  %730 = vmatmul.mubr.bf16.gmra.mxu0 %v695
  %v731 = vpop.f32.mrf.mxu0
  %v732 = vadd.f32 0.0, %v731
  %v733 = vpop.f32.mrf.mxu0
  %v734 = vpop.f32.mrf.mxu0
  %v735 = vpop.f32.mrf.mxu0
  %736 = vdwg.mxu0
  %v737 = vadd.f32 %v392, %v732
  %v738 = vtanh.pop %v737
  %739 = vst.msk [vmem:[#allocation2 + $0x30] sm:$0xff] %vm204, %v738
  %v740 = vpack.c.bf16 %v738, %v738
  %v742 = vsel %vm204, %v740, 0
  %744 = vmatprep.subr.bf16.mxu0 0
  %745 = vmatpush1.bf16.msra.mxu0 0
  %746 = vmatprep.subr.bf16.mxu0 0
  %747 = vmatpush1.bf16.msra.mxu0 0
  %748 = vmatprep.subr.bf16.mxu0 0
  %749 = vmatpush1.bf16.msra.mxu0 0
  %750 = vmatprep.subr.bf16.mxu0 0
  %751 = vmatpush1.bf16.msra.mxu0 0
  %752 = vmatprep.subr.bf16.mxu0 0
  %753 = vmatpush1.bf16.msra.mxu0 0
  %754 = vmatprep.subr.bf16.mxu0 0
  %755 = vmatpush1.bf16.msra.mxu0 0
  %756 = vmatprep.subr.bf16.mxu0 0
  %757 = vmatpush1.bf16.msra.mxu0 %v409
  %758 = vmatprep.subr.bf16.mxu0 0
  %759 = vmatpush1.bf16.msra.mxu0 %v408
  %760 = vmatprep.subr.bf16.mxu0 0
  %761 = vmatpush2.bf16.msra.mxu0 0
  %762 = vmatprep.subr.bf16.mxu0 0
  %763 = vmatpush2.bf16.msra.mxu0 0
  %764 = vmatprep.subr.bf16.mxu0 0
  %765 = vmatpush2.bf16.msra.mxu0 0
  %766 = vmatprep.subr.bf16.mxu0 0
  %767 = vmatpush2.bf16.msra.mxu0 0
  %768 = vmatprep.subr.bf16.mxu0 0
  %769 = vmatpush2.bf16.msra.mxu0 0
  %770 = vmatprep.subr.bf16.mxu0 0
  %771 = vmatpush2.bf16.msra.mxu0 0
  %772 = vmatprep.subr.bf16.mxu0 0
  %773 = vmatpush2.bf16.msra.mxu0 0
  %774 = vmatprep.subr.bf16.mxu0 0
  %775 = vmatpush2.bf16.msra.mxu0 0
  %776 = vmatprep.mubr.bf16.mxu0 0
  %777 = vmatmul.mubr.bf16.gmra.mxu0 %v742
  %v778 = vpop.f32.mrf.mxu0
  %v779 = vadd.f32 0.0, %v778
  %v780 = vpop.f32.mrf.mxu0
  %v781 = vpop.f32.mrf.mxu0
  %v782 = vpop.f32.mrf.mxu0
  %783 = vdwg.mxu0
  %v784 = vadd.f32 %v395, %v779
  %v785 = vtanh.pop %v784
  %786 = vst.msk [vmem:[#allocation2 + $0x38] sm:$0xff] %vm204, %v785
  %v787 = vld [vmem:[#allocation2] sm:$0xff]
  %v788 = vld [vmem:[#allocation2 + $0x8] sm:$0xff]
  %v789 = vld [vmem:[#allocation2 + $0x10] sm:$0xff]
  %v790 = vld [vmem:[#allocation2 + $0x18] sm:$0xff]
  %v791 = vld [vmem:[#allocation2 + $0x20] sm:$0xff]
  %v792 = vld [vmem:[#allocation2 + $0x28] sm:$0xff]
  %v793 = vld [vmem:[#allocation2 + $0x30] sm:$0xff]
  %v794 = vld [vmem:[#allocation2 + $0x38] sm:$0xff]
  %s795 = scalar_lea.vmem %s6, 16
  %v796 = vld [vmem:[%s795] sm:$0xf]
  %v797 = vld [vmem:[%s795 + $0x4] sm:$0xf]
  %v798 = vld [vmem:[%s795 + $0x8] sm:$0xf]
  %v799 = vld [vmem:[%s795 + $0xc] sm:$0xf]
  %s800 = scalar_lea.vmem %s7, 16
  %v801 = vld [vmem:[%s800] sm:$0xf]
  %v802 = vld [vmem:[%s800 + $0x4] sm:$0xf]
  %v803 = vld [vmem:[%s800 + $0x8] sm:$0xf]
  %v804 = vld [vmem:[%s800 + $0xc] sm:$0xf]
  %s805 = scalar_lea.vmem %s8, 1
  %v806 = vld [vmem:[%s805] sm:$0x1]
  %v807 = vpack.c.bf16 %v788, %v787
  %v808 = vpack.c.bf16 %v790, %v789
  %v809 = vpack.c.bf16 %v792, %v791
  %v810 = vpack.c.bf16 %v794, %v793
  %v812 = vlaneseq
  %v813 = vshrl.u32 %v812, 7
  %v814 = vsub.s32 0, %v813
  %v815 = vrot.slane %v806, %v814
  %v821 = vunpack.c.l.b16 %v796
  %v822 = vunpack.c.l.b16 %v797
  %v823 = vunpack.c.l.b16 %v798
  %v824 = vunpack.c.l.b16 %v799
  %v825 = vpack.c.b16 %v822, %v821
  %v826 = vpack.c.b16 %v824, %v823
  %v830 = vsel %vm204, %v807, 0
  %v833 = vsel %vm204, %v808, 0
  %v836 = vsel %vm204, %v809, 0
  %v839 = vsel %vm204, %v810, 0
  %841 = vmatprep.subr.bf16.mxu0 0
  %842 = vmatpush1.bf16.msra.mxu0 0
  %843 = vmatprep.subr.bf16.mxu0 0
  %844 = vmatpush1.bf16.msra.mxu0 0
  %845 = vmatprep.subr.bf16.mxu0 0
  %846 = vmatpush1.bf16.msra.mxu0 0
  %847 = vmatprep.subr.bf16.mxu0 0
  %848 = vmatpush1.bf16.msra.mxu0 0
  %849 = vmatprep.subr.bf16.mxu0 0
  %850 = vmatpush1.bf16.msra.mxu0 0
  %851 = vmatprep.subr.bf16.mxu0 0
  %852 = vmatpush1.bf16.msra.mxu0 0
  %853 = vmatprep.subr.bf16.mxu0 0
  %854 = vmatpush1.bf16.msra.mxu0 %v826
  %855 = vmatprep.subr.bf16.mxu0 0
  %856 = vmatpush1.bf16.msra.mxu0 %v825
  %857 = vmatprep.subr.bf16.mxu0 0
  %858 = vmatpush2.bf16.msra.mxu0 0
  %859 = vmatprep.subr.bf16.mxu0 0
  %860 = vmatpush2.bf16.msra.mxu0 0
  %861 = vmatprep.subr.bf16.mxu0 0
  %862 = vmatpush2.bf16.msra.mxu0 0
  %863 = vmatprep.subr.bf16.mxu0 0
  %864 = vmatpush2.bf16.msra.mxu0 0
  %865 = vmatprep.subr.bf16.mxu0 0
  %866 = vmatpush2.bf16.msra.mxu0 0
  %867 = vmatprep.subr.bf16.mxu0 0
  %868 = vmatpush2.bf16.msra.mxu0 0
  %869 = vmatprep.subr.bf16.mxu0 0
  %870 = vmatpush2.bf16.msra.mxu0 0
  %871 = vmatprep.subr.bf16.mxu0 0
  %872 = vmatpush2.bf16.msra.mxu0 0
  %873 = vmatprep.mubr.bf16.mxu0 0
  %874 = vmatmul.mubr.bf16.gmra.mxu0 %v830
  %v875 = vpop.f32.mrf.mxu0
  %v876 = vadd.f32 %v815, %v875
  %v877 = vpop.f32.mrf.mxu0
  %v878 = vpop.f32.mrf.mxu0
  %v879 = vadd.f32 %v815, %v878
  %v880 = vpop.f32.mrf.mxu0
  %881 = vmatprep.mubr.bf16.mxu0 0
  %882 = vmatmul.mubr.bf16.gmra.mxu0 %v833
  %v883 = vpop.f32.mrf.mxu0
  %v884 = vadd.f32 %v815, %v883
  %v885 = vpop.f32.mrf.mxu0
  %v886 = vpop.f32.mrf.mxu0
  %v887 = vadd.f32 %v815, %v886
  %v888 = vpop.f32.mrf.mxu0
  %889 = vmatprep.mubr.bf16.mxu0 0
  %890 = vmatmul.mubr.bf16.gmra.mxu0 %v836
  %v891 = vpop.f32.mrf.mxu0
  %v892 = vadd.f32 %v815, %v891
  %v893 = vpop.f32.mrf.mxu0
  %v894 = vpop.f32.mrf.mxu0
  %v895 = vadd.f32 %v815, %v894
  %v896 = vpop.f32.mrf.mxu0
  %897 = vmatprep.mubr.bf16.mxu0 0
  %898 = vmatmul.mubr.bf16.gmra.mxu0 %v839
  %v899 = vpop.f32.mrf.mxu0
  %v900 = vadd.f32 %v815, %v899
  %v901 = vpop.f32.mrf.mxu0
  %v902 = vpop.f32.mrf.mxu0
  %v903 = vadd.f32 %v815, %v902
  %v904 = vpop.f32.mrf.mxu0
  %905 = vdwg.mxu0
  %s906 = scalar_lea.vmem %s1, 8
  %v907 = vld [vmem:[%s906] sm:$0xff]
  %v908 = vpack.c.bf16 %v907, %v907
  %v913 = vunpack.c.l.b16 %v801
  %v914 = vunpack.c.l.b16 %v802
  %v915 = vunpack.c.l.b16 %v803
  %v916 = vunpack.c.l.b16 %v804
  %v917 = vpack.c.b16 %v914, %v913
  %v918 = vpack.c.b16 %v916, %v915
  %v922 = vsel %vm204, %v908, 0
  %924 = vmatprep.subr.bf16.mxu0 0
  %925 = vmatpush1.bf16.msra.mxu0 0
  %926 = vmatprep.subr.bf16.mxu0 0
  %927 = vmatpush1.bf16.msra.mxu0 0
  %928 = vmatprep.subr.bf16.mxu0 0
  %929 = vmatpush1.bf16.msra.mxu0 0
  %930 = vmatprep.subr.bf16.mxu0 0
  %931 = vmatpush1.bf16.msra.mxu0 0
  %932 = vmatprep.subr.bf16.mxu0 0
  %933 = vmatpush1.bf16.msra.mxu0 0
  %934 = vmatprep.subr.bf16.mxu0 0
  %935 = vmatpush1.bf16.msra.mxu0 0
  %936 = vmatprep.subr.bf16.mxu0 0
  %937 = vmatpush1.bf16.msra.mxu0 %v918
  %938 = vmatprep.subr.bf16.mxu0 0
  %939 = vmatpush1.bf16.msra.mxu0 %v917
  %940 = vmatprep.subr.bf16.mxu0 0
  %941 = vmatpush2.bf16.msra.mxu0 0
  %942 = vmatprep.subr.bf16.mxu0 0
  %943 = vmatpush2.bf16.msra.mxu0 0
  %944 = vmatprep.subr.bf16.mxu0 0
  %945 = vmatpush2.bf16.msra.mxu0 0
  %946 = vmatprep.subr.bf16.mxu0 0
  %947 = vmatpush2.bf16.msra.mxu0 0
  %948 = vmatprep.subr.bf16.mxu0 0
  %949 = vmatpush2.bf16.msra.mxu0 0
  %950 = vmatprep.subr.bf16.mxu0 0
  %951 = vmatpush2.bf16.msra.mxu0 0
  %952 = vmatprep.subr.bf16.mxu0 0
  %953 = vmatpush2.bf16.msra.mxu0 0
  %954 = vmatprep.subr.bf16.mxu0 0
  %955 = vmatpush2.bf16.msra.mxu0 0
  %956 = vmatprep.mubr.bf16.mxu0 0
  %957 = vmatmul.mubr.bf16.gmra.mxu0 %v922
  %v958 = vpop.f32.mrf.mxu0
  %v959 = vadd.f32 0.0, %v958
  %v960 = vpop.f32.mrf.mxu0
  %v961 = vpop.f32.mrf.mxu0
  %v962 = vpop.f32.mrf.mxu0
  %963 = vdwg.mxu0
  %v964 = vadd.f32 %v876, %v959
  %v965 = vtanh.pop %v964
  %966 = vst.msk [vmem:[#allocation2] sm:$0xff] %vm204, %v965
  %v967 = vpack.c.bf16 %v965, %v965
  %v969 = vsel %vm204, %v967, 0
  %971 = vmatprep.subr.bf16.mxu0 0
  %972 = vmatpush1.bf16.msra.mxu0 0
  %973 = vmatprep.subr.bf16.mxu0 0
  %974 = vmatpush1.bf16.msra.mxu0 0
  %975 = vmatprep.subr.bf16.mxu0 0
  %976 = vmatpush1.bf16.msra.mxu0 0
  %977 = vmatprep.subr.bf16.mxu0 0
  %978 = vmatpush1.bf16.msra.mxu0 0
  %979 = vmatprep.subr.bf16.mxu0 0
  %980 = vmatpush1.bf16.msra.mxu0 0
  %981 = vmatprep.subr.bf16.mxu0 0
  %982 = vmatpush1.bf16.msra.mxu0 0
  %983 = vmatprep.subr.bf16.mxu0 0
  %984 = vmatpush1.bf16.msra.mxu0 %v918
  %985 = vmatprep.subr.bf16.mxu0 0
  %986 = vmatpush1.bf16.msra.mxu0 %v917
  %987 = vmatprep.subr.bf16.mxu0 0
  %988 = vmatpush2.bf16.msra.mxu0 0
  %989 = vmatprep.subr.bf16.mxu0 0
  %990 = vmatpush2.bf16.msra.mxu0 0
  %991 = vmatprep.subr.bf16.mxu0 0
  %992 = vmatpush2.bf16.msra.mxu0 0
  %993 = vmatprep.subr.bf16.mxu0 0
  %994 = vmatpush2.bf16.msra.mxu0 0
  %995 = vmatprep.subr.bf16.mxu0 0
  %996 = vmatpush2.bf16.msra.mxu0 0
  %997 = vmatprep.subr.bf16.mxu0 0
  %998 = vmatpush2.bf16.msra.mxu0 0
  %999 = vmatprep.subr.bf16.mxu0 0
  %1000 = vmatpush2.bf16.msra.mxu0 0
  %1001 = vmatprep.subr.bf16.mxu0 0
  %1002 = vmatpush2.bf16.msra.mxu0 0
  %1003 = vmatprep.mubr.bf16.mxu0 0
  %1004 = vmatmul.mubr.bf16.gmra.mxu0 %v969
  %v1005 = vpop.f32.mrf.mxu0
  %v1006 = vadd.f32 0.0, %v1005
  %v1007 = vpop.f32.mrf.mxu0
  %v1008 = vpop.f32.mrf.mxu0
  %v1009 = vpop.f32.mrf.mxu0
  %1010 = vdwg.mxu0
  %v1011 = vadd.f32 %v879, %v1006
  %v1012 = vtanh.pop %v1011
  %1013 = vst.msk [vmem:[#allocation2 + $0x8] sm:$0xff] %vm204, %v1012
  %v1014 = vpack.c.bf16 %v1012, %v1012
  %v1016 = vsel %vm204, %v1014, 0
  %1018 = vmatprep.subr.bf16.mxu0 0
  %1019 = vmatpush1.bf16.msra.mxu0 0
  %1020 = vmatprep.subr.bf16.mxu0 0
  %1021 = vmatpush1.bf16.msra.mxu0 0
  %1022 = vmatprep.subr.bf16.mxu0 0
  %1023 = vmatpush1.bf16.msra.mxu0 0
  %1024 = vmatprep.subr.bf16.mxu0 0
  %1025 = vmatpush1.bf16.msra.mxu0 0
  %1026 = vmatprep.subr.bf16.mxu0 0
  %1027 = vmatpush1.bf16.msra.mxu0 0
  %1028 = vmatprep.subr.bf16.mxu0 0
  %1029 = vmatpush1.bf16.msra.mxu0 0
  %1030 = vmatprep.subr.bf16.mxu0 0
  %1031 = vmatpush1.bf16.msra.mxu0 %v918
  %1032 = vmatprep.subr.bf16.mxu0 0
  %1033 = vmatpush1.bf16.msra.mxu0 %v917
  %1034 = vmatprep.subr.bf16.mxu0 0
  %1035 = vmatpush2.bf16.msra.mxu0 0
  %1036 = vmatprep.subr.bf16.mxu0 0
  %1037 = vmatpush2.bf16.msra.mxu0 0
  %1038 = vmatprep.subr.bf16.mxu0 0
  %1039 = vmatpush2.bf16.msra.mxu0 0
  %1040 = vmatprep.subr.bf16.mxu0 0
  %1041 = vmatpush2.bf16.msra.mxu0 0
  %1042 = vmatprep.subr.bf16.mxu0 0
  %1043 = vmatpush2.bf16.msra.mxu0 0
  %1044 = vmatprep.subr.bf16.mxu0 0
  %1045 = vmatpush2.bf16.msra.mxu0 0
  %1046 = vmatprep.subr.bf16.mxu0 0
  %1047 = vmatpush2.bf16.msra.mxu0 0
  %1048 = vmatprep.subr.bf16.mxu0 0
  %1049 = vmatpush2.bf16.msra.mxu0 0
  %1050 = vmatprep.mubr.bf16.mxu0 0
  %1051 = vmatmul.mubr.bf16.gmra.mxu0 %v1016
  %v1052 = vpop.f32.mrf.mxu0
  %v1053 = vadd.f32 0.0, %v1052
  %v1054 = vpop.f32.mrf.mxu0
  %v1055 = vpop.f32.mrf.mxu0
  %v1056 = vpop.f32.mrf.mxu0
  %1057 = vdwg.mxu0
  %v1058 = vadd.f32 %v884, %v1053
  %v1059 = vtanh.pop %v1058
  %1060 = vst.msk [vmem:[#allocation2 + $0x10] sm:$0xff] %vm204, %v1059
  %v1061 = vpack.c.bf16 %v1059, %v1059
  %v1063 = vsel %vm204, %v1061, 0
  %1065 = vmatprep.subr.bf16.mxu0 0
  %1066 = vmatpush1.bf16.msra.mxu0 0
  %1067 = vmatprep.subr.bf16.mxu0 0
  %1068 = vmatpush1.bf16.msra.mxu0 0
  %1069 = vmatprep.subr.bf16.mxu0 0
  %1070 = vmatpush1.bf16.msra.mxu0 0
  %1071 = vmatprep.subr.bf16.mxu0 0
  %1072 = vmatpush1.bf16.msra.mxu0 0
  %1073 = vmatprep.subr.bf16.mxu0 0
  %1074 = vmatpush1.bf16.msra.mxu0 0
  %1075 = vmatprep.subr.bf16.mxu0 0
  %1076 = vmatpush1.bf16.msra.mxu0 0
  %1077 = vmatprep.subr.bf16.mxu0 0
  %1078 = vmatpush1.bf16.msra.mxu0 %v918
  %1079 = vmatprep.subr.bf16.mxu0 0
  %1080 = vmatpush1.bf16.msra.mxu0 %v917
  %1081 = vmatprep.subr.bf16.mxu0 0
  %1082 = vmatpush2.bf16.msra.mxu0 0
  %1083 = vmatprep.subr.bf16.mxu0 0
  %1084 = vmatpush2.bf16.msra.mxu0 0
  %1085 = vmatprep.subr.bf16.mxu0 0
  %1086 = vmatpush2.bf16.msra.mxu0 0
  %1087 = vmatprep.subr.bf16.mxu0 0
  %1088 = vmatpush2.bf16.msra.mxu0 0
  %1089 = vmatprep.subr.bf16.mxu0 0
  %1090 = vmatpush2.bf16.msra.mxu0 0
  %1091 = vmatprep.subr.bf16.mxu0 0
  %1092 = vmatpush2.bf16.msra.mxu0 0
  %1093 = vmatprep.subr.bf16.mxu0 0
  %1094 = vmatpush2.bf16.msra.mxu0 0
  %1095 = vmatprep.subr.bf16.mxu0 0
  %1096 = vmatpush2.bf16.msra.mxu0 0
  %1097 = vmatprep.mubr.bf16.mxu0 0
  %1098 = vmatmul.mubr.bf16.gmra.mxu0 %v1063
  %v1099 = vpop.f32.mrf.mxu0
  %v1100 = vadd.f32 0.0, %v1099
  %v1101 = vpop.f32.mrf.mxu0
  %v1102 = vpop.f32.mrf.mxu0
  %v1103 = vpop.f32.mrf.mxu0
  %1104 = vdwg.mxu0
  %v1105 = vadd.f32 %v887, %v1100
  %v1106 = vtanh.pop %v1105
  %1107 = vst.msk [vmem:[#allocation2 + $0x18] sm:$0xff] %vm204, %v1106
  %v1108 = vpack.c.bf16 %v1106, %v1106
  %v1110 = vsel %vm204, %v1108, 0
  %1112 = vmatprep.subr.bf16.mxu0 0
  %1113 = vmatpush1.bf16.msra.mxu0 0
  %1114 = vmatprep.subr.bf16.mxu0 0
  %1115 = vmatpush1.bf16.msra.mxu0 0
  %1116 = vmatprep.subr.bf16.mxu0 0
  %1117 = vmatpush1.bf16.msra.mxu0 0
  %1118 = vmatprep.subr.bf16.mxu0 0
  %1119 = vmatpush1.bf16.msra.mxu0 0
  %1120 = vmatprep.subr.bf16.mxu0 0
  %1121 = vmatpush1.bf16.msra.mxu0 0
  %1122 = vmatprep.subr.bf16.mxu0 0
  %1123 = vmatpush1.bf16.msra.mxu0 0
  %1124 = vmatprep.subr.bf16.mxu0 0
  %1125 = vmatpush1.bf16.msra.mxu0 %v918
  %1126 = vmatprep.subr.bf16.mxu0 0
  %1127 = vmatpush1.bf16.msra.mxu0 %v917
  %1128 = vmatprep.subr.bf16.mxu0 0
  %1129 = vmatpush2.bf16.msra.mxu0 0
  %1130 = vmatprep.subr.bf16.mxu0 0
  %1131 = vmatpush2.bf16.msra.mxu0 0
  %1132 = vmatprep.subr.bf16.mxu0 0
  %1133 = vmatpush2.bf16.msra.mxu0 0
  %1134 = vmatprep.subr.bf16.mxu0 0
  %1135 = vmatpush2.bf16.msra.mxu0 0
  %1136 = vmatprep.subr.bf16.mxu0 0
  %1137 = vmatpush2.bf16.msra.mxu0 0
  %1138 = vmatprep.subr.bf16.mxu0 0
  %1139 = vmatpush2.bf16.msra.mxu0 0
  %1140 = vmatprep.subr.bf16.mxu0 0
  %1141 = vmatpush2.bf16.msra.mxu0 0
  %1142 = vmatprep.subr.bf16.mxu0 0
  %1143 = vmatpush2.bf16.msra.mxu0 0
  %1144 = vmatprep.mubr.bf16.mxu0 0
  %1145 = vmatmul.mubr.bf16.gmra.mxu0 %v1110
  %v1146 = vpop.f32.mrf.mxu0
  %v1147 = vadd.f32 0.0, %v1146
  %v1148 = vpop.f32.mrf.mxu0
  %v1149 = vpop.f32.mrf.mxu0
  %v1150 = vpop.f32.mrf.mxu0
  %1151 = vdwg.mxu0
  %v1152 = vadd.f32 %v892, %v1147
  %v1153 = vtanh.pop %v1152
  %1154 = vst.msk [vmem:[#allocation2 + $0x20] sm:$0xff] %vm204, %v1153
  %v1155 = vpack.c.bf16 %v1153, %v1153
  %v1157 = vsel %vm204, %v1155, 0
  %1159 = vmatprep.subr.bf16.mxu0 0
  %1160 = vmatpush1.bf16.msra.mxu0 0
  %1161 = vmatprep.subr.bf16.mxu0 0
  %1162 = vmatpush1.bf16.msra.mxu0 0
  %1163 = vmatprep.subr.bf16.mxu0 0
  %1164 = vmatpush1.bf16.msra.mxu0 0
  %1165 = vmatprep.subr.bf16.mxu0 0
  %1166 = vmatpush1.bf16.msra.mxu0 0
  %1167 = vmatprep.subr.bf16.mxu0 0
  %1168 = vmatpush1.bf16.msra.mxu0 0
  %1169 = vmatprep.subr.bf16.mxu0 0
  %1170 = vmatpush1.bf16.msra.mxu0 0
  %1171 = vmatprep.subr.bf16.mxu0 0
  %1172 = vmatpush1.bf16.msra.mxu0 %v918
  %1173 = vmatprep.subr.bf16.mxu0 0
  %1174 = vmatpush1.bf16.msra.mxu0 %v917
  %1175 = vmatprep.subr.bf16.mxu0 0
  %1176 = vmatpush2.bf16.msra.mxu0 0
  %1177 = vmatprep.subr.bf16.mxu0 0
  %1178 = vmatpush2.bf16.msra.mxu0 0
  %1179 = vmatprep.subr.bf16.mxu0 0
  %1180 = vmatpush2.bf16.msra.mxu0 0
  %1181 = vmatprep.subr.bf16.mxu0 0
  %1182 = vmatpush2.bf16.msra.mxu0 0
  %1183 = vmatprep.subr.bf16.mxu0 0
  %1184 = vmatpush2.bf16.msra.mxu0 0
  %1185 = vmatprep.subr.bf16.mxu0 0
  %1186 = vmatpush2.bf16.msra.mxu0 0
  %1187 = vmatprep.subr.bf16.mxu0 0
  %1188 = vmatpush2.bf16.msra.mxu0 0
  %1189 = vmatprep.subr.bf16.mxu0 0
  %1190 = vmatpush2.bf16.msra.mxu0 0
  %1191 = vmatprep.mubr.bf16.mxu0 0
  %1192 = vmatmul.mubr.bf16.gmra.mxu0 %v1157
  %v1193 = vpop.f32.mrf.mxu0
  %v1194 = vadd.f32 0.0, %v1193
  %v1195 = vpop.f32.mrf.mxu0
  %v1196 = vpop.f32.mrf.mxu0
  %v1197 = vpop.f32.mrf.mxu0
  %1198 = vdwg.mxu0
  %v1199 = vadd.f32 %v895, %v1194
  %v1200 = vtanh.pop %v1199
  %1201 = vst.msk [vmem:[#allocation2 + $0x28] sm:$0xff] %vm204, %v1200
  %v1202 = vpack.c.bf16 %v1200, %v1200
  %v1204 = vsel %vm204, %v1202, 0
  %1206 = vmatprep.subr.bf16.mxu0 0
  %1207 = vmatpush1.bf16.msra.mxu0 0
  %1208 = vmatprep.subr.bf16.mxu0 0
  %1209 = vmatpush1.bf16.msra.mxu0 0
  %1210 = vmatprep.subr.bf16.mxu0 0
  %1211 = vmatpush1.bf16.msra.mxu0 0
  %1212 = vmatprep.subr.bf16.mxu0 0
  %1213 = vmatpush1.bf16.msra.mxu0 0
  %1214 = vmatprep.subr.bf16.mxu0 0
  %1215 = vmatpush1.bf16.msra.mxu0 0
  %1216 = vmatprep.subr.bf16.mxu0 0
  %1217 = vmatpush1.bf16.msra.mxu0 0
  %1218 = vmatprep.subr.bf16.mxu0 0
  %1219 = vmatpush1.bf16.msra.mxu0 %v918
  %1220 = vmatprep.subr.bf16.mxu0 0
  %1221 = vmatpush1.bf16.msra.mxu0 %v917
  %1222 = vmatprep.subr.bf16.mxu0 0
  %1223 = vmatpush2.bf16.msra.mxu0 0
  %1224 = vmatprep.subr.bf16.mxu0 0
  %1225 = vmatpush2.bf16.msra.mxu0 0
  %1226 = vmatprep.subr.bf16.mxu0 0
  %1227 = vmatpush2.bf16.msra.mxu0 0
  %1228 = vmatprep.subr.bf16.mxu0 0
  %1229 = vmatpush2.bf16.msra.mxu0 0
  %1230 = vmatprep.subr.bf16.mxu0 0
  %1231 = vmatpush2.bf16.msra.mxu0 0
  %1232 = vmatprep.subr.bf16.mxu0 0
  %1233 = vmatpush2.bf16.msra.mxu0 0
  %1234 = vmatprep.subr.bf16.mxu0 0
  %1235 = vmatpush2.bf16.msra.mxu0 0
  %1236 = vmatprep.subr.bf16.mxu0 0
  %1237 = vmatpush2.bf16.msra.mxu0 0
  %1238 = vmatprep.mubr.bf16.mxu0 0
  %1239 = vmatmul.mubr.bf16.gmra.mxu0 %v1204
  %v1240 = vpop.f32.mrf.mxu0
  %v1241 = vadd.f32 0.0, %v1240
  %v1242 = vpop.f32.mrf.mxu0
  %v1243 = vpop.f32.mrf.mxu0
  %v1244 = vpop.f32.mrf.mxu0
  %1245 = vdwg.mxu0
  %v1246 = vadd.f32 %v900, %v1241
  %v1247 = vtanh.pop %v1246
  %1248 = vst.msk [vmem:[#allocation2 + $0x30] sm:$0xff] %vm204, %v1247
  %v1249 = vpack.c.bf16 %v1247, %v1247
  %v1251 = vsel %vm204, %v1249, 0
  %1253 = vmatprep.subr.bf16.mxu0 0
  %1254 = vmatpush1.bf16.msra.mxu0 0
  %1255 = vmatprep.subr.bf16.mxu0 0
  %1256 = vmatpush1.bf16.msra.mxu0 0
  %1257 = vmatprep.subr.bf16.mxu0 0
  %1258 = vmatpush1.bf16.msra.mxu0 0
  %1259 = vmatprep.subr.bf16.mxu0 0
  %1260 = vmatpush1.bf16.msra.mxu0 0
  %1261 = vmatprep.subr.bf16.mxu0 0
  %1262 = vmatpush1.bf16.msra.mxu0 0
  %1263 = vmatprep.subr.bf16.mxu0 0
  %1264 = vmatpush1.bf16.msra.mxu0 0
  %1265 = vmatprep.subr.bf16.mxu0 0
  %1266 = vmatpush1.bf16.msra.mxu0 %v918
  %1267 = vmatprep.subr.bf16.mxu0 0
  %1268 = vmatpush1.bf16.msra.mxu0 %v917
  %1269 = vmatprep.subr.bf16.mxu0 0
  %1270 = vmatpush2.bf16.msra.mxu0 0
  %1271 = vmatprep.subr.bf16.mxu0 0
  %1272 = vmatpush2.bf16.msra.mxu0 0
  %1273 = vmatprep.subr.bf16.mxu0 0
  %1274 = vmatpush2.bf16.msra.mxu0 0
  %1275 = vmatprep.subr.bf16.mxu0 0
  %1276 = vmatpush2.bf16.msra.mxu0 0
  %1277 = vmatprep.subr.bf16.mxu0 0
  %1278 = vmatpush2.bf16.msra.mxu0 0
  %1279 = vmatprep.subr.bf16.mxu0 0
  %1280 = vmatpush2.bf16.msra.mxu0 0
  %1281 = vmatprep.subr.bf16.mxu0 0
  %1282 = vmatpush2.bf16.msra.mxu0 0
  %1283 = vmatprep.subr.bf16.mxu0 0
  %1284 = vmatpush2.bf16.msra.mxu0 0
  %1285 = vmatprep.mubr.bf16.mxu0 0
  %1286 = vmatmul.mubr.bf16.gmra.mxu0 %v1251
  %v1287 = vpop.f32.mrf.mxu0
  %v1288 = vadd.f32 0.0, %v1287
  %v1289 = vpop.f32.mrf.mxu0
  %v1290 = vpop.f32.mrf.mxu0
  %v1291 = vpop.f32.mrf.mxu0
  %1292 = vdwg.mxu0
  %v1293 = vadd.f32 %v903, %v1288
  %v1294 = vtanh.pop %v1293
  %1295 = vst.msk [vmem:[#allocation2 + $0x38] sm:$0xff] %vm204, %v1294
  %v1296 = vld [vmem:[%s9] sm:$0xf]
  %v1297 = vld [vmem:[%s9 + $0x4] sm:$0xf]
  %v1298 = vld [vmem:[%s9 + $0x8] sm:$0xf]
  %v1299 = vld [vmem:[%s9 + $0xc] sm:$0xf]
  %v1300 = vld [vmem:[%s11] sm:$0xf]
  %v1301 = vld [vmem:[%s11 + $0x4] sm:$0xf]
  %v1302 = vld [vmem:[%s11 + $0x8] sm:$0xf]
  %v1303 = vld [vmem:[%s11 + $0xc] sm:$0xf]
  %v1304 = vld [vmem:[%s10] sm:$0x1]
  %v1306 = vlaneseq
  %v1307 = vshrl.u32 %v1306, 7
  %v1308 = vsub.s32 0, %v1307
  %v1309 = vrot.slane %v1304, %v1308
  %v1311 = vld [vmem:[%s12] sm:$0x1]
  %v1313 = vlaneseq
  %v1314 = vshrl.u32 %v1313, 7
  %v1315 = vsub.s32 0, %v1314
  %v1316 = vrot.slane %v1311, %v1315
  %v1318 = vld [vmem:[%s13] sm:$0xf]
  %v1319 = vld [vmem:[%s13 + $0x4] sm:$0xf]
  %v1320 = vld [vmem:[#allocation2] ss:$8 sm:$0xf]
  %v1321 = vld [vmem:[#allocation2] ss:$8 sm:$0xf0]
  %v1322 = vor.u32 %v1320, %v1321
  %v1323 = vpack.c.bf16 %v1322, %v1322
  %v1328 = vunpack.c.l.b16 %v1296
  %v1329 = vunpack.c.l.b16 %v1297
  %v1330 = vunpack.c.l.b16 %v1298
  %v1331 = vunpack.c.l.b16 %v1299
  %v1332 = vpack.c.b16 %v1329, %v1328
  %v1333 = vpack.c.b16 %v1331, %v1330
  %v1337 = vsel %vm204, %v1323, 0
  %1339 = vmatprep.subr.bf16.mxu0 0
  %1340 = vmatpush1.bf16.msra.mxu0 0
  %1341 = vmatprep.subr.bf16.mxu0 0
  %1342 = vmatpush1.bf16.msra.mxu0 0
  %1343 = vmatprep.subr.bf16.mxu0 0
  %1344 = vmatpush1.bf16.msra.mxu0 0
  %1345 = vmatprep.subr.bf16.mxu0 0
  %1346 = vmatpush1.bf16.msra.mxu0 0
  %1347 = vmatprep.subr.bf16.mxu0 0
  %1348 = vmatpush1.bf16.msra.mxu0 0
  %1349 = vmatprep.subr.bf16.mxu0 0
  %1350 = vmatpush1.bf16.msra.mxu0 0
  %1351 = vmatprep.subr.bf16.mxu0 0
  %1352 = vmatpush1.bf16.msra.mxu0 %v1333
  %1353 = vmatprep.subr.bf16.mxu0 0
  %1354 = vmatpush1.bf16.msra.mxu0 %v1332
  %1355 = vmatprep.subr.bf16.mxu0 0
  %1356 = vmatpush2.bf16.msra.mxu0 0
  %1357 = vmatprep.subr.bf16.mxu0 0
  %1358 = vmatpush2.bf16.msra.mxu0 0
  %1359 = vmatprep.subr.bf16.mxu0 0
  %1360 = vmatpush2.bf16.msra.mxu0 0
  %1361 = vmatprep.subr.bf16.mxu0 0
  %1362 = vmatpush2.bf16.msra.mxu0 0
  %1363 = vmatprep.subr.bf16.mxu0 0
  %1364 = vmatpush2.bf16.msra.mxu0 0
  %1365 = vmatprep.subr.bf16.mxu0 0
  %1366 = vmatpush2.bf16.msra.mxu0 0
  %1367 = vmatprep.subr.bf16.mxu0 0
  %1368 = vmatpush2.bf16.msra.mxu0 0
  %1369 = vmatprep.subr.bf16.mxu0 0
  %1370 = vmatpush2.bf16.msra.mxu0 0
  %1371 = vmatprep.mubr.bf16.mxu0 0
  %1372 = vmatmul.mubr.bf16.gmra.mxu0 %v1337
  %v1373 = vpop.f32.mrf.mxu0
  %v1374 = vadd.f32 %v1309, %v1373
  %v1375 = vpop.f32.mrf.mxu0
  %v1376 = vpop.f32.mrf.mxu0
  %v1377 = vpop.f32.mrf.mxu0
  %1378 = vdwg.mxu0
  %v1379 = vmax.f32 %v1374, 0.0
  %v1380 = vpack.c.bf16 %v1379, %v1379
  %v1385 = vunpack.c.l.b16 %v1300
  %v1386 = vunpack.c.l.b16 %v1301
  %v1387 = vunpack.c.l.b16 %v1302
  %v1388 = vunpack.c.l.b16 %v1303
  %v1389 = vpack.c.b16 %v1386, %v1385
  %v1390 = vpack.c.b16 %v1388, %v1387
  %v1394 = vsel %vm204, %v1380, 0
  %1396 = vmatprep.subr.bf16.mxu0 0
  %1397 = vmatpush1.bf16.msra.mxu0 0
  %1398 = vmatprep.subr.bf16.mxu0 0
  %1399 = vmatpush1.bf16.msra.mxu0 0
  %1400 = vmatprep.subr.bf16.mxu0 0
  %1401 = vmatpush1.bf16.msra.mxu0 0
  %1402 = vmatprep.subr.bf16.mxu0 0
  %1403 = vmatpush1.bf16.msra.mxu0 0
  %1404 = vmatprep.subr.bf16.mxu0 0
  %1405 = vmatpush1.bf16.msra.mxu0 0
  %1406 = vmatprep.subr.bf16.mxu0 0
  %1407 = vmatpush1.bf16.msra.mxu0 0
  %1408 = vmatprep.subr.bf16.mxu0 0
  %1409 = vmatpush1.bf16.msra.mxu0 %v1390
  %1410 = vmatprep.subr.bf16.mxu0 0
  %1411 = vmatpush1.bf16.msra.mxu0 %v1389
  %1412 = vmatprep.subr.bf16.mxu0 0
  %1413 = vmatpush2.bf16.msra.mxu0 0
  %1414 = vmatprep.subr.bf16.mxu0 0
  %1415 = vmatpush2.bf16.msra.mxu0 0
  %1416 = vmatprep.subr.bf16.mxu0 0
  %1417 = vmatpush2.bf16.msra.mxu0 0
  %1418 = vmatprep.subr.bf16.mxu0 0
  %1419 = vmatpush2.bf16.msra.mxu0 0
  %1420 = vmatprep.subr.bf16.mxu0 0
  %1421 = vmatpush2.bf16.msra.mxu0 0
  %1422 = vmatprep.subr.bf16.mxu0 0
  %1423 = vmatpush2.bf16.msra.mxu0 0
  %1424 = vmatprep.subr.bf16.mxu0 0
  %1425 = vmatpush2.bf16.msra.mxu0 0
  %1426 = vmatprep.subr.bf16.mxu0 0
  %1427 = vmatpush2.bf16.msra.mxu0 0
  %1428 = vmatprep.mubr.bf16.mxu0 0
  %1429 = vmatmul.mubr.bf16.gmra.mxu0 %v1394
  %v1430 = vpop.f32.mrf.mxu0
  %v1431 = vadd.f32 %v1316, %v1430
  %v1432 = vpop.f32.mrf.mxu0
  %v1433 = vpop.f32.mrf.mxu0
  %v1434 = vpop.f32.mrf.mxu0
  %1435 = vdwg.mxu0
  %v1436 = vpack.c.bf16 %v1431, %v1431
  %v1439 = vunpack.c.l.b16 %v1318
  %v1440 = vunpack.c.l.b16 %v1319
  %v1441 = vpack.c.b16 %v1440, %v1439
  %v1444 = vsel %vm91, %v1436, 0
  %1446 = vmatprep.subr.bf16.mxu0 0
  %1447 = vmatpush1.bf16.msra.mxu0 0
  %1448 = vmatprep.subr.bf16.mxu0 0
  %1449 = vmatpush1.bf16.msra.mxu0 0
  %1450 = vmatprep.subr.bf16.mxu0 0
  %1451 = vmatpush1.bf16.msra.mxu0 0
  %1452 = vmatprep.subr.bf16.mxu0 0
  %1453 = vmatpush1.bf16.msra.mxu0 0
  %1454 = vmatprep.subr.bf16.mxu0 0
  %1455 = vmatpush1.bf16.msra.mxu0 0
  %1456 = vmatprep.subr.bf16.mxu0 0
  %1457 = vmatpush1.bf16.msra.mxu0 0
  %1458 = vmatprep.subr.bf16.mxu0 0
  %1459 = vmatpush1.bf16.msra.mxu0 0
  %1460 = vmatprep.subr.bf16.mxu0 0
  %1461 = vmatpush1.bf16.msra.mxu0 %v1441
  %1462 = vmatprep.subr.bf16.mxu0 0
  %1463 = vmatpush2.bf16.msra.mxu0 0
  %1464 = vmatprep.subr.bf16.mxu0 0
  %1465 = vmatpush2.bf16.msra.mxu0 0
  %1466 = vmatprep.subr.bf16.mxu0 0
  %1467 = vmatpush2.bf16.msra.mxu0 0
  %1468 = vmatprep.subr.bf16.mxu0 0
  %1469 = vmatpush2.bf16.msra.mxu0 0
  %1470 = vmatprep.subr.bf16.mxu0 0
  %1471 = vmatpush2.bf16.msra.mxu0 0
  %1472 = vmatprep.subr.bf16.mxu0 0
  %1473 = vmatpush2.bf16.msra.mxu0 0
  %1474 = vmatprep.subr.bf16.mxu0 0
  %1475 = vmatpush2.bf16.msra.mxu0 0
  %1476 = vmatprep.subr.bf16.mxu0 0
  %1477 = vmatpush2.bf16.msra.mxu0 0
  %1478 = vmatprep.mubr.bf16.mxu0 0
  %1479 = vmatmul.mubr.bf16.gmra.mxu0 %v1444
  %v1480 = vpop.f32.mrf.mxu0
  %v1481 = vadd.f32 0.0, %v1480
  %v1482 = vpop.f32.mrf.mxu0
  %v1483 = vpop.f32.mrf.mxu0
  %v1484 = vpop.f32.mrf.mxu0
  %1485 = vdwg.mxu0
  %1486 = vst.msk [vmem:[%s14] sm:$0xff] %vm204, %v1481
  %s1487 = scalar_lea.vmem [#allocation2], 1
  %v1488 = vld [vmem:[%s1487] ss:$8 sm:$0xf]
  %v1489 = vld [vmem:[%s1487] ss:$8 sm:$0xf0]
  %v1490 = vor.u32 %v1488, %v1489
  %v1491 = vpack.c.bf16 %v1490, %v1490
  %v1493 = vsel %vm204, %v1491, 0
  %1495 = vmatprep.subr.bf16.mxu0 0
  %1496 = vmatpush1.bf16.msra.mxu0 0
  %1497 = vmatprep.subr.bf16.mxu0 0
  %1498 = vmatpush1.bf16.msra.mxu0 0
  %1499 = vmatprep.subr.bf16.mxu0 0
  %1500 = vmatpush1.bf16.msra.mxu0 0
  %1501 = vmatprep.subr.bf16.mxu0 0
  %1502 = vmatpush1.bf16.msra.mxu0 0
  %1503 = vmatprep.subr.bf16.mxu0 0
  %1504 = vmatpush1.bf16.msra.mxu0 0
  %1505 = vmatprep.subr.bf16.mxu0 0
  %1506 = vmatpush1.bf16.msra.mxu0 0
  %1507 = vmatprep.subr.bf16.mxu0 0
  %1508 = vmatpush1.bf16.msra.mxu0 %v1333
  %1509 = vmatprep.subr.bf16.mxu0 0
  %1510 = vmatpush1.bf16.msra.mxu0 %v1332
  %1511 = vmatprep.subr.bf16.mxu0 0
  %1512 = vmatpush2.bf16.msra.mxu0 0
  %1513 = vmatprep.subr.bf16.mxu0 0
  %1514 = vmatpush2.bf16.msra.mxu0 0
  %1515 = vmatprep.subr.bf16.mxu0 0
  %1516 = vmatpush2.bf16.msra.mxu0 0
  %1517 = vmatprep.subr.bf16.mxu0 0
  %1518 = vmatpush2.bf16.msra.mxu0 0
  %1519 = vmatprep.subr.bf16.mxu0 0
  %1520 = vmatpush2.bf16.msra.mxu0 0
  %1521 = vmatprep.subr.bf16.mxu0 0
  %1522 = vmatpush2.bf16.msra.mxu0 0
  %1523 = vmatprep.subr.bf16.mxu0 0
  %1524 = vmatpush2.bf16.msra.mxu0 0
  %1525 = vmatprep.subr.bf16.mxu0 0
  %1526 = vmatpush2.bf16.msra.mxu0 0
  %1527 = vmatprep.mubr.bf16.mxu0 0
  %1528 = vmatmul.mubr.bf16.gmra.mxu0 %v1493
  %v1529 = vpop.f32.mrf.mxu0
  %v1530 = vadd.f32 %v1309, %v1529
  %v1531 = vpop.f32.mrf.mxu0
  %v1532 = vpop.f32.mrf.mxu0
  %v1533 = vpop.f32.mrf.mxu0
  %1534 = vdwg.mxu0
  %v1535 = vmax.f32 %v1530, 0.0
  %v1536 = vpack.c.bf16 %v1535, %v1535
  %v1538 = vsel %vm204, %v1536, 0
  %1540 = vmatprep.subr.bf16.mxu0 0
  %1541 = vmatpush1.bf16.msra.mxu0 0
  %1542 = vmatprep.subr.bf16.mxu0 0
  %1543 = vmatpush1.bf16.msra.mxu0 0
  %1544 = vmatprep.subr.bf16.mxu0 0
  %1545 = vmatpush1.bf16.msra.mxu0 0
  %1546 = vmatprep.subr.bf16.mxu0 0
  %1547 = vmatpush1.bf16.msra.mxu0 0
  %1548 = vmatprep.subr.bf16.mxu0 0
  %1549 = vmatpush1.bf16.msra.mxu0 0
  %1550 = vmatprep.subr.bf16.mxu0 0
  %1551 = vmatpush1.bf16.msra.mxu0 0
  %1552 = vmatprep.subr.bf16.mxu0 0
  %1553 = vmatpush1.bf16.msra.mxu0 %v1390
  %1554 = vmatprep.subr.bf16.mxu0 0
  %1555 = vmatpush1.bf16.msra.mxu0 %v1389
  %1556 = vmatprep.subr.bf16.mxu0 0
  %1557 = vmatpush2.bf16.msra.mxu0 0
  %1558 = vmatprep.subr.bf16.mxu0 0
  %1559 = vmatpush2.bf16.msra.mxu0 0
  %1560 = vmatprep.subr.bf16.mxu0 0
  %1561 = vmatpush2.bf16.msra.mxu0 0
  %1562 = vmatprep.subr.bf16.mxu0 0
  %1563 = vmatpush2.bf16.msra.mxu0 0
  %1564 = vmatprep.subr.bf16.mxu0 0
  %1565 = vmatpush2.bf16.msra.mxu0 0
  %1566 = vmatprep.subr.bf16.mxu0 0
  %1567 = vmatpush2.bf16.msra.mxu0 0
  %1568 = vmatprep.subr.bf16.mxu0 0
  %1569 = vmatpush2.bf16.msra.mxu0 0
  %1570 = vmatprep.subr.bf16.mxu0 0
  %1571 = vmatpush2.bf16.msra.mxu0 0
  %1572 = vmatprep.mubr.bf16.mxu0 0
  %1573 = vmatmul.mubr.bf16.gmra.mxu0 %v1538
  %v1574 = vpop.f32.mrf.mxu0
  %v1575 = vadd.f32 %v1316, %v1574
  %v1576 = vpop.f32.mrf.mxu0
  %v1577 = vpop.f32.mrf.mxu0
  %v1578 = vpop.f32.mrf.mxu0
  %1579 = vdwg.mxu0
  %v1580 = vpack.c.bf16 %v1575, %v1575
  %v1582 = vsel %vm91, %v1580, 0
  %1584 = vmatprep.subr.bf16.mxu0 0
  %1585 = vmatpush1.bf16.msra.mxu0 0
  %1586 = vmatprep.subr.bf16.mxu0 0
  %1587 = vmatpush1.bf16.msra.mxu0 0
  %1588 = vmatprep.subr.bf16.mxu0 0
  %1589 = vmatpush1.bf16.msra.mxu0 0
  %1590 = vmatprep.subr.bf16.mxu0 0
  %1591 = vmatpush1.bf16.msra.mxu0 0
  %1592 = vmatprep.subr.bf16.mxu0 0
  %1593 = vmatpush1.bf16.msra.mxu0 0
  %1594 = vmatprep.subr.bf16.mxu0 0
  %1595 = vmatpush1.bf16.msra.mxu0 0
  %1596 = vmatprep.subr.bf16.mxu0 0
  %1597 = vmatpush1.bf16.msra.mxu0 0
  %1598 = vmatprep.subr.bf16.mxu0 0
  %1599 = vmatpush1.bf16.msra.mxu0 %v1441
  %1600 = vmatprep.subr.bf16.mxu0 0
  %1601 = vmatpush2.bf16.msra.mxu0 0
  %1602 = vmatprep.subr.bf16.mxu0 0
  %1603 = vmatpush2.bf16.msra.mxu0 0
  %1604 = vmatprep.subr.bf16.mxu0 0
  %1605 = vmatpush2.bf16.msra.mxu0 0
  %1606 = vmatprep.subr.bf16.mxu0 0
  %1607 = vmatpush2.bf16.msra.mxu0 0
  %1608 = vmatprep.subr.bf16.mxu0 0
  %1609 = vmatpush2.bf16.msra.mxu0 0
  %1610 = vmatprep.subr.bf16.mxu0 0
  %1611 = vmatpush2.bf16.msra.mxu0 0
  %1612 = vmatprep.subr.bf16.mxu0 0
  %1613 = vmatpush2.bf16.msra.mxu0 0
  %1614 = vmatprep.subr.bf16.mxu0 0
  %1615 = vmatpush2.bf16.msra.mxu0 0
  %1616 = vmatprep.mubr.bf16.mxu0 0
  %1617 = vmatmul.mubr.bf16.gmra.mxu0 %v1582
  %v1618 = vpop.f32.mrf.mxu0
  %v1619 = vadd.f32 0.0, %v1618
  %v1620 = vpop.f32.mrf.mxu0
  %v1621 = vpop.f32.mrf.mxu0
  %v1622 = vpop.f32.mrf.mxu0
  %1623 = vdwg.mxu0
  %s1624 = scalar_lea.vmem %s14, 8
  %1625 = vst.msk [vmem:[%s1624] sm:$0xff] %vm204, %v1619
  %s1626 = scalar_lea.vmem [#allocation2], 2
  %v1627 = vld [vmem:[%s1626] ss:$8 sm:$0xf]
  %v1628 = vld [vmem:[%s1626] ss:$8 sm:$0xf0]
  %v1629 = vor.u32 %v1627, %v1628
  %v1630 = vpack.c.bf16 %v1629, %v1629
  %v1632 = vsel %vm204, %v1630, 0
  %1634 = vmatprep.subr.bf16.mxu0 0
  %1635 = vmatpush1.bf16.msra.mxu0 0
  %1636 = vmatprep.subr.bf16.mxu0 0
  %1637 = vmatpush1.bf16.msra.mxu0 0
  %1638 = vmatprep.subr.bf16.mxu0 0
  %1639 = vmatpush1.bf16.msra.mxu0 0
  %1640 = vmatprep.subr.bf16.mxu0 0
  %1641 = vmatpush1.bf16.msra.mxu0 0
  %1642 = vmatprep.subr.bf16.mxu0 0
  %1643 = vmatpush1.bf16.msra.mxu0 0
  %1644 = vmatprep.subr.bf16.mxu0 0
  %1645 = vmatpush1.bf16.msra.mxu0 0
  %1646 = vmatprep.subr.bf16.mxu0 0
  %1647 = vmatpush1.bf16.msra.mxu0 %v1333
  %1648 = vmatprep.subr.bf16.mxu0 0
  %1649 = vmatpush1.bf16.msra.mxu0 %v1332
  %1650 = vmatprep.subr.bf16.mxu0 0
  %1651 = vmatpush2.bf16.msra.mxu0 0
  %1652 = vmatprep.subr.bf16.mxu0 0
  %1653 = vmatpush2.bf16.msra.mxu0 0
  %1654 = vmatprep.subr.bf16.mxu0 0
  %1655 = vmatpush2.bf16.msra.mxu0 0
  %1656 = vmatprep.subr.bf16.mxu0 0
  %1657 = vmatpush2.bf16.msra.mxu0 0
  %1658 = vmatprep.subr.bf16.mxu0 0
  %1659 = vmatpush2.bf16.msra.mxu0 0
  %1660 = vmatprep.subr.bf16.mxu0 0
  %1661 = vmatpush2.bf16.msra.mxu0 0
  %1662 = vmatprep.subr.bf16.mxu0 0
  %1663 = vmatpush2.bf16.msra.mxu0 0
  %1664 = vmatprep.subr.bf16.mxu0 0
  %1665 = vmatpush2.bf16.msra.mxu0 0
  %1666 = vmatprep.mubr.bf16.mxu0 0
  %1667 = vmatmul.mubr.bf16.gmra.mxu0 %v1632
  %v1668 = vpop.f32.mrf.mxu0
  %v1669 = vadd.f32 %v1309, %v1668
  %v1670 = vpop.f32.mrf.mxu0
  %v1671 = vpop.f32.mrf.mxu0
  %v1672 = vpop.f32.mrf.mxu0
  %1673 = vdwg.mxu0
  %v1674 = vmax.f32 %v1669, 0.0
  %v1675 = vpack.c.bf16 %v1674, %v1674
  %v1677 = vsel %vm204, %v1675, 0
  %1679 = vmatprep.subr.bf16.mxu0 0
  %1680 = vmatpush1.bf16.msra.mxu0 0
  %1681 = vmatprep.subr.bf16.mxu0 0
  %1682 = vmatpush1.bf16.msra.mxu0 0
  %1683 = vmatprep.subr.bf16.mxu0 0
  %1684 = vmatpush1.bf16.msra.mxu0 0
  %1685 = vmatprep.subr.bf16.mxu0 0
  %1686 = vmatpush1.bf16.msra.mxu0 0
  %1687 = vmatprep.subr.bf16.mxu0 0
  %1688 = vmatpush1.bf16.msra.mxu0 0
  %1689 = vmatprep.subr.bf16.mxu0 0
  %1690 = vmatpush1.bf16.msra.mxu0 0
  %1691 = vmatprep.subr.bf16.mxu0 0
  %1692 = vmatpush1.bf16.msra.mxu0 %v1390
  %1693 = vmatprep.subr.bf16.mxu0 0
  %1694 = vmatpush1.bf16.msra.mxu0 %v1389
  %1695 = vmatprep.subr.bf16.mxu0 0
  %1696 = vmatpush2.bf16.msra.mxu0 0
  %1697 = vmatprep.subr.bf16.mxu0 0
  %1698 = vmatpush2.bf16.msra.mxu0 0
  %1699 = vmatprep.subr.bf16.mxu0 0
  %1700 = vmatpush2.bf16.msra.mxu0 0
  %1701 = vmatprep.subr.bf16.mxu0 0
  %1702 = vmatpush2.bf16.msra.mxu0 0
  %1703 = vmatprep.subr.bf16.mxu0 0
  %1704 = vmatpush2.bf16.msra.mxu0 0
  %1705 = vmatprep.subr.bf16.mxu0 0
  %1706 = vmatpush2.bf16.msra.mxu0 0
  %1707 = vmatprep.subr.bf16.mxu0 0
  %1708 = vmatpush2.bf16.msra.mxu0 0
  %1709 = vmatprep.subr.bf16.mxu0 0
  %1710 = vmatpush2.bf16.msra.mxu0 0
  %1711 = vmatprep.mubr.bf16.mxu0 0
  %1712 = vmatmul.mubr.bf16.gmra.mxu0 %v1677
  %v1713 = vpop.f32.mrf.mxu0
  %v1714 = vadd.f32 %v1316, %v1713
  %v1715 = vpop.f32.mrf.mxu0
  %v1716 = vpop.f32.mrf.mxu0
  %v1717 = vpop.f32.mrf.mxu0
  %1718 = vdwg.mxu0
  %v1719 = vpack.c.bf16 %v1714, %v1714
  %v1721 = vsel %vm91, %v1719, 0
  %1723 = vmatprep.subr.bf16.mxu0 0
  %1724 = vmatpush1.bf16.msra.mxu0 0
  %1725 = vmatprep.subr.bf16.mxu0 0
  %1726 = vmatpush1.bf16.msra.mxu0 0
  %1727 = vmatprep.subr.bf16.mxu0 0
  %1728 = vmatpush1.bf16.msra.mxu0 0
  %1729 = vmatprep.subr.bf16.mxu0 0
  %1730 = vmatpush1.bf16.msra.mxu0 0
  %1731 = vmatprep.subr.bf16.mxu0 0
  %1732 = vmatpush1.bf16.msra.mxu0 0
  %1733 = vmatprep.subr.bf16.mxu0 0
  %1734 = vmatpush1.bf16.msra.mxu0 0
  %1735 = vmatprep.subr.bf16.mxu0 0
  %1736 = vmatpush1.bf16.msra.mxu0 0
  %1737 = vmatprep.subr.bf16.mxu0 0
  %1738 = vmatpush1.bf16.msra.mxu0 %v1441
  %1739 = vmatprep.subr.bf16.mxu0 0
  %1740 = vmatpush2.bf16.msra.mxu0 0
  %1741 = vmatprep.subr.bf16.mxu0 0
  %1742 = vmatpush2.bf16.msra.mxu0 0
  %1743 = vmatprep.subr.bf16.mxu0 0
  %1744 = vmatpush2.bf16.msra.mxu0 0
  %1745 = vmatprep.subr.bf16.mxu0 0
  %1746 = vmatpush2.bf16.msra.mxu0 0
  %1747 = vmatprep.subr.bf16.mxu0 0
  %1748 = vmatpush2.bf16.msra.mxu0 0
  %1749 = vmatprep.subr.bf16.mxu0 0
  %1750 = vmatpush2.bf16.msra.mxu0 0
  %1751 = vmatprep.subr.bf16.mxu0 0
  %1752 = vmatpush2.bf16.msra.mxu0 0
  %1753 = vmatprep.subr.bf16.mxu0 0
  %1754 = vmatpush2.bf16.msra.mxu0 0
  %1755 = vmatprep.mubr.bf16.mxu0 0
  %1756 = vmatmul.mubr.bf16.gmra.mxu0 %v1721
  %v1757 = vpop.f32.mrf.mxu0
  %v1758 = vadd.f32 0.0, %v1757
  %v1759 = vpop.f32.mrf.mxu0
  %v1760 = vpop.f32.mrf.mxu0
  %v1761 = vpop.f32.mrf.mxu0
  %1762 = vdwg.mxu0
  %s1763 = scalar_lea.vmem %s14, 16
  %1764 = vst.msk [vmem:[%s1763] sm:$0xff] %vm204, %v1758
  %s1765 = scalar_lea.vmem [#allocation2], 3
  %v1766 = vld [vmem:[%s1765] ss:$8 sm:$0xf]
  %v1767 = vld [vmem:[%s1765] ss:$8 sm:$0xf0]
  %v1768 = vor.u32 %v1766, %v1767
  %v1769 = vpack.c.bf16 %v1768, %v1768
  %v1771 = vsel %vm204, %v1769, 0
  %1773 = vmatprep.subr.bf16.mxu0 0
  %1774 = vmatpush1.bf16.msra.mxu0 0
  %1775 = vmatprep.subr.bf16.mxu0 0
  %1776 = vmatpush1.bf16.msra.mxu0 0
  %1777 = vmatprep.subr.bf16.mxu0 0
  %1778 = vmatpush1.bf16.msra.mxu0 0
  %1779 = vmatprep.subr.bf16.mxu0 0
  %1780 = vmatpush1.bf16.msra.mxu0 0
  %1781 = vmatprep.subr.bf16.mxu0 0
  %1782 = vmatpush1.bf16.msra.mxu0 0
  %1783 = vmatprep.subr.bf16.mxu0 0
  %1784 = vmatpush1.bf16.msra.mxu0 0
  %1785 = vmatprep.subr.bf16.mxu0 0
  %1786 = vmatpush1.bf16.msra.mxu0 %v1333
  %1787 = vmatprep.subr.bf16.mxu0 0
  %1788 = vmatpush1.bf16.msra.mxu0 %v1332
  %1789 = vmatprep.subr.bf16.mxu0 0
  %1790 = vmatpush2.bf16.msra.mxu0 0
  %1791 = vmatprep.subr.bf16.mxu0 0
  %1792 = vmatpush2.bf16.msra.mxu0 0
  %1793 = vmatprep.subr.bf16.mxu0 0
  %1794 = vmatpush2.bf16.msra.mxu0 0
  %1795 = vmatprep.subr.bf16.mxu0 0
  %1796 = vmatpush2.bf16.msra.mxu0 0
  %1797 = vmatprep.subr.bf16.mxu0 0
  %1798 = vmatpush2.bf16.msra.mxu0 0
  %1799 = vmatprep.subr.bf16.mxu0 0
  %1800 = vmatpush2.bf16.msra.mxu0 0
  %1801 = vmatprep.subr.bf16.mxu0 0
  %1802 = vmatpush2.bf16.msra.mxu0 0
  %1803 = vmatprep.subr.bf16.mxu0 0
  %1804 = vmatpush2.bf16.msra.mxu0 0
  %1805 = vmatprep.mubr.bf16.mxu0 0
  %1806 = vmatmul.mubr.bf16.gmra.mxu0 %v1771
  %v1807 = vpop.f32.mrf.mxu0
  %v1808 = vadd.f32 %v1309, %v1807
  %v1809 = vpop.f32.mrf.mxu0
  %v1810 = vpop.f32.mrf.mxu0
  %v1811 = vpop.f32.mrf.mxu0
  %1812 = vdwg.mxu0
  %v1813 = vmax.f32 %v1808, 0.0
  %v1814 = vpack.c.bf16 %v1813, %v1813
  %v1816 = vsel %vm204, %v1814, 0
  %1818 = vmatprep.subr.bf16.mxu0 0
  %1819 = vmatpush1.bf16.msra.mxu0 0
  %1820 = vmatprep.subr.bf16.mxu0 0
  %1821 = vmatpush1.bf16.msra.mxu0 0
  %1822 = vmatprep.subr.bf16.mxu0 0
  %1823 = vmatpush1.bf16.msra.mxu0 0
  %1824 = vmatprep.subr.bf16.mxu0 0
  %1825 = vmatpush1.bf16.msra.mxu0 0
  %1826 = vmatprep.subr.bf16.mxu0 0
  %1827 = vmatpush1.bf16.msra.mxu0 0
  %1828 = vmatprep.subr.bf16.mxu0 0
  %1829 = vmatpush1.bf16.msra.mxu0 0
  %1830 = vmatprep.subr.bf16.mxu0 0
  %1831 = vmatpush1.bf16.msra.mxu0 %v1390
  %1832 = vmatprep.subr.bf16.mxu0 0
  %1833 = vmatpush1.bf16.msra.mxu0 %v1389
  %1834 = vmatprep.subr.bf16.mxu0 0
  %1835 = vmatpush2.bf16.msra.mxu0 0
  %1836 = vmatprep.subr.bf16.mxu0 0
  %1837 = vmatpush2.bf16.msra.mxu0 0
  %1838 = vmatprep.subr.bf16.mxu0 0
  %1839 = vmatpush2.bf16.msra.mxu0 0
  %1840 = vmatprep.subr.bf16.mxu0 0
  %1841 = vmatpush2.bf16.msra.mxu0 0
  %1842 = vmatprep.subr.bf16.mxu0 0
  %1843 = vmatpush2.bf16.msra.mxu0 0
  %1844 = vmatprep.subr.bf16.mxu0 0
  %1845 = vmatpush2.bf16.msra.mxu0 0
  %1846 = vmatprep.subr.bf16.mxu0 0
  %1847 = vmatpush2.bf16.msra.mxu0 0
  %1848 = vmatprep.subr.bf16.mxu0 0
  %1849 = vmatpush2.bf16.msra.mxu0 0
  %1850 = vmatprep.mubr.bf16.mxu0 0
  %1851 = vmatmul.mubr.bf16.gmra.mxu0 %v1816
  %v1852 = vpop.f32.mrf.mxu0
  %v1853 = vadd.f32 %v1316, %v1852
  %v1854 = vpop.f32.mrf.mxu0
  %v1855 = vpop.f32.mrf.mxu0
  %v1856 = vpop.f32.mrf.mxu0
  %1857 = vdwg.mxu0
  %v1858 = vpack.c.bf16 %v1853, %v1853
  %v1860 = vsel %vm91, %v1858, 0
  %1862 = vmatprep.subr.bf16.mxu0 0
  %1863 = vmatpush1.bf16.msra.mxu0 0
  %1864 = vmatprep.subr.bf16.mxu0 0
  %1865 = vmatpush1.bf16.msra.mxu0 0
  %1866 = vmatprep.subr.bf16.mxu0 0
  %1867 = vmatpush1.bf16.msra.mxu0 0
  %1868 = vmatprep.subr.bf16.mxu0 0
  %1869 = vmatpush1.bf16.msra.mxu0 0
  %1870 = vmatprep.subr.bf16.mxu0 0
  %1871 = vmatpush1.bf16.msra.mxu0 0
  %1872 = vmatprep.subr.bf16.mxu0 0
  %1873 = vmatpush1.bf16.msra.mxu0 0
  %1874 = vmatprep.subr.bf16.mxu0 0
  %1875 = vmatpush1.bf16.msra.mxu0 0
  %1876 = vmatprep.subr.bf16.mxu0 0
  %1877 = vmatpush1.bf16.msra.mxu0 %v1441
  %1878 = vmatprep.subr.bf16.mxu0 0
  %1879 = vmatpush2.bf16.msra.mxu0 0
  %1880 = vmatprep.subr.bf16.mxu0 0
  %1881 = vmatpush2.bf16.msra.mxu0 0
  %1882 = vmatprep.subr.bf16.mxu0 0
  %1883 = vmatpush2.bf16.msra.mxu0 0
  %1884 = vmatprep.subr.bf16.mxu0 0
  %1885 = vmatpush2.bf16.msra.mxu0 0
  %1886 = vmatprep.subr.bf16.mxu0 0
  %1887 = vmatpush2.bf16.msra.mxu0 0
  %1888 = vmatprep.subr.bf16.mxu0 0
  %1889 = vmatpush2.bf16.msra.mxu0 0
  %1890 = vmatprep.subr.bf16.mxu0 0
  %1891 = vmatpush2.bf16.msra.mxu0 0
  %1892 = vmatprep.subr.bf16.mxu0 0
  %1893 = vmatpush2.bf16.msra.mxu0 0
  %1894 = vmatprep.mubr.bf16.mxu0 0
  %1895 = vmatmul.mubr.bf16.gmra.mxu0 %v1860
  %v1896 = vpop.f32.mrf.mxu0
  %v1897 = vadd.f32 0.0, %v1896
  %v1898 = vpop.f32.mrf.mxu0
  %v1899 = vpop.f32.mrf.mxu0
  %v1900 = vpop.f32.mrf.mxu0
  %1901 = vdwg.mxu0
  %s1902 = scalar_lea.vmem %s14, 24
  %1903 = vst.msk [vmem:[%s1902] sm:$0xff] %vm204, %v1897
  %s1904 = scalar_lea.vmem [#allocation2], 4
  %v1905 = vld [vmem:[%s1904] ss:$8 sm:$0xf]
  %v1906 = vld [vmem:[%s1904] ss:$8 sm:$0xf0]
  %v1907 = vor.u32 %v1905, %v1906
  %v1908 = vpack.c.bf16 %v1907, %v1907
  %v1910 = vsel %vm204, %v1908, 0
  %1912 = vmatprep.subr.bf16.mxu0 0
  %1913 = vmatpush1.bf16.msra.mxu0 0
  %1914 = vmatprep.subr.bf16.mxu0 0
  %1915 = vmatpush1.bf16.msra.mxu0 0
  %1916 = vmatprep.subr.bf16.mxu0 0
  %1917 = vmatpush1.bf16.msra.mxu0 0
  %1918 = vmatprep.subr.bf16.mxu0 0
  %1919 = vmatpush1.bf16.msra.mxu0 0
  %1920 = vmatprep.subr.bf16.mxu0 0
  %1921 = vmatpush1.bf16.msra.mxu0 0
  %1922 = vmatprep.subr.bf16.mxu0 0
  %1923 = vmatpush1.bf16.msra.mxu0 0
  %1924 = vmatprep.subr.bf16.mxu0 0
  %1925 = vmatpush1.bf16.msra.mxu0 %v1333
  %1926 = vmatprep.subr.bf16.mxu0 0
  %1927 = vmatpush1.bf16.msra.mxu0 %v1332
  %1928 = vmatprep.subr.bf16.mxu0 0
  %1929 = vmatpush2.bf16.msra.mxu0 0
  %1930 = vmatprep.subr.bf16.mxu0 0
  %1931 = vmatpush2.bf16.msra.mxu0 0
  %1932 = vmatprep.subr.bf16.mxu0 0
  %1933 = vmatpush2.bf16.msra.mxu0 0
  %1934 = vmatprep.subr.bf16.mxu0 0
  %1935 = vmatpush2.bf16.msra.mxu0 0
  %1936 = vmatprep.subr.bf16.mxu0 0
  %1937 = vmatpush2.bf16.msra.mxu0 0
  %1938 = vmatprep.subr.bf16.mxu0 0
  %1939 = vmatpush2.bf16.msra.mxu0 0
  %1940 = vmatprep.subr.bf16.mxu0 0
  %1941 = vmatpush2.bf16.msra.mxu0 0
  %1942 = vmatprep.subr.bf16.mxu0 0
  %1943 = vmatpush2.bf16.msra.mxu0 0
  %1944 = vmatprep.mubr.bf16.mxu0 0
  %1945 = vmatmul.mubr.bf16.gmra.mxu0 %v1910
  %v1946 = vpop.f32.mrf.mxu0
  %v1947 = vadd.f32 %v1309, %v1946
  %v1948 = vpop.f32.mrf.mxu0
  %v1949 = vpop.f32.mrf.mxu0
  %v1950 = vpop.f32.mrf.mxu0
  %1951 = vdwg.mxu0
  %v1952 = vmax.f32 %v1947, 0.0
  %v1953 = vpack.c.bf16 %v1952, %v1952
  %v1955 = vsel %vm204, %v1953, 0
  %1957 = vmatprep.subr.bf16.mxu0 0
  %1958 = vmatpush1.bf16.msra.mxu0 0
  %1959 = vmatprep.subr.bf16.mxu0 0
  %1960 = vmatpush1.bf16.msra.mxu0 0
  %1961 = vmatprep.subr.bf16.mxu0 0
  %1962 = vmatpush1.bf16.msra.mxu0 0
  %1963 = vmatprep.subr.bf16.mxu0 0
  %1964 = vmatpush1.bf16.msra.mxu0 0
  %1965 = vmatprep.subr.bf16.mxu0 0
  %1966 = vmatpush1.bf16.msra.mxu0 0
  %1967 = vmatprep.subr.bf16.mxu0 0
  %1968 = vmatpush1.bf16.msra.mxu0 0
  %1969 = vmatprep.subr.bf16.mxu0 0
  %1970 = vmatpush1.bf16.msra.mxu0 %v1390
  %1971 = vmatprep.subr.bf16.mxu0 0
  %1972 = vmatpush1.bf16.msra.mxu0 %v1389
  %1973 = vmatprep.subr.bf16.mxu0 0
  %1974 = vmatpush2.bf16.msra.mxu0 0
  %1975 = vmatprep.subr.bf16.mxu0 0
  %1976 = vmatpush2.bf16.msra.mxu0 0
  %1977 = vmatprep.subr.bf16.mxu0 0
  %1978 = vmatpush2.bf16.msra.mxu0 0
  %1979 = vmatprep.subr.bf16.mxu0 0
  %1980 = vmatpush2.bf16.msra.mxu0 0
  %1981 = vmatprep.subr.bf16.mxu0 0
  %1982 = vmatpush2.bf16.msra.mxu0 0
  %1983 = vmatprep.subr.bf16.mxu0 0
  %1984 = vmatpush2.bf16.msra.mxu0 0
  %1985 = vmatprep.subr.bf16.mxu0 0
  %1986 = vmatpush2.bf16.msra.mxu0 0
  %1987 = vmatprep.subr.bf16.mxu0 0
  %1988 = vmatpush2.bf16.msra.mxu0 0
  %1989 = vmatprep.mubr.bf16.mxu0 0
  %1990 = vmatmul.mubr.bf16.gmra.mxu0 %v1955
  %v1991 = vpop.f32.mrf.mxu0
  %v1992 = vadd.f32 %v1316, %v1991
  %v1993 = vpop.f32.mrf.mxu0
  %v1994 = vpop.f32.mrf.mxu0
  %v1995 = vpop.f32.mrf.mxu0
  %1996 = vdwg.mxu0
  %v1997 = vpack.c.bf16 %v1992, %v1992
  %v1999 = vsel %vm91, %v1997, 0
  %2001 = vmatprep.subr.bf16.mxu0 0
  %2002 = vmatpush1.bf16.msra.mxu0 0
  %2003 = vmatprep.subr.bf16.mxu0 0
  %2004 = vmatpush1.bf16.msra.mxu0 0
  %2005 = vmatprep.subr.bf16.mxu0 0
  %2006 = vmatpush1.bf16.msra.mxu0 0
  %2007 = vmatprep.subr.bf16.mxu0 0
  %2008 = vmatpush1.bf16.msra.mxu0 0
  %2009 = vmatprep.subr.bf16.mxu0 0
  %2010 = vmatpush1.bf16.msra.mxu0 0
  %2011 = vmatprep.subr.bf16.mxu0 0
  %2012 = vmatpush1.bf16.msra.mxu0 0
  %2013 = vmatprep.subr.bf16.mxu0 0
  %2014 = vmatpush1.bf16.msra.mxu0 0
  %2015 = vmatprep.subr.bf16.mxu0 0
  %2016 = vmatpush1.bf16.msra.mxu0 %v1441
  %2017 = vmatprep.subr.bf16.mxu0 0
  %2018 = vmatpush2.bf16.msra.mxu0 0
  %2019 = vmatprep.subr.bf16.mxu0 0
  %2020 = vmatpush2.bf16.msra.mxu0 0
  %2021 = vmatprep.subr.bf16.mxu0 0
  %2022 = vmatpush2.bf16.msra.mxu0 0
  %2023 = vmatprep.subr.bf16.mxu0 0
  %2024 = vmatpush2.bf16.msra.mxu0 0
  %2025 = vmatprep.subr.bf16.mxu0 0
  %2026 = vmatpush2.bf16.msra.mxu0 0
  %2027 = vmatprep.subr.bf16.mxu0 0
  %2028 = vmatpush2.bf16.msra.mxu0 0
  %2029 = vmatprep.subr.bf16.mxu0 0
  %2030 = vmatpush2.bf16.msra.mxu0 0
  %2031 = vmatprep.subr.bf16.mxu0 0
  %2032 = vmatpush2.bf16.msra.mxu0 0
  %2033 = vmatprep.mubr.bf16.mxu0 0
  %2034 = vmatmul.mubr.bf16.gmra.mxu0 %v1999
  %v2035 = vpop.f32.mrf.mxu0
  %v2036 = vadd.f32 0.0, %v2035
  %v2037 = vpop.f32.mrf.mxu0
  %v2038 = vpop.f32.mrf.mxu0
  %v2039 = vpop.f32.mrf.mxu0
  %2040 = vdwg.mxu0
  %s2041 = scalar_lea.vmem %s14, 32
  %2042 = vst.msk [vmem:[%s2041] sm:$0xff] %vm204, %v2036
  %s2043 = scalar_lea.vmem [#allocation2], 5
  %v2044 = vld [vmem:[%s2043] ss:$8 sm:$0xf]
  %v2045 = vld [vmem:[%s2043] ss:$8 sm:$0xf0]
  %v2046 = vor.u32 %v2044, %v2045
  %v2047 = vpack.c.bf16 %v2046, %v2046
  %v2049 = vsel %vm204, %v2047, 0
  %2051 = vmatprep.subr.bf16.mxu0 0
  %2052 = vmatpush1.bf16.msra.mxu0 0
  %2053 = vmatprep.subr.bf16.mxu0 0
  %2054 = vmatpush1.bf16.msra.mxu0 0
  %2055 = vmatprep.subr.bf16.mxu0 0
  %2056 = vmatpush1.bf16.msra.mxu0 0
  %2057 = vmatprep.subr.bf16.mxu0 0
  %2058 = vmatpush1.bf16.msra.mxu0 0
  %2059 = vmatprep.subr.bf16.mxu0 0
  %2060 = vmatpush1.bf16.msra.mxu0 0
  %2061 = vmatprep.subr.bf16.mxu0 0
  %2062 = vmatpush1.bf16.msra.mxu0 0
  %2063 = vmatprep.subr.bf16.mxu0 0
  %2064 = vmatpush1.bf16.msra.mxu0 %v1333
  %2065 = vmatprep.subr.bf16.mxu0 0
  %2066 = vmatpush1.bf16.msra.mxu0 %v1332
  %2067 = vmatprep.subr.bf16.mxu0 0
  %2068 = vmatpush2.bf16.msra.mxu0 0
  %2069 = vmatprep.subr.bf16.mxu0 0
  %2070 = vmatpush2.bf16.msra.mxu0 0
  %2071 = vmatprep.subr.bf16.mxu0 0
  %2072 = vmatpush2.bf16.msra.mxu0 0
  %2073 = vmatprep.subr.bf16.mxu0 0
  %2074 = vmatpush2.bf16.msra.mxu0 0
  %2075 = vmatprep.subr.bf16.mxu0 0
  %2076 = vmatpush2.bf16.msra.mxu0 0
  %2077 = vmatprep.subr.bf16.mxu0 0
  %2078 = vmatpush2.bf16.msra.mxu0 0
  %2079 = vmatprep.subr.bf16.mxu0 0
  %2080 = vmatpush2.bf16.msra.mxu0 0
  %2081 = vmatprep.subr.bf16.mxu0 0
  %2082 = vmatpush2.bf16.msra.mxu0 0
  %2083 = vmatprep.mubr.bf16.mxu0 0
  %2084 = vmatmul.mubr.bf16.gmra.mxu0 %v2049
  %v2085 = vpop.f32.mrf.mxu0
  %v2086 = vadd.f32 %v1309, %v2085
  %v2087 = vpop.f32.mrf.mxu0
  %v2088 = vpop.f32.mrf.mxu0
  %v2089 = vpop.f32.mrf.mxu0
  %2090 = vdwg.mxu0
  %v2091 = vmax.f32 %v2086, 0.0
  %v2092 = vpack.c.bf16 %v2091, %v2091
  %v2094 = vsel %vm204, %v2092, 0
  %2096 = vmatprep.subr.bf16.mxu0 0
  %2097 = vmatpush1.bf16.msra.mxu0 0
  %2098 = vmatprep.subr.bf16.mxu0 0
  %2099 = vmatpush1.bf16.msra.mxu0 0
  %2100 = vmatprep.subr.bf16.mxu0 0
  %2101 = vmatpush1.bf16.msra.mxu0 0
  %2102 = vmatprep.subr.bf16.mxu0 0
  %2103 = vmatpush1.bf16.msra.mxu0 0
  %2104 = vmatprep.subr.bf16.mxu0 0
  %2105 = vmatpush1.bf16.msra.mxu0 0
  %2106 = vmatprep.subr.bf16.mxu0 0
  %2107 = vmatpush1.bf16.msra.mxu0 0
  %2108 = vmatprep.subr.bf16.mxu0 0
  %2109 = vmatpush1.bf16.msra.mxu0 %v1390
  %2110 = vmatprep.subr.bf16.mxu0 0
  %2111 = vmatpush1.bf16.msra.mxu0 %v1389
  %2112 = vmatprep.subr.bf16.mxu0 0
  %2113 = vmatpush2.bf16.msra.mxu0 0
  %2114 = vmatprep.subr.bf16.mxu0 0
  %2115 = vmatpush2.bf16.msra.mxu0 0
  %2116 = vmatprep.subr.bf16.mxu0 0
  %2117 = vmatpush2.bf16.msra.mxu0 0
  %2118 = vmatprep.subr.bf16.mxu0 0
  %2119 = vmatpush2.bf16.msra.mxu0 0
  %2120 = vmatprep.subr.bf16.mxu0 0
  %2121 = vmatpush2.bf16.msra.mxu0 0
  %2122 = vmatprep.subr.bf16.mxu0 0
  %2123 = vmatpush2.bf16.msra.mxu0 0
  %2124 = vmatprep.subr.bf16.mxu0 0
  %2125 = vmatpush2.bf16.msra.mxu0 0
  %2126 = vmatprep.subr.bf16.mxu0 0
  %2127 = vmatpush2.bf16.msra.mxu0 0
  %2128 = vmatprep.mubr.bf16.mxu0 0
  %2129 = vmatmul.mubr.bf16.gmra.mxu0 %v2094
  %v2130 = vpop.f32.mrf.mxu0
  %v2131 = vadd.f32 %v1316, %v2130
  %v2132 = vpop.f32.mrf.mxu0
  %v2133 = vpop.f32.mrf.mxu0
  %v2134 = vpop.f32.mrf.mxu0
  %2135 = vdwg.mxu0
  %v2136 = vpack.c.bf16 %v2131, %v2131
  %v2138 = vsel %vm91, %v2136, 0
  %2140 = vmatprep.subr.bf16.mxu0 0
  %2141 = vmatpush1.bf16.msra.mxu0 0
  %2142 = vmatprep.subr.bf16.mxu0 0
  %2143 = vmatpush1.bf16.msra.mxu0 0
  %2144 = vmatprep.subr.bf16.mxu0 0
  %2145 = vmatpush1.bf16.msra.mxu0 0
  %2146 = vmatprep.subr.bf16.mxu0 0
  %2147 = vmatpush1.bf16.msra.mxu0 0
  %2148 = vmatprep.subr.bf16.mxu0 0
  %2149 = vmatpush1.bf16.msra.mxu0 0
  %2150 = vmatprep.subr.bf16.mxu0 0
  %2151 = vmatpush1.bf16.msra.mxu0 0
  %2152 = vmatprep.subr.bf16.mxu0 0
  %2153 = vmatpush1.bf16.msra.mxu0 0
  %2154 = vmatprep.subr.bf16.mxu0 0
  %2155 = vmatpush1.bf16.msra.mxu0 %v1441
  %2156 = vmatprep.subr.bf16.mxu0 0
  %2157 = vmatpush2.bf16.msra.mxu0 0
  %2158 = vmatprep.subr.bf16.mxu0 0
  %2159 = vmatpush2.bf16.msra.mxu0 0
  %2160 = vmatprep.subr.bf16.mxu0 0
  %2161 = vmatpush2.bf16.msra.mxu0 0
  %2162 = vmatprep.subr.bf16.mxu0 0
  %2163 = vmatpush2.bf16.msra.mxu0 0
  %2164 = vmatprep.subr.bf16.mxu0 0
  %2165 = vmatpush2.bf16.msra.mxu0 0
  %2166 = vmatprep.subr.bf16.mxu0 0
  %2167 = vmatpush2.bf16.msra.mxu0 0
  %2168 = vmatprep.subr.bf16.mxu0 0
  %2169 = vmatpush2.bf16.msra.mxu0 0
  %2170 = vmatprep.subr.bf16.mxu0 0
  %2171 = vmatpush2.bf16.msra.mxu0 0
  %2172 = vmatprep.mubr.bf16.mxu0 0
  %2173 = vmatmul.mubr.bf16.gmra.mxu0 %v2138
  %v2174 = vpop.f32.mrf.mxu0
  %v2175 = vadd.f32 0.0, %v2174
  %v2176 = vpop.f32.mrf.mxu0
  %v2177 = vpop.f32.mrf.mxu0
  %v2178 = vpop.f32.mrf.mxu0
  %2179 = vdwg.mxu0
  %s2180 = scalar_lea.vmem %s14, 40
  %2181 = vst.msk [vmem:[%s2180] sm:$0xff] %vm204, %v2175
  %s2182 = scalar_lea.vmem [#allocation2], 6
  %v2183 = vld [vmem:[%s2182] ss:$8 sm:$0xf]
  %v2184 = vld [vmem:[%s2182] ss:$8 sm:$0xf0]
  %v2185 = vor.u32 %v2183, %v2184
  %v2186 = vpack.c.bf16 %v2185, %v2185
  %v2188 = vsel %vm204, %v2186, 0
  %2190 = vmatprep.subr.bf16.mxu0 0
  %2191 = vmatpush1.bf16.msra.mxu0 0
  %2192 = vmatprep.subr.bf16.mxu0 0
  %2193 = vmatpush1.bf16.msra.mxu0 0
  %2194 = vmatprep.subr.bf16.mxu0 0
  %2195 = vmatpush1.bf16.msra.mxu0 0
  %2196 = vmatprep.subr.bf16.mxu0 0
  %2197 = vmatpush1.bf16.msra.mxu0 0
  %2198 = vmatprep.subr.bf16.mxu0 0
  %2199 = vmatpush1.bf16.msra.mxu0 0
  %2200 = vmatprep.subr.bf16.mxu0 0
  %2201 = vmatpush1.bf16.msra.mxu0 0
  %2202 = vmatprep.subr.bf16.mxu0 0
  %2203 = vmatpush1.bf16.msra.mxu0 %v1333
  %2204 = vmatprep.subr.bf16.mxu0 0
  %2205 = vmatpush1.bf16.msra.mxu0 %v1332
  %2206 = vmatprep.subr.bf16.mxu0 0
  %2207 = vmatpush2.bf16.msra.mxu0 0
  %2208 = vmatprep.subr.bf16.mxu0 0
  %2209 = vmatpush2.bf16.msra.mxu0 0
  %2210 = vmatprep.subr.bf16.mxu0 0
  %2211 = vmatpush2.bf16.msra.mxu0 0
  %2212 = vmatprep.subr.bf16.mxu0 0
  %2213 = vmatpush2.bf16.msra.mxu0 0
  %2214 = vmatprep.subr.bf16.mxu0 0
  %2215 = vmatpush2.bf16.msra.mxu0 0
  %2216 = vmatprep.subr.bf16.mxu0 0
  %2217 = vmatpush2.bf16.msra.mxu0 0
  %2218 = vmatprep.subr.bf16.mxu0 0
  %2219 = vmatpush2.bf16.msra.mxu0 0
  %2220 = vmatprep.subr.bf16.mxu0 0
  %2221 = vmatpush2.bf16.msra.mxu0 0
  %2222 = vmatprep.mubr.bf16.mxu0 0
  %2223 = vmatmul.mubr.bf16.gmra.mxu0 %v2188
  %v2224 = vpop.f32.mrf.mxu0
  %v2225 = vadd.f32 %v1309, %v2224
  %v2226 = vpop.f32.mrf.mxu0
  %v2227 = vpop.f32.mrf.mxu0
  %v2228 = vpop.f32.mrf.mxu0
  %2229 = vdwg.mxu0
  %v2230 = vmax.f32 %v2225, 0.0
  %v2231 = vpack.c.bf16 %v2230, %v2230
  %v2233 = vsel %vm204, %v2231, 0
  %2235 = vmatprep.subr.bf16.mxu0 0
  %2236 = vmatpush1.bf16.msra.mxu0 0
  %2237 = vmatprep.subr.bf16.mxu0 0
  %2238 = vmatpush1.bf16.msra.mxu0 0
  %2239 = vmatprep.subr.bf16.mxu0 0
  %2240 = vmatpush1.bf16.msra.mxu0 0
  %2241 = vmatprep.subr.bf16.mxu0 0
  %2242 = vmatpush1.bf16.msra.mxu0 0
  %2243 = vmatprep.subr.bf16.mxu0 0
  %2244 = vmatpush1.bf16.msra.mxu0 0
  %2245 = vmatprep.subr.bf16.mxu0 0
  %2246 = vmatpush1.bf16.msra.mxu0 0
  %2247 = vmatprep.subr.bf16.mxu0 0
  %2248 = vmatpush1.bf16.msra.mxu0 %v1390
  %2249 = vmatprep.subr.bf16.mxu0 0
  %2250 = vmatpush1.bf16.msra.mxu0 %v1389
  %2251 = vmatprep.subr.bf16.mxu0 0
  %2252 = vmatpush2.bf16.msra.mxu0 0
  %2253 = vmatprep.subr.bf16.mxu0 0
  %2254 = vmatpush2.bf16.msra.mxu0 0
  %2255 = vmatprep.subr.bf16.mxu0 0
  %2256 = vmatpush2.bf16.msra.mxu0 0
  %2257 = vmatprep.subr.bf16.mxu0 0
  %2258 = vmatpush2.bf16.msra.mxu0 0
  %2259 = vmatprep.subr.bf16.mxu0 0
  %2260 = vmatpush2.bf16.msra.mxu0 0
  %2261 = vmatprep.subr.bf16.mxu0 0
  %2262 = vmatpush2.bf16.msra.mxu0 0
  %2263 = vmatprep.subr.bf16.mxu0 0
  %2264 = vmatpush2.bf16.msra.mxu0 0
  %2265 = vmatprep.subr.bf16.mxu0 0
  %2266 = vmatpush2.bf16.msra.mxu0 0
  %2267 = vmatprep.mubr.bf16.mxu0 0
  %2268 = vmatmul.mubr.bf16.gmra.mxu0 %v2233
  %v2269 = vpop.f32.mrf.mxu0
  %v2270 = vadd.f32 %v1316, %v2269
  %v2271 = vpop.f32.mrf.mxu0
  %v2272 = vpop.f32.mrf.mxu0
  %v2273 = vpop.f32.mrf.mxu0
  %2274 = vdwg.mxu0
  %v2275 = vpack.c.bf16 %v2270, %v2270
  %v2277 = vsel %vm91, %v2275, 0
  %2279 = vmatprep.subr.bf16.mxu0 0
  %2280 = vmatpush1.bf16.msra.mxu0 0
  %2281 = vmatprep.subr.bf16.mxu0 0
  %2282 = vmatpush1.bf16.msra.mxu0 0
  %2283 = vmatprep.subr.bf16.mxu0 0
  %2284 = vmatpush1.bf16.msra.mxu0 0
  %2285 = vmatprep.subr.bf16.mxu0 0
  %2286 = vmatpush1.bf16.msra.mxu0 0
  %2287 = vmatprep.subr.bf16.mxu0 0
  %2288 = vmatpush1.bf16.msra.mxu0 0
  %2289 = vmatprep.subr.bf16.mxu0 0
  %2290 = vmatpush1.bf16.msra.mxu0 0
  %2291 = vmatprep.subr.bf16.mxu0 0
  %2292 = vmatpush1.bf16.msra.mxu0 0
  %2293 = vmatprep.subr.bf16.mxu0 0
  %2294 = vmatpush1.bf16.msra.mxu0 %v1441
  %2295 = vmatprep.subr.bf16.mxu0 0
  %2296 = vmatpush2.bf16.msra.mxu0 0
  %2297 = vmatprep.subr.bf16.mxu0 0
  %2298 = vmatpush2.bf16.msra.mxu0 0
  %2299 = vmatprep.subr.bf16.mxu0 0
  %2300 = vmatpush2.bf16.msra.mxu0 0
  %2301 = vmatprep.subr.bf16.mxu0 0
  %2302 = vmatpush2.bf16.msra.mxu0 0
  %2303 = vmatprep.subr.bf16.mxu0 0
  %2304 = vmatpush2.bf16.msra.mxu0 0
  %2305 = vmatprep.subr.bf16.mxu0 0
  %2306 = vmatpush2.bf16.msra.mxu0 0
  %2307 = vmatprep.subr.bf16.mxu0 0
  %2308 = vmatpush2.bf16.msra.mxu0 0
  %2309 = vmatprep.subr.bf16.mxu0 0
  %2310 = vmatpush2.bf16.msra.mxu0 0
  %2311 = vmatprep.mubr.bf16.mxu0 0
  %2312 = vmatmul.mubr.bf16.gmra.mxu0 %v2277
  %v2313 = vpop.f32.mrf.mxu0
  %v2314 = vadd.f32 0.0, %v2313
  %v2315 = vpop.f32.mrf.mxu0
  %v2316 = vpop.f32.mrf.mxu0
  %v2317 = vpop.f32.mrf.mxu0
  %2318 = vdwg.mxu0
  %s2319 = scalar_lea.vmem %s14, 48
  %2320 = vst.msk [vmem:[%s2319] sm:$0xff] %vm204, %v2314
  %s2321 = scalar_lea.vmem [#allocation2], 7
  %v2322 = vld [vmem:[%s2321] ss:$8 sm:$0xf]
  %v2323 = vld [vmem:[%s2321] ss:$8 sm:$0xf0]
  %v2324 = vor.u32 %v2322, %v2323
  %v2325 = vpack.c.bf16 %v2324, %v2324
  %v2327 = vsel %vm204, %v2325, 0
  %2329 = vmatprep.subr.bf16.mxu0 0
  %2330 = vmatpush1.bf16.msra.mxu0 0
  %2331 = vmatprep.subr.bf16.mxu0 0
  %2332 = vmatpush1.bf16.msra.mxu0 0
  %2333 = vmatprep.subr.bf16.mxu0 0
  %2334 = vmatpush1.bf16.msra.mxu0 0
  %2335 = vmatprep.subr.bf16.mxu0 0
  %2336 = vmatpush1.bf16.msra.mxu0 0
  %2337 = vmatprep.subr.bf16.mxu0 0
  %2338 = vmatpush1.bf16.msra.mxu0 0
  %2339 = vmatprep.subr.bf16.mxu0 0
  %2340 = vmatpush1.bf16.msra.mxu0 0
  %2341 = vmatprep.subr.bf16.mxu0 0
  %2342 = vmatpush1.bf16.msra.mxu0 %v1333
  %2343 = vmatprep.subr.bf16.mxu0 0
  %2344 = vmatpush1.bf16.msra.mxu0 %v1332
  %2345 = vmatprep.subr.bf16.mxu0 0
  %2346 = vmatpush2.bf16.msra.mxu0 0
  %2347 = vmatprep.subr.bf16.mxu0 0
  %2348 = vmatpush2.bf16.msra.mxu0 0
  %2349 = vmatprep.subr.bf16.mxu0 0
  %2350 = vmatpush2.bf16.msra.mxu0 0
  %2351 = vmatprep.subr.bf16.mxu0 0
  %2352 = vmatpush2.bf16.msra.mxu0 0
  %2353 = vmatprep.subr.bf16.mxu0 0
  %2354 = vmatpush2.bf16.msra.mxu0 0
  %2355 = vmatprep.subr.bf16.mxu0 0
  %2356 = vmatpush2.bf16.msra.mxu0 0
  %2357 = vmatprep.subr.bf16.mxu0 0
  %2358 = vmatpush2.bf16.msra.mxu0 0
  %2359 = vmatprep.subr.bf16.mxu0 0
  %2360 = vmatpush2.bf16.msra.mxu0 0
  %2361 = vmatprep.mubr.bf16.mxu0 0
  %2362 = vmatmul.mubr.bf16.gmra.mxu0 %v2327
  %v2363 = vpop.f32.mrf.mxu0
  %v2364 = vadd.f32 %v1309, %v2363
  %v2365 = vpop.f32.mrf.mxu0
  %v2366 = vpop.f32.mrf.mxu0
  %v2367 = vpop.f32.mrf.mxu0
  %2368 = vdwg.mxu0
  %v2369 = vmax.f32 %v2364, 0.0
  %v2370 = vpack.c.bf16 %v2369, %v2369
  %v2372 = vsel %vm204, %v2370, 0
  %2374 = vmatprep.subr.bf16.mxu0 0
  %2375 = vmatpush1.bf16.msra.mxu0 0
  %2376 = vmatprep.subr.bf16.mxu0 0
  %2377 = vmatpush1.bf16.msra.mxu0 0
  %2378 = vmatprep.subr.bf16.mxu0 0
  %2379 = vmatpush1.bf16.msra.mxu0 0
  %2380 = vmatprep.subr.bf16.mxu0 0
  %2381 = vmatpush1.bf16.msra.mxu0 0
  %2382 = vmatprep.subr.bf16.mxu0 0
  %2383 = vmatpush1.bf16.msra.mxu0 0
  %2384 = vmatprep.subr.bf16.mxu0 0
  %2385 = vmatpush1.bf16.msra.mxu0 0
  %2386 = vmatprep.subr.bf16.mxu0 0
  %2387 = vmatpush1.bf16.msra.mxu0 %v1390
  %2388 = vmatprep.subr.bf16.mxu0 0
  %2389 = vmatpush1.bf16.msra.mxu0 %v1389
  %2390 = vmatprep.subr.bf16.mxu0 0
  %2391 = vmatpush2.bf16.msra.mxu0 0
  %2392 = vmatprep.subr.bf16.mxu0 0
  %2393 = vmatpush2.bf16.msra.mxu0 0
  %2394 = vmatprep.subr.bf16.mxu0 0
  %2395 = vmatpush2.bf16.msra.mxu0 0
  %2396 = vmatprep.subr.bf16.mxu0 0
  %2397 = vmatpush2.bf16.msra.mxu0 0
  %2398 = vmatprep.subr.bf16.mxu0 0
  %2399 = vmatpush2.bf16.msra.mxu0 0
  %2400 = vmatprep.subr.bf16.mxu0 0
  %2401 = vmatpush2.bf16.msra.mxu0 0
  %2402 = vmatprep.subr.bf16.mxu0 0
  %2403 = vmatpush2.bf16.msra.mxu0 0
  %2404 = vmatprep.subr.bf16.mxu0 0
  %2405 = vmatpush2.bf16.msra.mxu0 0
  %2406 = vmatprep.mubr.bf16.mxu0 0
  %2407 = vmatmul.mubr.bf16.gmra.mxu0 %v2372
  %v2408 = vpop.f32.mrf.mxu0
  %v2409 = vadd.f32 %v1316, %v2408
  %v2410 = vpop.f32.mrf.mxu0
  %v2411 = vpop.f32.mrf.mxu0
  %v2412 = vpop.f32.mrf.mxu0
  %2413 = vdwg.mxu0
  %v2414 = vpack.c.bf16 %v2409, %v2409
  %v2416 = vsel %vm91, %v2414, 0
  %2418 = vmatprep.subr.bf16.mxu0 0
  %2419 = vmatpush1.bf16.msra.mxu0 0
  %2420 = vmatprep.subr.bf16.mxu0 0
  %2421 = vmatpush1.bf16.msra.mxu0 0
  %2422 = vmatprep.subr.bf16.mxu0 0
  %2423 = vmatpush1.bf16.msra.mxu0 0
  %2424 = vmatprep.subr.bf16.mxu0 0
  %2425 = vmatpush1.bf16.msra.mxu0 0
  %2426 = vmatprep.subr.bf16.mxu0 0
  %2427 = vmatpush1.bf16.msra.mxu0 0
  %2428 = vmatprep.subr.bf16.mxu0 0
  %2429 = vmatpush1.bf16.msra.mxu0 0
  %2430 = vmatprep.subr.bf16.mxu0 0
  %2431 = vmatpush1.bf16.msra.mxu0 0
  %2432 = vmatprep.subr.bf16.mxu0 0
  %2433 = vmatpush1.bf16.msra.mxu0 %v1441
  %2434 = vmatprep.subr.bf16.mxu0 0
  %2435 = vmatpush2.bf16.msra.mxu0 0
  %2436 = vmatprep.subr.bf16.mxu0 0
  %2437 = vmatpush2.bf16.msra.mxu0 0
  %2438 = vmatprep.subr.bf16.mxu0 0
  %2439 = vmatpush2.bf16.msra.mxu0 0
  %2440 = vmatprep.subr.bf16.mxu0 0
  %2441 = vmatpush2.bf16.msra.mxu0 0
  %2442 = vmatprep.subr.bf16.mxu0 0
  %2443 = vmatpush2.bf16.msra.mxu0 0
  %2444 = vmatprep.subr.bf16.mxu0 0
  %2445 = vmatpush2.bf16.msra.mxu0 0
  %2446 = vmatprep.subr.bf16.mxu0 0
  %2447 = vmatpush2.bf16.msra.mxu0 0
  %2448 = vmatprep.subr.bf16.mxu0 0
  %2449 = vmatpush2.bf16.msra.mxu0 0
  %2450 = vmatprep.mubr.bf16.mxu0 0
  %2451 = vmatmul.mubr.bf16.gmra.mxu0 %v2416
  %v2452 = vpop.f32.mrf.mxu0
  %v2453 = vadd.f32 0.0, %v2452
  %v2454 = vpop.f32.mrf.mxu0
  %v2455 = vpop.f32.mrf.mxu0
  %v2456 = vpop.f32.mrf.mxu0
  %2457 = vdwg.mxu0
  %s2458 = scalar_lea.vmem %s14, 56
  %2459 = vst.msk [vmem:[%s2458] sm:$0xff] %vm204, %v2453
  // Predicated region
  $region58: #{_lambda_.3} parent=0 // pred_check
    _
  $region59: #{_lambda_.3} parent=0 // pred_check_branch
    %2461 = sbr.rel (0) target = $region61
  $region60: #{_lambda_.3} parent=0 // pred_region
    _
  $region61: #{_lambda_.3} parent=0 // pred_fallthru
    _
  // Predicated region
  $region62: #{_lambda_.3} parent=0 // pred_check
    _
  $region63: #{_lambda_.3} parent=0 // pred_check_branch
    %2463 = sbr.rel (0) target = $region65
  $region64: #{_lambda_.3} parent=0 // pred_region
    _
  $region65: #{_lambda_.3} parent=0 // pred_fallthru
    _

</llo_original>
